<compile_context>
chip_gen: v7x
topology: tpu7x:2x2x1
jax: 0.10.0
libtpu: 0.0.40
codegen_flags: <defaults>
</compile_context>

<pallas_src>
import functools
import math

import jax
import jax.numpy as jnp
from jax.experimental import pallas as pl
from jax.experimental.pallas import tpu as pltpu

# ----------------------------- config ---------------------------------------
VOCAB = 100
VOCAB_PAD = 128            # embedding table padded to a full sublane/lane tile
MAX_POS = 16
TYPE_VOCAB = 2
HIDDEN = 128
N_HEADS = 2
HEAD_DIM = HIDDEN // N_HEADS   # 64
HEAD_PAD = 128                 # each head's Q/K/V columns padded to 128 lanes
QKV_COLS = 3 * N_HEADS * HEAD_PAD   # 768
INTERMEDIATE = 256
N_LAYERS = 2
N_CLASSES = 4
CLS_PAD = 128              # classifier output padded to a full 128-lane tile
LN_EPS = 1e-12
NEG_FILL = -1e30           # f32-safe fill for padded classifier lanes
BATCH = 2
SEQ = 8


# ----------------------------- math helpers ----------------------------------
def _gelu(x):
    # tanh-approx GELU (BERT uses exact erf GELU); f32 elementwise.
    c = math.sqrt(2.0 / math.pi)
    return 0.5 * x * (1.0 + jnp.tanh(c * (x + 0.044715 * x * x * x)))


def _layernorm(x, g, b):
    mu = jnp.mean(x, axis=-1, keepdims=True)
    d = x - mu
    var = jnp.mean(d * d, axis=-1, keepdims=True)
    return d * jax.lax.rsqrt(var + LN_EPS) * g + b


# ----------------------------- kernel ----------------------------------------
def bert_fused_kernel(
    ids_ref, mask_ref, word_ref, pos_ref, eg_ref, eb_ref,
    wqkv_ref, bqkv_ref, wo_ref, bo_ref, ln1g_ref, ln1b_ref,
    wi_ref, bi_ref, wf_ref, bf_ref, ln2g_ref, ln2b_ref,
    poolw_ref, poolb_ref, clsw_ref, clsb_ref,
    out_ref, *, seq,
):
    S, H, nH = seq, HIDDEN, N_HEADS
    scale = 1.0 / math.sqrt(HEAD_DIM)
    bf16 = jnp.bfloat16

    # ---- embedding lookup in-kernel: one-hot MXU matmul (no XLA gather) ----
    ids = ids_ref[0]                                            # [S, 1] int32
    vocab_iota = jax.lax.broadcasted_iota(jnp.int32, (S, VOCAB_PAD), 1)
    onehot = (ids == vocab_iota).astype(bf16)                   # [S, VOCAB_PAD]
    word = jnp.dot(onehot, word_ref[...],
                   preferred_element_type=jnp.float32)          # [S, H] f32
    emb = word + pos_ref[...]          # position (+ token-type-0) table, f32
    h = _layernorm(emb, eg_ref[...], eb_ref[...])               # [S, H] f32

    # ---- additive attention-mask bias over keys, computed in-kernel --------
    mask_f = mask_ref[0].astype(jnp.float32)                    # [1, S]
    bias = (1.0 - mask_f) * -10000.0                            # [1, S]

    # ---- transformer layers (weights VMEM-resident, statically unrolled) ---
    for l in range(N_LAYERS):
        x = h
        x16 = x.astype(bf16)

        # Fused QKV projection.  Column layout: [Qh0|Qh1|Kh0|Kh1|Vh0|Vh1],
        # each head padded to 128 lanes (pad weight cols & bias are zero, so
        # pad lanes are exact zeros and contribute nothing below).
        qkv = jnp.dot(x16, wqkv_ref[l],
                      preferred_element_type=jnp.float32) + bqkv_ref[l]  # [S, 768]

        attn = jnp.zeros((S, H), jnp.float32)
        for hh in range(nH):                       # all slices 128-lane aligned
            q_h = qkv[:, (0 * nH + hh) * HEAD_PAD:(0 * nH + hh + 1) * HEAD_PAD]
            k_h = qkv[:, (1 * nH + hh) * HEAD_PAD:(1 * nH + hh + 1) * HEAD_PAD]
            v_h = qkv[:, (2 * nH + hh) * HEAD_PAD:(2 * nH + hh + 1) * HEAD_PAD]
            # q @ k^T contracting last dims (no materialized transpose).
            s = jax.lax.dot_general(
                q_h.astype(bf16), k_h.astype(bf16),
                (((1,), (1,)), ((), ())),
                preferred_element_type=jnp.float32)             # [S, S] f32
            s = s * scale + bias
            s = s - jnp.max(s, axis=-1, keepdims=True)
            p = jnp.exp(s)
            # approx reciprocal (EUP slot): ~1e-3 rel err, fine for classification.
            p = p * pl.reciprocal(jnp.sum(p, axis=-1, keepdims=True), approx=True)
            ctx = jnp.dot(p.astype(bf16), v_h.astype(bf16),
                          preferred_element_type=jnp.float32)   # [S, 128]
            # Fold the output projection per head (zero-padded rows) and
            # accumulate -> no context concatenation/assembly ever happens.
            attn = attn + jnp.dot(ctx.astype(bf16), wo_ref[l, hh],
                                  preferred_element_type=jnp.float32)
        attn = attn + bo_ref[l]
        h1 = _layernorm(attn + x, ln1g_ref[l], ln1b_ref[l])

        # FFN (GELU) + residual + LN2; matmuls bf16, elementwise f32.
        inter = _gelu(jnp.dot(h1.astype(bf16), wi_ref[l],
                              preferred_element_type=jnp.float32) + bi_ref[l])
        ffn = jnp.dot(inter.astype(bf16), wf_ref[l],
                      preferred_element_type=jnp.float32) + bf_ref[l]
        h = _layernorm(ffn + h1, ln2g_ref[l], ln2b_ref[l])

    # ---- pooler: dense + tanh on the [CLS] token (row 0 of this sequence) --
    cls = h[0:1, :]
    pooled = jnp.tanh(
        jnp.dot(cls.astype(bf16), poolw_ref[...],
                preferred_element_type=jnp.float32) + poolb_ref[...])    # [1, H]

    # ---- classifier (padded to 128 lanes) + masked LogSoftmax, all in f32 --
    logits = jnp.dot(pooled.astype(bf16), clsw_ref[...],
                     preferred_element_type=jnp.float32) + clsb_ref[...]  # [1,128]
    lane = jax.lax.broadcasted_iota(jnp.int32, logits.shape, 1)
    valid = lane < N_CLASSES
    logits = jnp.where(valid, logits, NEG_FILL)
    m = jnp.max(logits, axis=-1, keepdims=True)
    z = logits - m
    denom = jnp.sum(jnp.where(valid, jnp.exp(z), 0.0), axis=-1, keepdims=True)
    out_ref[0] = (z - jnp.log(denom)).astype(out_ref.dtype)


# ----------------------------- cost estimate ---------------------------------
def _cost_estimate(B, S, args):
    mm = lambda m, k, n: 2 * m * k * n
    per_head = mm(S, HEAD_PAD, S) + mm(S, S, HEAD_PAD) + mm(S, HEAD_PAD, HIDDEN)
    per_layer = (mm(S, HIDDEN, QKV_COLS) + N_HEADS * per_head
                 + mm(S, HIDDEN, INTERMEDIATE) + mm(S, INTERMEDIATE, HIDDEN))
    per_seq = (mm(S, VOCAB_PAD, HIDDEN) + N_LAYERS * per_layer
               + mm(1, HIDDEN, HIDDEN) + mm(1, HIDDEN, CLS_PAD))
    transc = B * (N_LAYERS * (N_HEADS * S * S + S * INTERMEDIATE)
                  + HIDDEN + CLS_PAD)
    bytes_accessed = int(sum(a.size * a.dtype.itemsize for a in args)
                         + B * CLS_PAD * 4)
    return pl.CostEstimate(flops=int(B * per_seq), transcendentals=int(transc),
                           bytes_accessed=bytes_accessed)


# ----------------------------- parameters ------------------------------------
def init_params(key):
    keys = iter(jax.random.split(key, 64))

    def nrm(shape, scale=0.02):
        return scale * jax.random.normal(next(keys), shape, dtype=jnp.float32)

    L, H, I, Dh, nH = N_LAYERS, HIDDEN, INTERMEDIATE, HEAD_DIM, N_HEADS

    # Fused QKV weight: per-head columns zero-padded to their own 128-lane
    # group -> all in-kernel head slices are lane-aligned.  Pad columns AND the
    # corresponding bias entries must stay exactly zero.
    def pad_heads(w):                      # [L, H, nH, Dh] -> [L, H, nH, HEAD_PAD]
        return jnp.pad(w, ((0, 0), (0, 0), (0, 0), (0, HEAD_PAD - Dh)))

    wq, wk, wv = (nrm((L, H, nH, Dh)) for _ in range(3))
    wqkv = jnp.concatenate([pad_heads(wq), pad_heads(wk), pad_heads(wv)],
                           axis=2).reshape(L, H, QKV_COLS).astype(jnp.bfloat16)

    # Attention output projection split per head, rows zero-padded 64 -> 128.
    wo = jnp.pad(nrm((L, nH, Dh, H)),
                 ((0, 0), (0, 0), (0, HEAD_PAD - Dh), (0, 0))).astype(jnp.bfloat16)

    # Word-embedding table padded to 128 rows (pad rows never selected).
    word_emb = jnp.pad(nrm((VOCAB, H)),
                       ((0, VOCAB_PAD - VOCAB), (0, 0))).astype(jnp.bfloat16)

    cls_w = jnp.pad(nrm((H, N_CLASSES)),
                    ((0, 0), (0, CLS_PAD - N_CLASSES))).astype(jnp.bfloat16)

    return {
        "word_emb": word_emb,                            # [128, H]  bf16
        "pos_emb": nrm((MAX_POS, H)),                    # f32
        "type_emb": nrm((TYPE_VOCAB, H)),                # f32
        "emb_ln_g": jnp.ones((1, H), jnp.float32),
        "emb_ln_b": jnp.zeros((1, H), jnp.float32),
        "wqkv": wqkv,                                    # [L, H, 768] bf16
        "bqkv": jnp.zeros((L, 1, QKV_COLS), jnp.float32),
        "wo": wo,                                        # [L, nH, 128, H] bf16
        "bo": jnp.zeros((L, 1, H), jnp.float32),
        "ln1_g": jnp.ones((L, 1, H), jnp.float32),
        "ln1_b": jnp.zeros((L, 1, H), jnp.float32),
        "wi": nrm((L, H, I)).astype(jnp.bfloat16),
        "bi": jnp.zeros((L, 1, I), jnp.float32),
        "wf": nrm((L, I, H)).astype(jnp.bfloat16),
        "bf": jnp.zeros((L, 1, H), jnp.float32),
        "ln2_g": jnp.ones((L, 1, H), jnp.float32),
        "ln2_b": jnp.zeros((L, 1, H), jnp.float32),
        "pool_w": nrm((H, H)).astype(jnp.bfloat16),
        "pool_b": jnp.zeros((1, H), jnp.float32),
        "cls_w": cls_w,                                  # [H, 128] bf16
        "cls_b": jnp.zeros((1, CLS_PAD), jnp.float32),
    }


# ----------------------------- forward ---------------------------------------
def bert_classifier_forward(params, input_id, mask):
    B, S = input_id.shape
    H = HIDDEN

    # Tiny int inputs reshaped so every BlockSpec's last-two dims equal the
    # full array dims (no tiling-constraint violations).
    ids3 = input_id.astype(jnp.int32).reshape(B, S, 1)      # [B, S, 1]
    mask3 = mask.astype(jnp.int32).reshape(B, 1, S)         # [B, 1, S]
    # Position + token-type(=0) embeddings folded into one resident table.
    pos_type = params["pos_emb"][:S] + params["type_emb"][0][None, :]   # [S, H]

    args = (
        ids3, mask3, params["word_emb"], pos_type,
        params["emb_ln_g"], params["emb_ln_b"],
        params["wqkv"], params["bqkv"], params["wo"], params["bo"],
        params["ln1_g"], params["ln1_b"], params["wi"], params["bi"],
        params["wf"], params["bf"], params["ln2_g"], params["ln2_b"],
        params["pool_w"], params["pool_b"], params["cls_w"], params["cls_b"],
    )

    def _const_index_map(ndim):
        def imap(b):                     # same block every grid step -> resident
            return (0,) * ndim
        return imap

    in_specs = [
        pl.BlockSpec((1, S, 1), lambda b: (b, 0, 0)),        # input ids
        pl.BlockSpec((1, 1, S), lambda b: (b, 0, 0)),        # attention mask
    ] + [pl.BlockSpec(a.shape, _const_index_map(a.ndim)) for a in args[2:]]

    out_specs = pl.BlockSpec((1, 1, CLS_PAD), lambda b: (b, 0, 0))

    kernel = functools.partial(bert_fused_kernel, seq=S)
    out_pad = pl.pallas_call(
        kernel,
        out_shape=jax.ShapeDtypeStruct((B, 1, CLS_PAD), jnp.float32),
        grid_spec=pltpu.PrefetchScalarGridSpec(
            num_scalar_prefetch=0,
            grid=(B,),                                       # one seq per grid pt
            in_specs=in_specs,
            out_specs=out_specs),
        compiler_params=pltpu.CompilerParams(
            dimension_semantics=("parallel",)),              # 2 TCs on v7x
        cost_estimate=_cost_estimate(B, S, args),
    )(*args)

    return out_pad[:, 0, :N_CLASSES]                         # [B, 4]


# ----------------------------- main -------------------------------------------
if __name__ == "__main__":
    key = jax.random.PRNGKey(0)
    pkey, dkey = jax.random.split(key)

    params = init_params(pkey)

    input_id = jax.random.randint(dkey, (BATCH, SEQ), 0, VOCAB, dtype=jnp.int32)
    mask = jnp.ones((BATCH, SEQ), dtype=jnp.int32)
    mask = mask.at[1, SEQ - 2:].set(0)   # some padding on the second example

    out = jax.jit(bert_classifier_forward)(params, input_id, mask)
    out = jax.block_until_ready(out)

    assert out.shape == (BATCH, N_CLASSES)
    # rows of a LogSoftmax exponentiate-sum to ~1
    assert jnp.allclose(jnp.sum(jnp.exp(out), axis=1), 1.0, atol=1e-4)
    print("KERNEL_OK")
</pallas_src>

<mosaic_0001>
module attributes {stable_mosaic.version = 11 : i64} {
  func.func @bert_fused_kernel(%arg0: i32, %arg1: memref<1x8x1xi32, #tpu.memory_space<vmem>>, %arg2: memref<1x1x8xi32, #tpu.memory_space<vmem>>, %arg3: memref<128x128xbf16, #tpu.memory_space<vmem>>, %arg4: memref<8x128xf32, #tpu.memory_space<vmem>>, %arg5: memref<1x128xf32, #tpu.memory_space<vmem>>, %arg6: memref<1x128xf32, #tpu.memory_space<vmem>>, %arg7: memref<2x128x768xbf16, #tpu.memory_space<vmem>>, %arg8: memref<2x1x768xf32, #tpu.memory_space<vmem>>, %arg9: memref<2x2x128x128xbf16, #tpu.memory_space<vmem>>, %arg10: memref<2x1x128xf32, #tpu.memory_space<vmem>>, %arg11: memref<2x1x128xf32, #tpu.memory_space<vmem>>, %arg12: memref<2x1x128xf32, #tpu.memory_space<vmem>>, %arg13: memref<2x128x256xbf16, #tpu.memory_space<vmem>>, %arg14: memref<2x1x256xf32, #tpu.memory_space<vmem>>, %arg15: memref<2x256x128xbf16, #tpu.memory_space<vmem>>, %arg16: memref<2x1x128xf32, #tpu.memory_space<vmem>>, %arg17: memref<2x1x128xf32, #tpu.memory_space<vmem>>, %arg18: memref<2x1x128xf32, #tpu.memory_space<vmem>>, %arg19: memref<128x128xbf16, #tpu.memory_space<vmem>>, %arg20: memref<1x128xf32, #tpu.memory_space<vmem>>, %arg21: memref<128x128xbf16, #tpu.memory_space<vmem>>, %arg22: memref<1x128xf32, #tpu.memory_space<vmem>>, %arg23: memref<1x1x128xf32, #tpu.memory_space<vmem>>) attributes {dimension_semantics = [#tpu.dimension_semantics<parallel>], iteration_bounds = array<i64: 2>, scalar_prefetch = 0 : i64, scratch_operands = 0 : i64, tpu.core_type = #tpu.core_type<tc>, window_params = [{transform_indices = @transform_0, window_bounds = array<i64: 1, 8, 1>}, {transform_indices = @transform_1, window_bounds = array<i64: 1, 1, 8>}, {pipeline_mode = #tpu.pipeline_mode<synchronous>, transform_indices = @transform_2, window_bounds = array<i64: 128, 128>}, {pipeline_mode = #tpu.pipeline_mode<synchronous>, transform_indices = @transform_3, window_bounds = array<i64: 8, 128>}, {pipeline_mode = #tpu.pipeline_mode<synchronous>, transform_indices = @transform_4, window_bounds = array<i64: 1, 128>}, {pipeline_mode = #tpu.pipeline_mode<synchronous>, transform_indices = @transform_5, window_bounds = array<i64: 1, 128>}, {pipeline_mode = #tpu.pipeline_mode<synchronous>, transform_indices = @transform_6, window_bounds = array<i64: 2, 128, 768>}, {pipeline_mode = #tpu.pipeline_mode<synchronous>, transform_indices = @transform_7, window_bounds = array<i64: 2, 1, 768>}, {pipeline_mode = #tpu.pipeline_mode<synchronous>, transform_indices = @transform_8, window_bounds = array<i64: 2, 2, 128, 128>}, {pipeline_mode = #tpu.pipeline_mode<synchronous>, transform_indices = @transform_9, window_bounds = array<i64: 2, 1, 128>}, {pipeline_mode = #tpu.pipeline_mode<synchronous>, transform_indices = @transform_10, window_bounds = array<i64: 2, 1, 128>}, {pipeline_mode = #tpu.pipeline_mode<synchronous>, transform_indices = @transform_11, window_bounds = array<i64: 2, 1, 128>}, {pipeline_mode = #tpu.pipeline_mode<synchronous>, transform_indices = @transform_12, window_bounds = array<i64: 2, 128, 256>}, {pipeline_mode = #tpu.pipeline_mode<synchronous>, transform_indices = @transform_13, window_bounds = array<i64: 2, 1, 256>}, {pipeline_mode = #tpu.pipeline_mode<synchronous>, transform_indices = @transform_14, window_bounds = array<i64: 2, 256, 128>}, {pipeline_mode = #tpu.pipeline_mode<synchronous>, transform_indices = @transform_15, window_bounds = array<i64: 2, 1, 128>}, {pipeline_mode = #tpu.pipeline_mode<synchronous>, transform_indices = @transform_16, window_bounds = array<i64: 2, 1, 128>}, {pipeline_mode = #tpu.pipeline_mode<synchronous>, transform_indices = @transform_17, window_bounds = array<i64: 2, 1, 128>}, {pipeline_mode = #tpu.pipeline_mode<synchronous>, transform_indices = @transform_18, window_bounds = array<i64: 128, 128>}, {pipeline_mode = #tpu.pipeline_mode<synchronous>, transform_indices = @transform_19, window_bounds = array<i64: 1, 128>}, {pipeline_mode = #tpu.pipeline_mode<synchronous>, transform_indices = @transform_20, window_bounds = array<i64: 128, 128>}, {pipeline_mode = #tpu.pipeline_mode<synchronous>, transform_indices = @transform_21, window_bounds = array<i64: 1, 128>}, {transform_indices = @transform_22, window_bounds = array<i64: 1, 1, 128>}]} {
    %c0 = arith.constant 0 : index
    %c0_0 = arith.constant 0 : index
    %c0_1 = arith.constant 0 : index
    %0 = vector.load %arg1[%c0, %c0_0, %c0_1] : memref<1x8x1xi32, #tpu.memory_space<vmem>>, vector<1x8x1xi32>
    %1 = vector.shape_cast %0 : vector<1x8x1xi32> to vector<8x1xi32>
    %2 = tpu.iota {dimensions = array<i32: 1>} : vector<8x128xi32>
    %3 = vector.broadcast %1 : vector<8x1xi32> to vector<8x128xi32>
    %4 = arith.cmpi eq, %3, %2 : vector<8x128xi32>
    %5 = arith.extui %4 : vector<8x128xi1> to vector<8x128xi32>
    %6 = arith.sitofp %5 : vector<8x128xi32> to vector<8x128xf32>
    %7 = arith.truncf %6 : vector<8x128xf32> to vector<8x128xbf16>
    %c0_2 = arith.constant 0 : index
    %c0_3 = arith.constant 0 : index
    %8 = vector.load %arg3[%c0_2, %c0_3] : memref<128x128xbf16, #tpu.memory_space<vmem>>, vector<128x128xbf16>
    %cst = arith.constant dense<0.000000e+00> : vector<8x128xf32>
    %9 = tpu.matmul %7, %8, %cst {dimension_numbers = #tpu.dot_dimension_numbers<[1], [0], [0], [1], [0, 0, 1, 1], [], []>} : vector<8x128xbf16>, vector<128x128xbf16>, vector<8x128xf32> -> vector<8x128xf32>
    %c0_4 = arith.constant 0 : index
    %c0_5 = arith.constant 0 : index
    %10 = vector.load %arg4[%c0_4, %c0_5] : memref<8x128xf32, #tpu.memory_space<vmem>>, vector<8x128xf32>
    %11 = arith.addf %9, %10 : vector<8x128xf32>
    %c0_6 = arith.constant 0 : index
    %c0_7 = arith.constant 0 : index
    %12 = vector.load %arg5[%c0_6, %c0_7] : memref<1x128xf32, #tpu.memory_space<vmem>>, vector<1x128xf32>
    %c0_8 = arith.constant 0 : index
    %c0_9 = arith.constant 0 : index
    %13 = vector.load %arg6[%c0_8, %c0_9] : memref<1x128xf32, #tpu.memory_space<vmem>>, vector<1x128xf32>
    %cst_10 = arith.constant dense<0.000000e+00> : vector<8xf32>
    %14 = vector.multi_reduction <add>, %11, %cst_10 [1] : vector<8x128xf32> to vector<8xf32>
    %15 = vector.shape_cast %14 : vector<8xf32> to vector<8x1xf32>
    %cst_11 = arith.constant 1.280000e+02 : f32
    %16 = vector.broadcast %cst_11 : f32 to vector<8x1xf32>
    %17 = arith.divf %15, %16 : vector<8x1xf32>
    %18 = vector.broadcast %17 : vector<8x1xf32> to vector<8x128xf32>
    %19 = arith.subf %11, %18 : vector<8x128xf32>
    %20 = arith.mulf %19, %19 : vector<8x128xf32>
    %cst_12 = arith.constant dense<0.000000e+00> : vector<8xf32>
    %21 = vector.multi_reduction <add>, %20, %cst_12 [1] : vector<8x128xf32> to vector<8xf32>
    %22 = vector.shape_cast %21 : vector<8xf32> to vector<8x1xf32>
    %cst_13 = arith.constant 1.280000e+02 : f32
    %23 = vector.broadcast %cst_13 : f32 to vector<8x1xf32>
    %24 = arith.divf %22, %23 : vector<8x1xf32>
    %cst_14 = arith.constant 9.99999996E-13 : f32
    %25 = vector.broadcast %cst_14 : f32 to vector<8x1xf32>
    %26 = arith.addf %24, %25 : vector<8x1xf32>
    %27 = math.rsqrt %26 : vector<8x1xf32>
    %28 = vector.broadcast %27 : vector<8x1xf32> to vector<8x128xf32>
    %29 = arith.mulf %19, %28 : vector<8x128xf32>
    %30 = vector.broadcast %12 : vector<1x128xf32> to vector<8x128xf32>
    %31 = arith.mulf %29, %30 : vector<8x128xf32>
    %32 = vector.broadcast %13 : vector<1x128xf32> to vector<8x128xf32>
    %33 = arith.addf %31, %32 : vector<8x128xf32>
    %c0_15 = arith.constant 0 : index
    %c0_16 = arith.constant 0 : index
    %c0_17 = arith.constant 0 : index
    %34 = vector.load %arg2[%c0_15, %c0_16, %c0_17] : memref<1x1x8xi32, #tpu.memory_space<vmem>>, vector<1x1x8xi32>
    %35 = vector.shape_cast %34 : vector<1x1x8xi32> to vector<1x8xi32>
    %36 = arith.sitofp %35 : vector<1x8xi32> to vector<1x8xf32>
    %cst_18 = arith.constant 1.000000e+00 : f32
    %37 = vector.broadcast %cst_18 : f32 to vector<1x8xf32>
    %38 = arith.subf %37, %36 : vector<1x8xf32>
    %cst_19 = arith.constant -1.000000e+04 : f32
    %39 = vector.broadcast %cst_19 : f32 to vector<1x8xf32>
    %40 = arith.mulf %38, %39 : vector<1x8xf32>
    %41 = arith.truncf %33 : vector<8x128xf32> to vector<8x128xbf16>
    %c0_20 = arith.constant 0 : index
    %c0_21 = arith.constant 0 : index
    %c0_22 = arith.constant 0 : index
    %42 = vector.load %arg7[%c0_20, %c0_21, %c0_22] : memref<2x128x768xbf16, #tpu.memory_space<vmem>>, vector<1x128x768xbf16>
    %43 = vector.shape_cast %42 : vector<1x128x768xbf16> to vector<128x768xbf16>
    %cst_23 = arith.constant dense<0.000000e+00> : vector<8x768xf32>
    %44 = tpu.matmul %41, %43, %cst_23 {dimension_numbers = #tpu.dot_dimension_numbers<[1], [0], [0], [1], [0, 0, 1, 1], [], []>} : vector<8x128xbf16>, vector<128x768xbf16>, vector<8x768xf32> -> vector<8x768xf32>
    %c0_24 = arith.constant 0 : index
    %c0_25 = arith.constant 0 : index
    %c0_26 = arith.constant 0 : index
    %45 = vector.load %arg8[%c0_24, %c0_25, %c0_26] : memref<2x1x768xf32, #tpu.memory_space<vmem>>, vector<1x1x768xf32>
    %46 = vector.shape_cast %45 : vector<1x1x768xf32> to vector<1x768xf32>
    %47 = vector.broadcast %46 : vector<1x768xf32> to vector<8x768xf32>
    %48 = arith.addf %44, %47 : vector<8x768xf32>
    %cst_27 = arith.constant 0.000000e+00 : f32
    %49 = vector.broadcast %cst_27 : f32 to vector<8x128xf32>
    %50 = vector.extract_strided_slice %48 {offsets = [0, 0], sizes = [8, 128], strides = [1, 1]} : vector<8x768xf32> to vector<8x128xf32>
    %51 = vector.extract_strided_slice %48 {offsets = [0, 256], sizes = [8, 128], strides = [1, 1]} : vector<8x768xf32> to vector<8x128xf32>
    %52 = vector.extract_strided_slice %48 {offsets = [0, 512], sizes = [8, 128], strides = [1, 1]} : vector<8x768xf32> to vector<8x128xf32>
    %53 = arith.truncf %50 : vector<8x128xf32> to vector<8x128xbf16>
    %54 = arith.truncf %51 : vector<8x128xf32> to vector<8x128xbf16>
    %cst_28 = arith.constant dense<0.000000e+00> : vector<8x8xf32>
    %55 = tpu.matmul %53, %54, %cst_28 {dimension_numbers = #tpu.dot_dimension_numbers<[1], [1], [0], [0], [0, 0, 1, 0], [], []>} : vector<8x128xbf16>, vector<8x128xbf16>, vector<8x8xf32> -> vector<8x8xf32>
    %cst_29 = arith.constant 1.250000e-01 : f32
    %56 = vector.broadcast %cst_29 : f32 to vector<8x8xf32>
    %57 = arith.mulf %55, %56 : vector<8x8xf32>
    %58 = vector.broadcast %40 : vector<1x8xf32> to vector<8x8xf32>
    %59 = arith.addf %57, %58 : vector<8x8xf32>
    %cst_30 = arith.constant dense<0xFF800000> : vector<8xf32>
    %60 = vector.multi_reduction <maximumf>, %59, %cst_30 [1] : vector<8x8xf32> to vector<8xf32>
    %61 = vector.shape_cast %60 : vector<8xf32> to vector<8x1xf32>
    %62 = vector.broadcast %61 : vector<8x1xf32> to vector<8x8xf32>
    %63 = arith.subf %59, %62 : vector<8x8xf32>
    %64 = math.exp %63 : vector<8x8xf32>
    %cst_31 = arith.constant dense<0.000000e+00> : vector<8xf32>
    %65 = vector.multi_reduction <add>, %64, %cst_31 [1] : vector<8x8xf32> to vector<8xf32>
    %66 = vector.shape_cast %65 : vector<8xf32> to vector<8x1xf32>
    %67 = tpu.reciprocal %66 {approx = true} : vector<8x1xf32> -> vector<8x1xf32>
    %68 = vector.broadcast %67 : vector<8x1xf32> to vector<8x8xf32>
    %69 = arith.mulf %64, %68 : vector<8x8xf32>
    %70 = arith.truncf %69 : vector<8x8xf32> to vector<8x8xbf16>
    %71 = arith.truncf %52 : vector<8x128xf32> to vector<8x128xbf16>
    %cst_32 = arith.constant dense<0.000000e+00> : vector<8x128xf32>
    %72 = tpu.matmul %70, %71, %cst_32 {dimension_numbers = #tpu.dot_dimension_numbers<[1], [0], [0], [1], [0, 0, 1, 1], [], []>} : vector<8x8xbf16>, vector<8x128xbf16>, vector<8x128xf32> -> vector<8x128xf32>
    %73 = arith.truncf %72 : vector<8x128xf32> to vector<8x128xbf16>
    %c0_33 = arith.constant 0 : index
    %c0_34 = arith.constant 0 : index
    %c0_35 = arith.constant 0 : index
    %c0_36 = arith.constant 0 : index
    %74 = vector.load %arg9[%c0_33, %c0_34, %c0_35, %c0_36] : memref<2x2x128x128xbf16, #tpu.memory_space<vmem>>, vector<1x1x128x128xbf16>
    %75 = vector.shape_cast %74 : vector<1x1x128x128xbf16> to vector<128x128xbf16>
    %cst_37 = arith.constant dense<0.000000e+00> : vector<8x128xf32>
    %76 = tpu.matmul %73, %75, %cst_37 {dimension_numbers = #tpu.dot_dimension_numbers<[1], [0], [0], [1], [0, 0, 1, 1], [], []>} : vector<8x128xbf16>, vector<128x128xbf16>, vector<8x128xf32> -> vector<8x128xf32>
    %77 = arith.addf %49, %76 : vector<8x128xf32>
    %78 = vector.extract_strided_slice %48 {offsets = [0, 128], sizes = [8, 128], strides = [1, 1]} : vector<8x768xf32> to vector<8x128xf32>
    %79 = vector.extract_strided_slice %48 {offsets = [0, 384], sizes = [8, 128], strides = [1, 1]} : vector<8x768xf32> to vector<8x128xf32>
    %80 = vector.extract_strided_slice %48 {offsets = [0, 640], sizes = [8, 128], strides = [1, 1]} : vector<8x768xf32> to vector<8x128xf32>
    %81 = arith.truncf %78 : vector<8x128xf32> to vector<8x128xbf16>
    %82 = arith.truncf %79 : vector<8x128xf32> to vector<8x128xbf16>
    %cst_38 = arith.constant dense<0.000000e+00> : vector<8x8xf32>
    %83 = tpu.matmul %81, %82, %cst_38 {dimension_numbers = #tpu.dot_dimension_numbers<[1], [1], [0], [0], [0, 0, 1, 0], [], []>} : vector<8x128xbf16>, vector<8x128xbf16>, vector<8x8xf32> -> vector<8x8xf32>
    %cst_39 = arith.constant 1.250000e-01 : f32
    %84 = vector.broadcast %cst_39 : f32 to vector<8x8xf32>
    %85 = arith.mulf %83, %84 : vector<8x8xf32>
    %86 = vector.broadcast %40 : vector<1x8xf32> to vector<8x8xf32>
    %87 = arith.addf %85, %86 : vector<8x8xf32>
    %cst_40 = arith.constant dense<0xFF800000> : vector<8xf32>
    %88 = vector.multi_reduction <maximumf>, %87, %cst_40 [1] : vector<8x8xf32> to vector<8xf32>
    %89 = vector.shape_cast %88 : vector<8xf32> to vector<8x1xf32>
    %90 = vector.broadcast %89 : vector<8x1xf32> to vector<8x8xf32>
    %91 = arith.subf %87, %90 : vector<8x8xf32>
    %92 = math.exp %91 : vector<8x8xf32>
    %cst_41 = arith.constant dense<0.000000e+00> : vector<8xf32>
    %93 = vector.multi_reduction <add>, %92, %cst_41 [1] : vector<8x8xf32> to vector<8xf32>
    %94 = vector.shape_cast %93 : vector<8xf32> to vector<8x1xf32>
    %95 = tpu.reciprocal %94 {approx = true} : vector<8x1xf32> -> vector<8x1xf32>
    %96 = vector.broadcast %95 : vector<8x1xf32> to vector<8x8xf32>
    %97 = arith.mulf %92, %96 : vector<8x8xf32>
    %98 = arith.truncf %97 : vector<8x8xf32> to vector<8x8xbf16>
    %99 = arith.truncf %80 : vector<8x128xf32> to vector<8x128xbf16>
    %cst_42 = arith.constant dense<0.000000e+00> : vector<8x128xf32>
    %100 = tpu.matmul %98, %99, %cst_42 {dimension_numbers = #tpu.dot_dimension_numbers<[1], [0], [0], [1], [0, 0, 1, 1], [], []>} : vector<8x8xbf16>, vector<8x128xbf16>, vector<8x128xf32> -> vector<8x128xf32>
    %101 = arith.truncf %100 : vector<8x128xf32> to vector<8x128xbf16>
    %c0_43 = arith.constant 0 : index
    %c1 = arith.constant 1 : index
    %c0_44 = arith.constant 0 : index
    %c0_45 = arith.constant 0 : index
    %102 = vector.load %arg9[%c0_43, %c1, %c0_44, %c0_45] : memref<2x2x128x128xbf16, #tpu.memory_space<vmem>>, vector<1x1x128x128xbf16>
    %103 = vector.shape_cast %102 : vector<1x1x128x128xbf16> to vector<128x128xbf16>
    %cst_46 = arith.constant dense<0.000000e+00> : vector<8x128xf32>
    %104 = tpu.matmul %101, %103, %cst_46 {dimension_numbers = #tpu.dot_dimension_numbers<[1], [0], [0], [1], [0, 0, 1, 1], [], []>} : vector<8x128xbf16>, vector<128x128xbf16>, vector<8x128xf32> -> vector<8x128xf32>
    %105 = arith.addf %77, %104 : vector<8x128xf32>
    %c0_47 = arith.constant 0 : index
    %c0_48 = arith.constant 0 : index
    %c0_49 = arith.constant 0 : index
    %106 = vector.load %arg10[%c0_47, %c0_48, %c0_49] : memref<2x1x128xf32, #tpu.memory_space<vmem>>, vector<1x1x128xf32>
    %107 = vector.shape_cast %106 : vector<1x1x128xf32> to vector<1x128xf32>
    %108 = vector.broadcast %107 : vector<1x128xf32> to vector<8x128xf32>
    %109 = arith.addf %105, %108 : vector<8x128xf32>
    %110 = arith.addf %109, %33 : vector<8x128xf32>
    %c0_50 = arith.constant 0 : index
    %c0_51 = arith.constant 0 : index
    %c0_52 = arith.constant 0 : index
    %111 = vector.load %arg11[%c0_50, %c0_51, %c0_52] : memref<2x1x128xf32, #tpu.memory_space<vmem>>, vector<1x1x128xf32>
    %112 = vector.shape_cast %111 : vector<1x1x128xf32> to vector<1x128xf32>
    %c0_53 = arith.constant 0 : index
    %c0_54 = arith.constant 0 : index
    %c0_55 = arith.constant 0 : index
    %113 = vector.load %arg12[%c0_53, %c0_54, %c0_55] : memref<2x1x128xf32, #tpu.memory_space<vmem>>, vector<1x1x128xf32>
    %114 = vector.shape_cast %113 : vector<1x1x128xf32> to vector<1x128xf32>
    %cst_56 = arith.constant dense<0.000000e+00> : vector<8xf32>
    %115 = vector.multi_reduction <add>, %110, %cst_56 [1] : vector<8x128xf32> to vector<8xf32>
    %116 = vector.shape_cast %115 : vector<8xf32> to vector<8x1xf32>
    %cst_57 = arith.constant 1.280000e+02 : f32
    %117 = vector.broadcast %cst_57 : f32 to vector<8x1xf32>
    %118 = arith.divf %116, %117 : vector<8x1xf32>
    %119 = vector.broadcast %118 : vector<8x1xf32> to vector<8x128xf32>
    %120 = arith.subf %110, %119 : vector<8x128xf32>
    %121 = arith.mulf %120, %120 : vector<8x128xf32>
    %cst_58 = arith.constant dense<0.000000e+00> : vector<8xf32>
    %122 = vector.multi_reduction <add>, %121, %cst_58 [1] : vector<8x128xf32> to vector<8xf32>
    %123 = vector.shape_cast %122 : vector<8xf32> to vector<8x1xf32>
    %cst_59 = arith.constant 1.280000e+02 : f32
    %124 = vector.broadcast %cst_59 : f32 to vector<8x1xf32>
    %125 = arith.divf %123, %124 : vector<8x1xf32>
    %cst_60 = arith.constant 9.99999996E-13 : f32
    %126 = vector.broadcast %cst_60 : f32 to vector<8x1xf32>
    %127 = arith.addf %125, %126 : vector<8x1xf32>
    %128 = math.rsqrt %127 : vector<8x1xf32>
    %129 = vector.broadcast %128 : vector<8x1xf32> to vector<8x128xf32>
    %130 = arith.mulf %120, %129 : vector<8x128xf32>
    %131 = vector.broadcast %112 : vector<1x128xf32> to vector<8x128xf32>
    %132 = arith.mulf %130, %131 : vector<8x128xf32>
    %133 = vector.broadcast %114 : vector<1x128xf32> to vector<8x128xf32>
    %134 = arith.addf %132, %133 : vector<8x128xf32>
    %135 = arith.truncf %134 : vector<8x128xf32> to vector<8x128xbf16>
    %c0_61 = arith.constant 0 : index
    %c0_62 = arith.constant 0 : index
    %c0_63 = arith.constant 0 : index
    %136 = vector.load %arg13[%c0_61, %c0_62, %c0_63] : memref<2x128x256xbf16, #tpu.memory_space<vmem>>, vector<1x128x256xbf16>
    %137 = vector.shape_cast %136 : vector<1x128x256xbf16> to vector<128x256xbf16>
    %cst_64 = arith.constant dense<0.000000e+00> : vector<8x256xf32>
    %138 = tpu.matmul %135, %137, %cst_64 {dimension_numbers = #tpu.dot_dimension_numbers<[1], [0], [0], [1], [0, 0, 1, 1], [], []>} : vector<8x128xbf16>, vector<128x256xbf16>, vector<8x256xf32> -> vector<8x256xf32>
    %c0_65 = arith.constant 0 : index
    %c0_66 = arith.constant 0 : index
    %c0_67 = arith.constant 0 : index
    %139 = vector.load %arg14[%c0_65, %c0_66, %c0_67] : memref<2x1x256xf32, #tpu.memory_space<vmem>>, vector<1x1x256xf32>
    %140 = vector.shape_cast %139 : vector<1x1x256xf32> to vector<1x256xf32>
    %141 = vector.broadcast %140 : vector<1x256xf32> to vector<8x256xf32>
    %142 = arith.addf %138, %141 : vector<8x256xf32>
    %cst_68 = arith.constant 5.000000e-01 : f32
    %143 = vector.broadcast %cst_68 : f32 to vector<8x256xf32>
    %144 = arith.mulf %143, %142 : vector<8x256xf32>
    %cst_69 = arith.constant 4.471500e-02 : f32
    %145 = vector.broadcast %cst_69 : f32 to vector<8x256xf32>
    %146 = arith.mulf %145, %142 : vector<8x256xf32>
    %147 = arith.mulf %146, %142 : vector<8x256xf32>
    %148 = arith.mulf %147, %142 : vector<8x256xf32>
    %149 = arith.addf %142, %148 : vector<8x256xf32>
    %cst_70 = arith.constant 0.797884583 : f32
    %150 = vector.broadcast %cst_70 : f32 to vector<8x256xf32>
    %151 = arith.mulf %150, %149 : vector<8x256xf32>
    %152 = math.tanh %151 : vector<8x256xf32>
    %cst_71 = arith.constant 1.000000e+00 : f32
    %153 = vector.broadcast %cst_71 : f32 to vector<8x256xf32>
    %154 = arith.addf %153, %152 : vector<8x256xf32>
    %155 = arith.mulf %144, %154 : vector<8x256xf32>
    %156 = arith.truncf %155 : vector<8x256xf32> to vector<8x256xbf16>
    %c0_72 = arith.constant 0 : index
    %c0_73 = arith.constant 0 : index
    %c0_74 = arith.constant 0 : index
    %157 = vector.load %arg15[%c0_72, %c0_73, %c0_74] : memref<2x256x128xbf16, #tpu.memory_space<vmem>>, vector<1x256x128xbf16>
    %158 = vector.shape_cast %157 : vector<1x256x128xbf16> to vector<256x128xbf16>
    %cst_75 = arith.constant dense<0.000000e+00> : vector<8x128xf32>
    %159 = tpu.matmul %156, %158, %cst_75 {dimension_numbers = #tpu.dot_dimension_numbers<[1], [0], [0], [1], [0, 0, 1, 1], [], []>} : vector<8x256xbf16>, vector<256x128xbf16>, vector<8x128xf32> -> vector<8x128xf32>
    %c0_76 = arith.constant 0 : index
    %c0_77 = arith.constant 0 : index
    %c0_78 = arith.constant 0 : index
    %160 = vector.load %arg16[%c0_76, %c0_77, %c0_78] : memref<2x1x128xf32, #tpu.memory_space<vmem>>, vector<1x1x128xf32>
    %161 = vector.shape_cast %160 : vector<1x1x128xf32> to vector<1x128xf32>
    %162 = vector.broadcast %161 : vector<1x128xf32> to vector<8x128xf32>
    %163 = arith.addf %159, %162 : vector<8x128xf32>
    %164 = arith.addf %163, %134 : vector<8x128xf32>
    %c0_79 = arith.constant 0 : index
    %c0_80 = arith.constant 0 : index
    %c0_81 = arith.constant 0 : index
    %165 = vector.load %arg17[%c0_79, %c0_80, %c0_81] : memref<2x1x128xf32, #tpu.memory_space<vmem>>, vector<1x1x128xf32>
    %166 = vector.shape_cast %165 : vector<1x1x128xf32> to vector<1x128xf32>
    %c0_82 = arith.constant 0 : index
    %c0_83 = arith.constant 0 : index
    %c0_84 = arith.constant 0 : index
    %167 = vector.load %arg18[%c0_82, %c0_83, %c0_84] : memref<2x1x128xf32, #tpu.memory_space<vmem>>, vector<1x1x128xf32>
    %168 = vector.shape_cast %167 : vector<1x1x128xf32> to vector<1x128xf32>
    %cst_85 = arith.constant dense<0.000000e+00> : vector<8xf32>
    %169 = vector.multi_reduction <add>, %164, %cst_85 [1] : vector<8x128xf32> to vector<8xf32>
    %170 = vector.shape_cast %169 : vector<8xf32> to vector<8x1xf32>
    %cst_86 = arith.constant 1.280000e+02 : f32
    %171 = vector.broadcast %cst_86 : f32 to vector<8x1xf32>
    %172 = arith.divf %170, %171 : vector<8x1xf32>
    %173 = vector.broadcast %172 : vector<8x1xf32> to vector<8x128xf32>
    %174 = arith.subf %164, %173 : vector<8x128xf32>
    %175 = arith.mulf %174, %174 : vector<8x128xf32>
    %cst_87 = arith.constant dense<0.000000e+00> : vector<8xf32>
    %176 = vector.multi_reduction <add>, %175, %cst_87 [1] : vector<8x128xf32> to vector<8xf32>
    %177 = vector.shape_cast %176 : vector<8xf32> to vector<8x1xf32>
    %cst_88 = arith.constant 1.280000e+02 : f32
    %178 = vector.broadcast %cst_88 : f32 to vector<8x1xf32>
    %179 = arith.divf %177, %178 : vector<8x1xf32>
    %cst_89 = arith.constant 9.99999996E-13 : f32
    %180 = vector.broadcast %cst_89 : f32 to vector<8x1xf32>
    %181 = arith.addf %179, %180 : vector<8x1xf32>
    %182 = math.rsqrt %181 : vector<8x1xf32>
    %183 = vector.broadcast %182 : vector<8x1xf32> to vector<8x128xf32>
    %184 = arith.mulf %174, %183 : vector<8x128xf32>
    %185 = vector.broadcast %166 : vector<1x128xf32> to vector<8x128xf32>
    %186 = arith.mulf %184, %185 : vector<8x128xf32>
    %187 = vector.broadcast %168 : vector<1x128xf32> to vector<8x128xf32>
    %188 = arith.addf %186, %187 : vector<8x128xf32>
    %189 = arith.truncf %188 : vector<8x128xf32> to vector<8x128xbf16>
    %c1_90 = arith.constant 1 : index
    %c0_91 = arith.constant 0 : index
    %c0_92 = arith.constant 0 : index
    %190 = vector.load %arg7[%c1_90, %c0_91, %c0_92] : memref<2x128x768xbf16, #tpu.memory_space<vmem>>, vector<1x128x768xbf16>
    %191 = vector.shape_cast %190 : vector<1x128x768xbf16> to vector<128x768xbf16>
    %cst_93 = arith.constant dense<0.000000e+00> : vector<8x768xf32>
    %192 = tpu.matmul %189, %191, %cst_93 {dimension_numbers = #tpu.dot_dimension_numbers<[1], [0], [0], [1], [0, 0, 1, 1], [], []>} : vector<8x128xbf16>, vector<128x768xbf16>, vector<8x768xf32> -> vector<8x768xf32>
    %c1_94 = arith.constant 1 : index
    %c0_95 = arith.constant 0 : index
    %c0_96 = arith.constant 0 : index
    %193 = vector.load %arg8[%c1_94, %c0_95, %c0_96] : memref<2x1x768xf32, #tpu.memory_space<vmem>>, vector<1x1x768xf32>
    %194 = vector.shape_cast %193 : vector<1x1x768xf32> to vector<1x768xf32>
    %195 = vector.broadcast %194 : vector<1x768xf32> to vector<8x768xf32>
    %196 = arith.addf %192, %195 : vector<8x768xf32>
    %cst_97 = arith.constant 0.000000e+00 : f32
    %197 = vector.broadcast %cst_97 : f32 to vector<8x128xf32>
    %198 = vector.extract_strided_slice %196 {offsets = [0, 0], sizes = [8, 128], strides = [1, 1]} : vector<8x768xf32> to vector<8x128xf32>
    %199 = vector.extract_strided_slice %196 {offsets = [0, 256], sizes = [8, 128], strides = [1, 1]} : vector<8x768xf32> to vector<8x128xf32>
    %200 = vector.extract_strided_slice %196 {offsets = [0, 512], sizes = [8, 128], strides = [1, 1]} : vector<8x768xf32> to vector<8x128xf32>
    %201 = arith.truncf %198 : vector<8x128xf32> to vector<8x128xbf16>
    %202 = arith.truncf %199 : vector<8x128xf32> to vector<8x128xbf16>
    %cst_98 = arith.constant dense<0.000000e+00> : vector<8x8xf32>
    %203 = tpu.matmul %201, %202, %cst_98 {dimension_numbers = #tpu.dot_dimension_numbers<[1], [1], [0], [0], [0, 0, 1, 0], [], []>} : vector<8x128xbf16>, vector<8x128xbf16>, vector<8x8xf32> -> vector<8x8xf32>
    %cst_99 = arith.constant 1.250000e-01 : f32
    %204 = vector.broadcast %cst_99 : f32 to vector<8x8xf32>
    %205 = arith.mulf %203, %204 : vector<8x8xf32>
    %206 = vector.broadcast %40 : vector<1x8xf32> to vector<8x8xf32>
    %207 = arith.addf %205, %206 : vector<8x8xf32>
    %cst_100 = arith.constant dense<0xFF800000> : vector<8xf32>
    %208 = vector.multi_reduction <maximumf>, %207, %cst_100 [1] : vector<8x8xf32> to vector<8xf32>
    %209 = vector.shape_cast %208 : vector<8xf32> to vector<8x1xf32>
    %210 = vector.broadcast %209 : vector<8x1xf32> to vector<8x8xf32>
    %211 = arith.subf %207, %210 : vector<8x8xf32>
    %212 = math.exp %211 : vector<8x8xf32>
    %cst_101 = arith.constant dense<0.000000e+00> : vector<8xf32>
    %213 = vector.multi_reduction <add>, %212, %cst_101 [1] : vector<8x8xf32> to vector<8xf32>
    %214 = vector.shape_cast %213 : vector<8xf32> to vector<8x1xf32>
    %215 = tpu.reciprocal %214 {approx = true} : vector<8x1xf32> -> vector<8x1xf32>
    %216 = vector.broadcast %215 : vector<8x1xf32> to vector<8x8xf32>
    %217 = arith.mulf %212, %216 : vector<8x8xf32>
    %218 = arith.truncf %217 : vector<8x8xf32> to vector<8x8xbf16>
    %219 = arith.truncf %200 : vector<8x128xf32> to vector<8x128xbf16>
    %cst_102 = arith.constant dense<0.000000e+00> : vector<8x128xf32>
    %220 = tpu.matmul %218, %219, %cst_102 {dimension_numbers = #tpu.dot_dimension_numbers<[1], [0], [0], [1], [0, 0, 1, 1], [], []>} : vector<8x8xbf16>, vector<8x128xbf16>, vector<8x128xf32> -> vector<8x128xf32>
    %221 = arith.truncf %220 : vector<8x128xf32> to vector<8x128xbf16>
    %c1_103 = arith.constant 1 : index
    %c0_104 = arith.constant 0 : index
    %c0_105 = arith.constant 0 : index
    %c0_106 = arith.constant 0 : index
    %222 = vector.load %arg9[%c1_103, %c0_104, %c0_105, %c0_106] : memref<2x2x128x128xbf16, #tpu.memory_space<vmem>>, vector<1x1x128x128xbf16>
    %223 = vector.shape_cast %222 : vector<1x1x128x128xbf16> to vector<128x128xbf16>
    %cst_107 = arith.constant dense<0.000000e+00> : vector<8x128xf32>
    %224 = tpu.matmul %221, %223, %cst_107 {dimension_numbers = #tpu.dot_dimension_numbers<[1], [0], [0], [1], [0, 0, 1, 1], [], []>} : vector<8x128xbf16>, vector<128x128xbf16>, vector<8x128xf32> -> vector<8x128xf32>
    %225 = arith.addf %197, %224 : vector<8x128xf32>
    %226 = vector.extract_strided_slice %196 {offsets = [0, 128], sizes = [8, 128], strides = [1, 1]} : vector<8x768xf32> to vector<8x128xf32>
    %227 = vector.extract_strided_slice %196 {offsets = [0, 384], sizes = [8, 128], strides = [1, 1]} : vector<8x768xf32> to vector<8x128xf32>
    %228 = vector.extract_strided_slice %196 {offsets = [0, 640], sizes = [8, 128], strides = [1, 1]} : vector<8x768xf32> to vector<8x128xf32>
    %229 = arith.truncf %226 : vector<8x128xf32> to vector<8x128xbf16>
    %230 = arith.truncf %227 : vector<8x128xf32> to vector<8x128xbf16>
    %cst_108 = arith.constant dense<0.000000e+00> : vector<8x8xf32>
    %231 = tpu.matmul %229, %230, %cst_108 {dimension_numbers = #tpu.dot_dimension_numbers<[1], [1], [0], [0], [0, 0, 1, 0], [], []>} : vector<8x128xbf16>, vector<8x128xbf16>, vector<8x8xf32> -> vector<8x8xf32>
    %cst_109 = arith.constant 1.250000e-01 : f32
    %232 = vector.broadcast %cst_109 : f32 to vector<8x8xf32>
    %233 = arith.mulf %231, %232 : vector<8x8xf32>
    %234 = vector.broadcast %40 : vector<1x8xf32> to vector<8x8xf32>
    %235 = arith.addf %233, %234 : vector<8x8xf32>
    %cst_110 = arith.constant dense<0xFF800000> : vector<8xf32>
    %236 = vector.multi_reduction <maximumf>, %235, %cst_110 [1] : vector<8x8xf32> to vector<8xf32>
    %237 = vector.shape_cast %236 : vector<8xf32> to vector<8x1xf32>
    %238 = vector.broadcast %237 : vector<8x1xf32> to vector<8x8xf32>
    %239 = arith.subf %235, %238 : vector<8x8xf32>
    %240 = math.exp %239 : vector<8x8xf32>
    %cst_111 = arith.constant dense<0.000000e+00> : vector<8xf32>
    %241 = vector.multi_reduction <add>, %240, %cst_111 [1] : vector<8x8xf32> to vector<8xf32>
    %242 = vector.shape_cast %241 : vector<8xf32> to vector<8x1xf32>
    %243 = tpu.reciprocal %242 {approx = true} : vector<8x1xf32> -> vector<8x1xf32>
    %244 = vector.broadcast %243 : vector<8x1xf32> to vector<8x8xf32>
    %245 = arith.mulf %240, %244 : vector<8x8xf32>
    %246 = arith.truncf %245 : vector<8x8xf32> to vector<8x8xbf16>
    %247 = arith.truncf %228 : vector<8x128xf32> to vector<8x128xbf16>
    %cst_112 = arith.constant dense<0.000000e+00> : vector<8x128xf32>
    %248 = tpu.matmul %246, %247, %cst_112 {dimension_numbers = #tpu.dot_dimension_numbers<[1], [0], [0], [1], [0, 0, 1, 1], [], []>} : vector<8x8xbf16>, vector<8x128xbf16>, vector<8x128xf32> -> vector<8x128xf32>
    %249 = arith.truncf %248 : vector<8x128xf32> to vector<8x128xbf16>
    %c1_113 = arith.constant 1 : index
    %c1_114 = arith.constant 1 : index
    %c0_115 = arith.constant 0 : index
    %c0_116 = arith.constant 0 : index
    %250 = vector.load %arg9[%c1_113, %c1_114, %c0_115, %c0_116] : memref<2x2x128x128xbf16, #tpu.memory_space<vmem>>, vector<1x1x128x128xbf16>
    %251 = vector.shape_cast %250 : vector<1x1x128x128xbf16> to vector<128x128xbf16>
    %cst_117 = arith.constant dense<0.000000e+00> : vector<8x128xf32>
    %252 = tpu.matmul %249, %251, %cst_117 {dimension_numbers = #tpu.dot_dimension_numbers<[1], [0], [0], [1], [0, 0, 1, 1], [], []>} : vector<8x128xbf16>, vector<128x128xbf16>, vector<8x128xf32> -> vector<8x128xf32>
    %253 = arith.addf %225, %252 : vector<8x128xf32>
    %c1_118 = arith.constant 1 : index
    %c0_119 = arith.constant 0 : index
    %c0_120 = arith.constant 0 : index
    %254 = vector.load %arg10[%c1_118, %c0_119, %c0_120] : memref<2x1x128xf32, #tpu.memory_space<vmem>>, vector<1x1x128xf32>
    %255 = vector.shape_cast %254 : vector<1x1x128xf32> to vector<1x128xf32>
    %256 = vector.broadcast %255 : vector<1x128xf32> to vector<8x128xf32>
    %257 = arith.addf %253, %256 : vector<8x128xf32>
    %258 = arith.addf %257, %188 : vector<8x128xf32>
    %c1_121 = arith.constant 1 : index
    %c0_122 = arith.constant 0 : index
    %c0_123 = arith.constant 0 : index
    %259 = vector.load %arg11[%c1_121, %c0_122, %c0_123] : memref<2x1x128xf32, #tpu.memory_space<vmem>>, vector<1x1x128xf32>
    %260 = vector.shape_cast %259 : vector<1x1x128xf32> to vector<1x128xf32>
    %c1_124 = arith.constant 1 : index
    %c0_125 = arith.constant 0 : index
    %c0_126 = arith.constant 0 : index
    %261 = vector.load %arg12[%c1_124, %c0_125, %c0_126] : memref<2x1x128xf32, #tpu.memory_space<vmem>>, vector<1x1x128xf32>
    %262 = vector.shape_cast %261 : vector<1x1x128xf32> to vector<1x128xf32>
    %cst_127 = arith.constant dense<0.000000e+00> : vector<8xf32>
    %263 = vector.multi_reduction <add>, %258, %cst_127 [1] : vector<8x128xf32> to vector<8xf32>
    %264 = vector.shape_cast %263 : vector<8xf32> to vector<8x1xf32>
    %cst_128 = arith.constant 1.280000e+02 : f32
    %265 = vector.broadcast %cst_128 : f32 to vector<8x1xf32>
    %266 = arith.divf %264, %265 : vector<8x1xf32>
    %267 = vector.broadcast %266 : vector<8x1xf32> to vector<8x128xf32>
    %268 = arith.subf %258, %267 : vector<8x128xf32>
    %269 = arith.mulf %268, %268 : vector<8x128xf32>
    %cst_129 = arith.constant dense<0.000000e+00> : vector<8xf32>
    %270 = vector.multi_reduction <add>, %269, %cst_129 [1] : vector<8x128xf32> to vector<8xf32>
    %271 = vector.shape_cast %270 : vector<8xf32> to vector<8x1xf32>
    %cst_130 = arith.constant 1.280000e+02 : f32
    %272 = vector.broadcast %cst_130 : f32 to vector<8x1xf32>
    %273 = arith.divf %271, %272 : vector<8x1xf32>
    %cst_131 = arith.constant 9.99999996E-13 : f32
    %274 = vector.broadcast %cst_131 : f32 to vector<8x1xf32>
    %275 = arith.addf %273, %274 : vector<8x1xf32>
    %276 = math.rsqrt %275 : vector<8x1xf32>
    %277 = vector.broadcast %276 : vector<8x1xf32> to vector<8x128xf32>
    %278 = arith.mulf %268, %277 : vector<8x128xf32>
    %279 = vector.broadcast %260 : vector<1x128xf32> to vector<8x128xf32>
    %280 = arith.mulf %278, %279 : vector<8x128xf32>
    %281 = vector.broadcast %262 : vector<1x128xf32> to vector<8x128xf32>
    %282 = arith.addf %280, %281 : vector<8x128xf32>
    %283 = arith.truncf %282 : vector<8x128xf32> to vector<8x128xbf16>
    %c1_132 = arith.constant 1 : index
    %c0_133 = arith.constant 0 : index
    %c0_134 = arith.constant 0 : index
    %284 = vector.load %arg13[%c1_132, %c0_133, %c0_134] : memref<2x128x256xbf16, #tpu.memory_space<vmem>>, vector<1x128x256xbf16>
    %285 = vector.shape_cast %284 : vector<1x128x256xbf16> to vector<128x256xbf16>
    %cst_135 = arith.constant dense<0.000000e+00> : vector<8x256xf32>
    %286 = tpu.matmul %283, %285, %cst_135 {dimension_numbers = #tpu.dot_dimension_numbers<[1], [0], [0], [1], [0, 0, 1, 1], [], []>} : vector<8x128xbf16>, vector<128x256xbf16>, vector<8x256xf32> -> vector<8x256xf32>
    %c1_136 = arith.constant 1 : index
    %c0_137 = arith.constant 0 : index
    %c0_138 = arith.constant 0 : index
    %287 = vector.load %arg14[%c1_136, %c0_137, %c0_138] : memref<2x1x256xf32, #tpu.memory_space<vmem>>, vector<1x1x256xf32>
    %288 = vector.shape_cast %287 : vector<1x1x256xf32> to vector<1x256xf32>
    %289 = vector.broadcast %288 : vector<1x256xf32> to vector<8x256xf32>
    %290 = arith.addf %286, %289 : vector<8x256xf32>
    %cst_139 = arith.constant 5.000000e-01 : f32
    %291 = vector.broadcast %cst_139 : f32 to vector<8x256xf32>
    %292 = arith.mulf %291, %290 : vector<8x256xf32>
    %cst_140 = arith.constant 4.471500e-02 : f32
    %293 = vector.broadcast %cst_140 : f32 to vector<8x256xf32>
    %294 = arith.mulf %293, %290 : vector<8x256xf32>
    %295 = arith.mulf %294, %290 : vector<8x256xf32>
    %296 = arith.mulf %295, %290 : vector<8x256xf32>
    %297 = arith.addf %290, %296 : vector<8x256xf32>
    %cst_141 = arith.constant 0.797884583 : f32
    %298 = vector.broadcast %cst_141 : f32 to vector<8x256xf32>
    %299 = arith.mulf %298, %297 : vector<8x256xf32>
    %300 = math.tanh %299 : vector<8x256xf32>
    %cst_142 = arith.constant 1.000000e+00 : f32
    %301 = vector.broadcast %cst_142 : f32 to vector<8x256xf32>
    %302 = arith.addf %301, %300 : vector<8x256xf32>
    %303 = arith.mulf %292, %302 : vector<8x256xf32>
    %304 = arith.truncf %303 : vector<8x256xf32> to vector<8x256xbf16>
    %c1_143 = arith.constant 1 : index
    %c0_144 = arith.constant 0 : index
    %c0_145 = arith.constant 0 : index
    %305 = vector.load %arg15[%c1_143, %c0_144, %c0_145] : memref<2x256x128xbf16, #tpu.memory_space<vmem>>, vector<1x256x128xbf16>
    %306 = vector.shape_cast %305 : vector<1x256x128xbf16> to vector<256x128xbf16>
    %cst_146 = arith.constant dense<0.000000e+00> : vector<8x128xf32>
    %307 = tpu.matmul %304, %306, %cst_146 {dimension_numbers = #tpu.dot_dimension_numbers<[1], [0], [0], [1], [0, 0, 1, 1], [], []>} : vector<8x256xbf16>, vector<256x128xbf16>, vector<8x128xf32> -> vector<8x128xf32>
    %c1_147 = arith.constant 1 : index
    %c0_148 = arith.constant 0 : index
    %c0_149 = arith.constant 0 : index
    %308 = vector.load %arg16[%c1_147, %c0_148, %c0_149] : memref<2x1x128xf32, #tpu.memory_space<vmem>>, vector<1x1x128xf32>
    %309 = vector.shape_cast %308 : vector<1x1x128xf32> to vector<1x128xf32>
    %310 = vector.broadcast %309 : vector<1x128xf32> to vector<8x128xf32>
    %311 = arith.addf %307, %310 : vector<8x128xf32>
    %312 = arith.addf %311, %282 : vector<8x128xf32>
    %c1_150 = arith.constant 1 : index
    %c0_151 = arith.constant 0 : index
    %c0_152 = arith.constant 0 : index
    %313 = vector.load %arg17[%c1_150, %c0_151, %c0_152] : memref<2x1x128xf32, #tpu.memory_space<vmem>>, vector<1x1x128xf32>
    %314 = vector.shape_cast %313 : vector<1x1x128xf32> to vector<1x128xf32>
    %c1_153 = arith.constant 1 : index
    %c0_154 = arith.constant 0 : index
    %c0_155 = arith.constant 0 : index
    %315 = vector.load %arg18[%c1_153, %c0_154, %c0_155] : memref<2x1x128xf32, #tpu.memory_space<vmem>>, vector<1x1x128xf32>
    %316 = vector.shape_cast %315 : vector<1x1x128xf32> to vector<1x128xf32>
    %cst_156 = arith.constant dense<0.000000e+00> : vector<8xf32>
    %317 = vector.multi_reduction <add>, %312, %cst_156 [1] : vector<8x128xf32> to vector<8xf32>
    %318 = vector.shape_cast %317 : vector<8xf32> to vector<8x1xf32>
    %cst_157 = arith.constant 1.280000e+02 : f32
    %319 = vector.broadcast %cst_157 : f32 to vector<8x1xf32>
    %320 = arith.divf %318, %319 : vector<8x1xf32>
    %321 = vector.broadcast %320 : vector<8x1xf32> to vector<8x128xf32>
    %322 = arith.subf %312, %321 : vector<8x128xf32>
    %323 = arith.mulf %322, %322 : vector<8x128xf32>
    %cst_158 = arith.constant dense<0.000000e+00> : vector<8xf32>
    %324 = vector.multi_reduction <add>, %323, %cst_158 [1] : vector<8x128xf32> to vector<8xf32>
    %325 = vector.shape_cast %324 : vector<8xf32> to vector<8x1xf32>
    %cst_159 = arith.constant 1.280000e+02 : f32
    %326 = vector.broadcast %cst_159 : f32 to vector<8x1xf32>
    %327 = arith.divf %325, %326 : vector<8x1xf32>
    %cst_160 = arith.constant 9.99999996E-13 : f32
    %328 = vector.broadcast %cst_160 : f32 to vector<8x1xf32>
    %329 = arith.addf %327, %328 : vector<8x1xf32>
    %330 = math.rsqrt %329 : vector<8x1xf32>
    %331 = vector.broadcast %330 : vector<8x1xf32> to vector<8x128xf32>
    %332 = arith.mulf %322, %331 : vector<8x128xf32>
    %333 = vector.broadcast %314 : vector<1x128xf32> to vector<8x128xf32>
    %334 = arith.mulf %332, %333 : vector<8x128xf32>
    %335 = vector.broadcast %316 : vector<1x128xf32> to vector<8x128xf32>
    %336 = arith.addf %334, %335 : vector<8x128xf32>
    %337 = vector.extract_strided_slice %336 {offsets = [0, 0], sizes = [1, 128], strides = [1, 1]} : vector<8x128xf32> to vector<1x128xf32>
    %338 = arith.truncf %337 : vector<1x128xf32> to vector<1x128xbf16>
    %c0_161 = arith.constant 0 : index
    %c0_162 = arith.constant 0 : index
    %339 = vector.load %arg19[%c0_161, %c0_162] : memref<128x128xbf16, #tpu.memory_space<vmem>>, vector<128x128xbf16>
    %cst_163 = arith.constant dense<0.000000e+00> : vector<1x128xf32>
    %340 = tpu.matmul %338, %339, %cst_163 {dimension_numbers = #tpu.dot_dimension_numbers<[1], [0], [0], [1], [0, 0, 1, 1], [], []>} : vector<1x128xbf16>, vector<128x128xbf16>, vector<1x128xf32> -> vector<1x128xf32>
    %c0_164 = arith.constant 0 : index
    %c0_165 = arith.constant 0 : index
    %341 = vector.load %arg20[%c0_164, %c0_165] : memref<1x128xf32, #tpu.memory_space<vmem>>, vector<1x128xf32>
    %342 = arith.addf %340, %341 : vector<1x128xf32>
    %343 = math.tanh %342 : vector<1x128xf32>
    %344 = arith.truncf %343 : vector<1x128xf32> to vector<1x128xbf16>
    %c0_166 = arith.constant 0 : index
    %c0_167 = arith.constant 0 : index
    %345 = vector.load %arg21[%c0_166, %c0_167] : memref<128x128xbf16, #tpu.memory_space<vmem>>, vector<128x128xbf16>
    %cst_168 = arith.constant dense<0.000000e+00> : vector<1x128xf32>
    %346 = tpu.matmul %344, %345, %cst_168 {dimension_numbers = #tpu.dot_dimension_numbers<[1], [0], [0], [1], [0, 0, 1, 1], [], []>} : vector<1x128xbf16>, vector<128x128xbf16>, vector<1x128xf32> -> vector<1x128xf32>
    %c0_169 = arith.constant 0 : index
    %c0_170 = arith.constant 0 : index
    %347 = vector.load %arg22[%c0_169, %c0_170] : memref<1x128xf32, #tpu.memory_space<vmem>>, vector<1x128xf32>
    %348 = arith.addf %346, %347 : vector<1x128xf32>
    %349 = tpu.iota {dimensions = array<i32: 1>} : vector<1x128xi32>
    %c4_i32 = arith.constant 4 : i32
    %350 = vector.broadcast %c4_i32 : i32 to vector<1x128xi32>
    %351 = arith.cmpi slt, %349, %350 : vector<1x128xi32>
    %cst_171 = arith.constant -1.000000e+30 : f32
    %352 = vector.broadcast %cst_171 : f32 to vector<1x128xf32>
    %353 = arith.select %351, %348, %352 : vector<1x128xi1>, vector<1x128xf32>
    %cst_172 = arith.constant dense<0xFF800000> : vector<1xf32>
    %354 = vector.multi_reduction <maximumf>, %353, %cst_172 [1] : vector<1x128xf32> to vector<1xf32>
    %355 = vector.shape_cast %354 : vector<1xf32> to vector<1x1xf32>
    %356 = vector.broadcast %355 : vector<1x1xf32> to vector<1x128xf32>
    %357 = arith.subf %353, %356 : vector<1x128xf32>
    %358 = math.exp %357 : vector<1x128xf32>
    %cst_173 = arith.constant 0.000000e+00 : f32
    %359 = vector.broadcast %cst_173 : f32 to vector<1x128xf32>
    %360 = arith.select %351, %358, %359 : vector<1x128xi1>, vector<1x128xf32>
    %cst_174 = arith.constant dense<0.000000e+00> : vector<1xf32>
    %361 = vector.multi_reduction <add>, %360, %cst_174 [1] : vector<1x128xf32> to vector<1xf32>
    %362 = vector.shape_cast %361 : vector<1xf32> to vector<1x1xf32>
    %363 = math.log %362 : vector<1x1xf32>
    %364 = vector.broadcast %363 : vector<1x1xf32> to vector<1x128xf32>
    %365 = arith.subf %357, %364 : vector<1x128xf32>
    %c0_175 = arith.constant 0 : index
    %c0_176 = arith.constant 0 : index
    %c0_177 = arith.constant 0 : index
    %366 = vector.load %arg23[%c0_175, %c0_176, %c0_177] : memref<1x1x128xf32, #tpu.memory_space<vmem>>, vector<1x1x128xf32>
    %367 = vector.shape_cast %366 : vector<1x1x128xf32> to vector<1x128xf32>
    %368 = vector.shape_cast %365 : vector<1x128xf32> to vector<1x1x128xf32>
    tpu.vector_store %arg23[%c0_175, %c0_176, %c0_177], %368 {strides = array<i32>} : memref<1x1x128xf32, #tpu.memory_space<vmem>>, vector<1x1x128xf32>,
    return
  }
  func.func @transform_0(%arg0: i32) -> (i32, i32, i32) {
    %c0_i32 = arith.constant 0 : i32
    %c0_i32_0 = arith.constant 0 : i32
    %c0_i32_1 = arith.constant 0 : i32
    return %arg0, %c0_i32, %c0_i32_0 : i32, i32, i32
  }
  func.func @transform_1(%arg0: i32) -> (i32, i32, i32) {
    %c0_i32 = arith.constant 0 : i32
    %c0_i32_0 = arith.constant 0 : i32
    %c0_i32_1 = arith.constant 0 : i32
    return %arg0, %c0_i32, %c0_i32_0 : i32, i32, i32
  }
  func.func @transform_2(%arg0: i32) -> (i32, i32) {
    %c0_i32 = arith.constant 0 : i32
    %c0_i32_0 = arith.constant 0 : i32
    %c0_i32_1 = arith.constant 0 : i32
    return %c0_i32, %c0_i32_0 : i32, i32
  }
  func.func @transform_3(%arg0: i32) -> (i32, i32) {
    %c0_i32 = arith.constant 0 : i32
    %c0_i32_0 = arith.constant 0 : i32
    %c0_i32_1 = arith.constant 0 : i32
    return %c0_i32, %c0_i32_0 : i32, i32
  }
  func.func @transform_4(%arg0: i32) -> (i32, i32) {
    %c0_i32 = arith.constant 0 : i32
    %c0_i32_0 = arith.constant 0 : i32
    %c0_i32_1 = arith.constant 0 : i32
    return %c0_i32, %c0_i32_0 : i32, i32
  }
  func.func @transform_5(%arg0: i32) -> (i32, i32) {
    %c0_i32 = arith.constant 0 : i32
    %c0_i32_0 = arith.constant 0 : i32
    %c0_i32_1 = arith.constant 0 : i32
    return %c0_i32, %c0_i32_0 : i32, i32
  }
  func.func @transform_6(%arg0: i32) -> (i32, i32, i32) {
    %c0_i32 = arith.constant 0 : i32
    %c0_i32_0 = arith.constant 0 : i32
    %c0_i32_1 = arith.constant 0 : i32
    %c0_i32_2 = arith.constant 0 : i32
    return %c0_i32, %c0_i32_0, %c0_i32_1 : i32, i32, i32
  }
  func.func @transform_7(%arg0: i32) -> (i32, i32, i32) {
    %c0_i32 = arith.constant 0 : i32
    %c0_i32_0 = arith.constant 0 : i32
    %c0_i32_1 = arith.constant 0 : i32
    %c0_i32_2 = arith.constant 0 : i32
    return %c0_i32, %c0_i32_0, %c0_i32_1 : i32, i32, i32
  }
  func.func @transform_8(%arg0: i32) -> (i32, i32, i32, i32) {
    %c0_i32 = arith.constant 0 : i32
    %c0_i32_0 = arith.constant 0 : i32
    %c0_i32_1 = arith.constant 0 : i32
    %c0_i32_2 = arith.constant 0 : i32
    %c0_i32_3 = arith.constant 0 : i32
    return %c0_i32, %c0_i32_0, %c0_i32_1, %c0_i32_2 : i32, i32, i32, i32
  }
  func.func @transform_9(%arg0: i32) -> (i32, i32, i32) {
    %c0_i32 = arith.constant 0 : i32
    %c0_i32_0 = arith.constant 0 : i32
    %c0_i32_1 = arith.constant 0 : i32
    %c0_i32_2 = arith.constant 0 : i32
    return %c0_i32, %c0_i32_0, %c0_i32_1 : i32, i32, i32
  }
  func.func @transform_10(%arg0: i32) -> (i32, i32, i32) {
    %c0_i32 = arith.constant 0 : i32
    %c0_i32_0 = arith.constant 0 : i32
    %c0_i32_1 = arith.constant 0 : i32
    %c0_i32_2 = arith.constant 0 : i32
    return %c0_i32, %c0_i32_0, %c0_i32_1 : i32, i32, i32
  }
  func.func @transform_11(%arg0: i32) -> (i32, i32, i32) {
    %c0_i32 = arith.constant 0 : i32
    %c0_i32_0 = arith.constant 0 : i32
    %c0_i32_1 = arith.constant 0 : i32
    %c0_i32_2 = arith.constant 0 : i32
    return %c0_i32, %c0_i32_0, %c0_i32_1 : i32, i32, i32
  }
  func.func @transform_12(%arg0: i32) -> (i32, i32, i32) {
    %c0_i32 = arith.constant 0 : i32
    %c0_i32_0 = arith.constant 0 : i32
    %c0_i32_1 = arith.constant 0 : i32
    %c0_i32_2 = arith.constant 0 : i32
    return %c0_i32, %c0_i32_0, %c0_i32_1 : i32, i32, i32
  }
  func.func @transform_13(%arg0: i32) -> (i32, i32, i32) {
    %c0_i32 = arith.constant 0 : i32
    %c0_i32_0 = arith.constant 0 : i32
    %c0_i32_1 = arith.constant 0 : i32
    %c0_i32_2 = arith.constant 0 : i32
    return %c0_i32, %c0_i32_0, %c0_i32_1 : i32, i32, i32
  }
  func.func @transform_14(%arg0: i32) -> (i32, i32, i32) {
    %c0_i32 = arith.constant 0 : i32
    %c0_i32_0 = arith.constant 0 : i32
    %c0_i32_1 = arith.constant 0 : i32
    %c0_i32_2 = arith.constant 0 : i32
    return %c0_i32, %c0_i32_0, %c0_i32_1 : i32, i32, i32
  }
  func.func @transform_15(%arg0: i32) -> (i32, i32, i32) {
    %c0_i32 = arith.constant 0 : i32
    %c0_i32_0 = arith.constant 0 : i32
    %c0_i32_1 = arith.constant 0 : i32
    %c0_i32_2 = arith.constant 0 : i32
    return %c0_i32, %c0_i32_0, %c0_i32_1 : i32, i32, i32
  }
  func.func @transform_16(%arg0: i32) -> (i32, i32, i32) {
    %c0_i32 = arith.constant 0 : i32
    %c0_i32_0 = arith.constant 0 : i32
    %c0_i32_1 = arith.constant 0 : i32
    %c0_i32_2 = arith.constant 0 : i32
    return %c0_i32, %c0_i32_0, %c0_i32_1 : i32, i32, i32
  }
  func.func @transform_17(%arg0: i32) -> (i32, i32, i32) {
    %c0_i32 = arith.constant 0 : i32
    %c0_i32_0 = arith.constant 0 : i32
    %c0_i32_1 = arith.constant 0 : i32
    %c0_i32_2 = arith.constant 0 : i32
    return %c0_i32, %c0_i32_0, %c0_i32_1 : i32, i32, i32
  }
  func.func @transform_18(%arg0: i32) -> (i32, i32) {
    %c0_i32 = arith.constant 0 : i32
    %c0_i32_0 = arith.constant 0 : i32
    %c0_i32_1 = arith.constant 0 : i32
    return %c0_i32, %c0_i32_0 : i32, i32
  }
  func.func @transform_19(%arg0: i32) -> (i32, i32) {
    %c0_i32 = arith.constant 0 : i32
    %c0_i32_0 = arith.constant 0 : i32
    %c0_i32_1 = arith.constant 0 : i32
    return %c0_i32, %c0_i32_0 : i32, i32
  }
  func.func @transform_20(%arg0: i32) -> (i32, i32) {
    %c0_i32 = arith.constant 0 : i32
    %c0_i32_0 = arith.constant 0 : i32
    %c0_i32_1 = arith.constant 0 : i32
    return %c0_i32, %c0_i32_0 : i32, i32
  }
  func.func @transform_21(%arg0: i32) -> (i32, i32) {
    %c0_i32 = arith.constant 0 : i32
    %c0_i32_0 = arith.constant 0 : i32
    %c0_i32_1 = arith.constant 0 : i32
    return %c0_i32, %c0_i32_0 : i32, i32
  }
  func.func @transform_22(%arg0: i32) -> (i32, i32, i32) {
    %c0_i32 = arith.constant 0 : i32
    %c0_i32_0 = arith.constant 0 : i32
    %c0_i32_1 = arith.constant 0 : i32
    return %arg0, %c0_i32, %c0_i32_0 : i32, i32, i32
  }
}

</mosaic_0001>

<llo_original>
// kernel: bert_classifier_forward.1
$region0: #{bert_classifier_forward.1}
  #allocation0 [shape = 'u32[]', space=smem, size = 0x4, offset = 0x4, fixed_abs, tag = 'smem constant byte address 0x4 - core index']
  #allocation1 [shape = 'u32[144,128]{1,0:T(1,128)}', space=vmem, size = 0x12000, scoped, tag = 'internal scratch']
  %s0 = inlined_call_operand.vmem [shape: s32[2,8,1], index: 0, kind: input, shape index: {}]
  %s1 = inlined_call_operand.vmem [shape: s32[2,1,8], index: 1, kind: input, shape index: {}]
  %s2 = inlined_call_operand.vmem [shape: bf16[128,128], index: 2, kind: input, shape index: {}]
  %s3 = inlined_call_operand.vmem [shape: f32[8,128], index: 3, kind: input, shape index: {}]
  %s4 = inlined_call_operand.vmem [shape: f32[1,128], index: 4, kind: input, shape index: {}]
  %s5 = inlined_call_operand.vmem [shape: f32[1,128], index: 5, kind: input, shape index: {}]
  %s6 = inlined_call_operand.hbm [shape: bf16[2,128,768], index: 6, kind: input, shape index: {}]
  %s7 = inlined_call_operand.vmem [shape: f32[2,1,768], index: 7, kind: input, shape index: {}]
  %s8 = inlined_call_operand.hbm [shape: bf16[2,2,128,128], index: 8, kind: input, shape index: {}]
  %s9 = inlined_call_operand.vmem [shape: f32[2,1,128], index: 9, kind: input, shape index: {}]
  %s10 = inlined_call_operand.vmem [shape: f32[2,1,128], index: 10, kind: input, shape index: {}]
  %s11 = inlined_call_operand.vmem [shape: f32[2,1,128], index: 11, kind: input, shape index: {}]
  %s12 = inlined_call_operand.hbm [shape: bf16[2,128,256], index: 12, kind: input, shape index: {}]
  %s13 = inlined_call_operand.vmem [shape: f32[2,1,256], index: 13, kind: input, shape index: {}]
  %s14 = inlined_call_operand.hbm [shape: bf16[2,256,128], index: 14, kind: input, shape index: {}]
  %s15 = inlined_call_operand.vmem [shape: f32[2,1,128], index: 15, kind: input, shape index: {}]
  %s16 = inlined_call_operand.vmem [shape: f32[2,1,128], index: 16, kind: input, shape index: {}]
  %s17 = inlined_call_operand.vmem [shape: f32[2,1,128], index: 17, kind: input, shape index: {}]
  %s18 = inlined_call_operand.hbm [shape: bf16[128,128], index: 18, kind: input, shape index: {}]
  %s19 = inlined_call_operand.vmem [shape: f32[1,128], index: 19, kind: input, shape index: {}]
  %s20 = inlined_call_operand.hbm [shape: bf16[128,128], index: 20, kind: input, shape index: {}]
  %s21 = inlined_call_operand.vmem [shape: f32[1,128], index: 21, kind: input, shape index: {}]
  %s22 = inlined_call_operand.hbm [shape: f32[2,1,128], index: 22, kind: output, shape index: {}]
  %s23 = sld [smem:[#allocation0]]
  $region145: #{bert_classifier_forward.1} parent=0
    _
  %s25 = ssub.s32 1, %s23
  %s26 = scalar_select 0, %s25, %s23
  $region1: #{bert_classifier_forward.1} parent=0
    #allocation2 [shape = 'u8[393216]{0}', space=vmem, size = 0x60000, scoped, tag = 'input window, operand 6, single buffered']
    #allocation3 [shape = 's32[2]{0}', space=sflag, size = 0x8, scoped, tag = 'scoped memory for bert_classifier_forward.1']
    #allocation4 [shape = 's32[2]{0}', space=sflag, size = 0x8, scoped, tag = 'scoped memory for bert_classifier_forward.1']
    #allocation5 [shape = 'u8[131072]{0}', space=vmem, size = 0x20000, scoped, tag = 'input window, operand 8, single buffered']
    #allocation6 [shape = 's32[1]{0}', space=sflag, size = 0x4, scoped, tag = 'scoped memory for bert_classifier_forward.1']
    #allocation7 [shape = 'u8[131072]{0}', space=vmem, size = 0x20000, scoped, tag = 'input window, operand 12, single buffered']
    #allocation8 [shape = 'u8[131072]{0}', space=vmem, size = 0x20000, scoped, tag = 'input window, operand 14, single buffered']
    #allocation9 [shape = 's32[1]{0}', space=sflag, size = 0x4, scoped, tag = 'scoped memory for bert_classifier_forward.1']
    #allocation10 [shape = 'u8[32768]{0}', space=vmem, size = 0x8000, scoped, tag = 'input window, operand 18, single buffered']
    #allocation11 [shape = 'u8[32768]{0}', space=vmem, size = 0x8000, scoped, tag = 'input window, operand 20, single buffered']
    #allocation12 [shape = 's32[1]{0}', space=sflag, size = 0x4, scoped, tag = 'scoped memory for bert_classifier_forward.1']
    #allocation13 [shape = 'u8[1024]{0}', space=vmem, size = 0x400, scoped, tag = 'output window, operand 0']
    %27 = vsyncpa [#allocation3], 0
    %28 = vsyncpa [#allocation6], 0
    %29 = vsyncpa [#allocation9], 0
    %30 = vsyncpa [#allocation12], 0
    %31 = vsyncpa [#allocation4], 0
    %s32 = scalar_lea.sflag [#allocation4], 1
    %33 = vsyncpa %s32, 0
    loop: start=0, step=1, limit=4
    $region2: #{bert_classifier_forward.1} parent=1 // loop_pre_header
      _
    $region3: #{bert_classifier_forward.1} parent=1 // loop_header
      %s35 = sphi 0, %s39
      %p36 = scmp.ge.s32.totalorder %s35, 4
      %s45 = sphi 0, %s47
      %s48 = sphi 0, %s45
      %s49 = sphi 0, %s48
      %s65 = sphi 0, %s49
      %s71 = sphi 0, %s73
      %s74 = sphi 0, %s71
      %s75 = sphi 0, %s74
      %s91 = sphi 0, %s75
      %s95 = sphi 0, %s95
      %s97 = sphi 0, %s95
      %s98 = sphi 0, %s97
      %s112 = sphi 0, %s98
      %s116 = sphi 0, %s116
      %s118 = sphi 0, %s116
      %s119 = sphi 0, %s118
      %s133 = sphi 0, %s119
      %s137 = sphi 0, %s137
      %s139 = sphi 0, %s137
      %s140 = sphi 0, %s139
      %s154 = sphi 0, %s140
      %s158 = sphi 0, %s158
      %s160 = sphi 0, %s158
      %s161 = sphi 0, %s160
      %s175 = sphi 0, %s161
      %s179 = sphi 0, %s179
      %s181 = sphi 0, %s179
      %s182 = sphi 0, %s181
      %s196 = sphi 0, %s182
      %s200 = sphi 0, %s200
      %s202 = sphi 0, %s200
      %s203 = sphi 0, %s202
      %s217 = sphi 0, %s203
      %s221 = sphi 0, %s221
      %s223 = sphi 0, %s221
      %s224 = sphi 0, %s223
      %s238 = sphi 0, %s224
      %s242 = sphi 0, %s242
      %s244 = sphi 0, %s242
      %s245 = sphi 0, %s244
      %s259 = sphi 0, %s245
      %s263 = sphi 0, %s263
      %s265 = sphi 0, %s263
      %s266 = sphi 0, %s265
      %s280 = sphi 0, %s266
      %s284 = sphi 0, %s284
      %s286 = sphi 0, %s284
      %s287 = sphi 0, %s286
      %s301 = sphi 0, %s287
      %s305 = sphi 0, %s305
      %s307 = sphi 0, %s305
      %s308 = sphi 0, %s307
      %s322 = sphi 0, %s308
      %s326 = sphi 0, %s326
      %s328 = sphi 0, %s326
      %s329 = sphi 0, %s328
      %s343 = sphi 0, %s329
      %s347 = sphi 0, %s347
      %s349 = sphi 0, %s347
      %s350 = sphi 0, %s349
      %s364 = sphi 0, %s350
      %s368 = sphi 0, %s368
      %s370 = sphi 0, %s368
      %s371 = sphi 0, %s370
      %s385 = sphi 0, %s371
      %s389 = sphi 0, %s389
      %s391 = sphi 0, %s389
      %s392 = sphi 0, %s391
      %s406 = sphi 0, %s392
      %s410 = sphi 0, %s410
      %s412 = sphi 0, %s410
      %s413 = sphi 0, %s412
      %s427 = sphi 0, %s413
      %s431 = sphi 0, %s431
      %s433 = sphi 0, %s431
      %s434 = sphi 0, %s433
      %s448 = sphi 0, %s434
      %s452 = sphi 0, %s452
      %s454 = sphi 0, %s452
      %s455 = sphi 0, %s454
      %s469 = sphi 0, %s455
      %s473 = sphi 0, %s473
      %s475 = sphi 0, %s473
      %s476 = sphi 0, %s475
      %s490 = sphi 0, %s476
      %s494 = sphi 0, %s494
      %s496 = sphi 0, %s494
      %s497 = sphi 0, %s496
      %s511 = sphi 0, %s497
      %s517 = sphi 0, %s519
      %s520 = sphi 0, %s517
      %s521 = sphi 0, %s520
      %s537 = sphi 0, %s521
    $region4: #{bert_classifier_forward.1} parent=1 // loop_header_branch
      %38 = sbr.rel (%p36) target = $region8
    $region5: #{bert_classifier_forward.1} parent=1 // loop_body
      %s40 = ssub.s32 %s35, 1
      %s41 = ssub.s32 %s35, 2
      %s42 = sadd.s32 %s35, 1
      %s43 = ssub.s32 %s35, %s42
      %p44 = scmp.eq.s32.totalorder %s43, 0
      %s46 = sadd.s32 %s45, 1
      %s47 = scalar_select %p44, %s45, %s46
      %p50 = pneg %p44
      %p51 = scmp.eq.s32.totalorder %s35, 1
      %p52 = por %p50, %p51
      %p53 = scmp.ne.s32.totalorder %s45, %s48
      %p54 = scmp.eq.s32.totalorder %s35, 0
      %p55 = por %p53, %p54
      %p56 = scmp.ne.s32.totalorder %s45, %s48
      %p57 = scmp.eq.s32.totalorder %s40, 1
      %p58 = por %p56, %p57
      %p59 = scmp.ne.s32.totalorder %s48, %s49
      %p60 = scmp.eq.s32.totalorder %s40, 0
      %p61 = por %p59, %p60
      %p62 = scmp.ne.s32.totalorder %s48, %s49
      %p63 = scmp.eq.s32.totalorder %s41, 1
      %p64 = por %p62, %p63
      %p66 = scmp.ne.s32.totalorder %s49, %s65
      %p67 = scmp.eq.s32.totalorder %s41, 0
      %p68 = por %p66, %p67
      %s69 = ssub.s32 %s35, %s42
      %p70 = scmp.eq.s32.totalorder %s69, 0
      %s72 = sadd.s32 %s71, 1
      %s73 = scalar_select %p70, %s71, %s72
      %p76 = pneg %p70
      %p77 = scmp.eq.s32.totalorder %s35, 1
      %p78 = por %p76, %p77
      %p79 = scmp.ne.s32.totalorder %s71, %s74
      %p80 = scmp.eq.s32.totalorder %s35, 0
      %p81 = por %p79, %p80
      %p82 = scmp.ne.s32.totalorder %s71, %s74
      %p83 = scmp.eq.s32.totalorder %s40, 1
      %p84 = por %p82, %p83
      %p85 = scmp.ne.s32.totalorder %s74, %s75
      %p86 = scmp.eq.s32.totalorder %s40, 0
      %p87 = por %p85, %p86
      %p88 = scmp.ne.s32.totalorder %s74, %s75
      %p89 = scmp.eq.s32.totalorder %s41, 1
      %p90 = por %p88, %p89
      %p92 = scmp.ne.s32.totalorder %s75, %s91
      %p93 = scmp.eq.s32.totalorder %s41, 0
      %p94 = por %p92, %p93
      %s96 = sadd.s32 %s95, 1
      %p99 = scmp.eq.s32.totalorder %s35, 1
      %p100 = scmp.ne.s32.totalorder %s95, %s97
      %p101 = scmp.eq.s32.totalorder %s35, 0
      %p102 = por %p100, %p101
      %p103 = scmp.ne.s32.totalorder %s95, %s97
      %p104 = scmp.eq.s32.totalorder %s40, 1
      %p105 = por %p103, %p104
      %p106 = scmp.ne.s32.totalorder %s97, %s98
      %p107 = scmp.eq.s32.totalorder %s40, 0
      %p108 = por %p106, %p107
      %p109 = scmp.ne.s32.totalorder %s97, %s98
      %p110 = scmp.eq.s32.totalorder %s41, 1
      %p111 = por %p109, %p110
      %p113 = scmp.ne.s32.totalorder %s98, %s112
      %p114 = scmp.eq.s32.totalorder %s41, 0
      %p115 = por %p113, %p114
      %s117 = sadd.s32 %s116, 1
      %p120 = scmp.eq.s32.totalorder %s35, 1
      %p121 = scmp.ne.s32.totalorder %s116, %s118
      %p122 = scmp.eq.s32.totalorder %s35, 0
      %p123 = por %p121, %p122
      %p124 = scmp.ne.s32.totalorder %s116, %s118
      %p125 = scmp.eq.s32.totalorder %s40, 1
      %p126 = por %p124, %p125
      %p127 = scmp.ne.s32.totalorder %s118, %s119
      %p128 = scmp.eq.s32.totalorder %s40, 0
      %p129 = por %p127, %p128
      %p130 = scmp.ne.s32.totalorder %s118, %s119
      %p131 = scmp.eq.s32.totalorder %s41, 1
      %p132 = por %p130, %p131
      %p134 = scmp.ne.s32.totalorder %s119, %s133
      %p135 = scmp.eq.s32.totalorder %s41, 0
      %p136 = por %p134, %p135
      %s138 = sadd.s32 %s137, 1
      %p141 = scmp.eq.s32.totalorder %s35, 1
      %p142 = scmp.ne.s32.totalorder %s137, %s139
      %p143 = scmp.eq.s32.totalorder %s35, 0
      %p144 = por %p142, %p143
      %p145 = scmp.ne.s32.totalorder %s137, %s139
      %p146 = scmp.eq.s32.totalorder %s40, 1
      %p147 = por %p145, %p146
      %p148 = scmp.ne.s32.totalorder %s139, %s140
      %p149 = scmp.eq.s32.totalorder %s40, 0
      %p150 = por %p148, %p149
      %p151 = scmp.ne.s32.totalorder %s139, %s140
      %p152 = scmp.eq.s32.totalorder %s41, 1
      %p153 = por %p151, %p152
      %p155 = scmp.ne.s32.totalorder %s140, %s154
      %p156 = scmp.eq.s32.totalorder %s41, 0
      %p157 = por %p155, %p156
      %s159 = sadd.s32 %s158, 1
      %p162 = scmp.eq.s32.totalorder %s35, 1
      %p163 = scmp.ne.s32.totalorder %s158, %s160
      %p164 = scmp.eq.s32.totalorder %s35, 0
      %p165 = por %p163, %p164
      %p166 = scmp.ne.s32.totalorder %s158, %s160
      %p167 = scmp.eq.s32.totalorder %s40, 1
      %p168 = por %p166, %p167
      %p169 = scmp.ne.s32.totalorder %s160, %s161
      %p170 = scmp.eq.s32.totalorder %s40, 0
      %p171 = por %p169, %p170
      %p172 = scmp.ne.s32.totalorder %s160, %s161
      %p173 = scmp.eq.s32.totalorder %s41, 1
      %p174 = por %p172, %p173
      %p176 = scmp.ne.s32.totalorder %s161, %s175
      %p177 = scmp.eq.s32.totalorder %s41, 0
      %p178 = por %p176, %p177
      %s180 = sadd.s32 %s179, 1
      %p183 = scmp.eq.s32.totalorder %s35, 1
      %p184 = scmp.ne.s32.totalorder %s179, %s181
      %p185 = scmp.eq.s32.totalorder %s35, 0
      %p186 = por %p184, %p185
      %p187 = scmp.ne.s32.totalorder %s179, %s181
      %p188 = scmp.eq.s32.totalorder %s40, 1
      %p189 = por %p187, %p188
      %p190 = scmp.ne.s32.totalorder %s181, %s182
      %p191 = scmp.eq.s32.totalorder %s40, 0
      %p192 = por %p190, %p191
      %p193 = scmp.ne.s32.totalorder %s181, %s182
      %p194 = scmp.eq.s32.totalorder %s41, 1
      %p195 = por %p193, %p194
      %p197 = scmp.ne.s32.totalorder %s182, %s196
      %p198 = scmp.eq.s32.totalorder %s41, 0
      %p199 = por %p197, %p198
      %s201 = sadd.s32 %s200, 1
      %p204 = scmp.eq.s32.totalorder %s35, 1
      %p205 = scmp.ne.s32.totalorder %s200, %s202
      %p206 = scmp.eq.s32.totalorder %s35, 0
      %p207 = por %p205, %p206
      %p208 = scmp.ne.s32.totalorder %s200, %s202
      %p209 = scmp.eq.s32.totalorder %s40, 1
      %p210 = por %p208, %p209
      %p211 = scmp.ne.s32.totalorder %s202, %s203
      %p212 = scmp.eq.s32.totalorder %s40, 0
      %p213 = por %p211, %p212
      %p214 = scmp.ne.s32.totalorder %s202, %s203
      %p215 = scmp.eq.s32.totalorder %s41, 1
      %p216 = por %p214, %p215
      %p218 = scmp.ne.s32.totalorder %s203, %s217
      %p219 = scmp.eq.s32.totalorder %s41, 0
      %p220 = por %p218, %p219
      %s222 = sadd.s32 %s221, 1
      %p225 = scmp.eq.s32.totalorder %s35, 1
      %p226 = scmp.ne.s32.totalorder %s221, %s223
      %p227 = scmp.eq.s32.totalorder %s35, 0
      %p228 = por %p226, %p227
      %p229 = scmp.ne.s32.totalorder %s221, %s223
      %p230 = scmp.eq.s32.totalorder %s40, 1
      %p231 = por %p229, %p230
      %p232 = scmp.ne.s32.totalorder %s223, %s224
      %p233 = scmp.eq.s32.totalorder %s40, 0
      %p234 = por %p232, %p233
      %p235 = scmp.ne.s32.totalorder %s223, %s224
      %p236 = scmp.eq.s32.totalorder %s41, 1
      %p237 = por %p235, %p236
      %p239 = scmp.ne.s32.totalorder %s224, %s238
      %p240 = scmp.eq.s32.totalorder %s41, 0
      %p241 = por %p239, %p240
      %s243 = sadd.s32 %s242, 1
      %p246 = scmp.eq.s32.totalorder %s35, 1
      %p247 = scmp.ne.s32.totalorder %s242, %s244
      %p248 = scmp.eq.s32.totalorder %s35, 0
      %p249 = por %p247, %p248
      %p250 = scmp.ne.s32.totalorder %s242, %s244
      %p251 = scmp.eq.s32.totalorder %s40, 1
      %p252 = por %p250, %p251
      %p253 = scmp.ne.s32.totalorder %s244, %s245
      %p254 = scmp.eq.s32.totalorder %s40, 0
      %p255 = por %p253, %p254
      %p256 = scmp.ne.s32.totalorder %s244, %s245
      %p257 = scmp.eq.s32.totalorder %s41, 1
      %p258 = por %p256, %p257
      %p260 = scmp.ne.s32.totalorder %s245, %s259
      %p261 = scmp.eq.s32.totalorder %s41, 0
      %p262 = por %p260, %p261
      %s264 = sadd.s32 %s263, 1
      %p267 = scmp.eq.s32.totalorder %s35, 1
      %p268 = scmp.ne.s32.totalorder %s263, %s265
      %p269 = scmp.eq.s32.totalorder %s35, 0
      %p270 = por %p268, %p269
      %p271 = scmp.ne.s32.totalorder %s263, %s265
      %p272 = scmp.eq.s32.totalorder %s40, 1
      %p273 = por %p271, %p272
      %p274 = scmp.ne.s32.totalorder %s265, %s266
      %p275 = scmp.eq.s32.totalorder %s40, 0
      %p276 = por %p274, %p275
      %p277 = scmp.ne.s32.totalorder %s265, %s266
      %p278 = scmp.eq.s32.totalorder %s41, 1
      %p279 = por %p277, %p278
      %p281 = scmp.ne.s32.totalorder %s266, %s280
      %p282 = scmp.eq.s32.totalorder %s41, 0
      %p283 = por %p281, %p282
      %s285 = sadd.s32 %s284, 1
      %p288 = scmp.eq.s32.totalorder %s35, 1
      %p289 = scmp.ne.s32.totalorder %s284, %s286
      %p290 = scmp.eq.s32.totalorder %s35, 0
      %p291 = por %p289, %p290
      %p292 = scmp.ne.s32.totalorder %s284, %s286
      %p293 = scmp.eq.s32.totalorder %s40, 1
      %p294 = por %p292, %p293
      %p295 = scmp.ne.s32.totalorder %s286, %s287
      %p296 = scmp.eq.s32.totalorder %s40, 0
      %p297 = por %p295, %p296
      %p298 = scmp.ne.s32.totalorder %s286, %s287
      %p299 = scmp.eq.s32.totalorder %s41, 1
      %p300 = por %p298, %p299
      %p302 = scmp.ne.s32.totalorder %s287, %s301
      %p303 = scmp.eq.s32.totalorder %s41, 0
      %p304 = por %p302, %p303
      %s306 = sadd.s32 %s305, 1
      %p309 = scmp.eq.s32.totalorder %s35, 1
      %p310 = scmp.ne.s32.totalorder %s305, %s307
      %p311 = scmp.eq.s32.totalorder %s35, 0
      %p312 = por %p310, %p311
      %p313 = scmp.ne.s32.totalorder %s305, %s307
      %p314 = scmp.eq.s32.totalorder %s40, 1
      %p315 = por %p313, %p314
      %p316 = scmp.ne.s32.totalorder %s307, %s308
      %p317 = scmp.eq.s32.totalorder %s40, 0
      %p318 = por %p316, %p317
      %p319 = scmp.ne.s32.totalorder %s307, %s308
      %p320 = scmp.eq.s32.totalorder %s41, 1
      %p321 = por %p319, %p320
      %p323 = scmp.ne.s32.totalorder %s308, %s322
      %p324 = scmp.eq.s32.totalorder %s41, 0
      %p325 = por %p323, %p324
      %s327 = sadd.s32 %s326, 1
      %p330 = scmp.eq.s32.totalorder %s35, 1
      %p331 = scmp.ne.s32.totalorder %s326, %s328
      %p332 = scmp.eq.s32.totalorder %s35, 0
      %p333 = por %p331, %p332
      %p334 = scmp.ne.s32.totalorder %s326, %s328
      %p335 = scmp.eq.s32.totalorder %s40, 1
      %p336 = por %p334, %p335
      %p337 = scmp.ne.s32.totalorder %s328, %s329
      %p338 = scmp.eq.s32.totalorder %s40, 0
      %p339 = por %p337, %p338
      %p340 = scmp.ne.s32.totalorder %s328, %s329
      %p341 = scmp.eq.s32.totalorder %s41, 1
      %p342 = por %p340, %p341
      %p344 = scmp.ne.s32.totalorder %s329, %s343
      %p345 = scmp.eq.s32.totalorder %s41, 0
      %p346 = por %p344, %p345
      %s348 = sadd.s32 %s347, 1
      %p351 = scmp.eq.s32.totalorder %s35, 1
      %p352 = scmp.ne.s32.totalorder %s347, %s349
      %p353 = scmp.eq.s32.totalorder %s35, 0
      %p354 = por %p352, %p353
      %p355 = scmp.ne.s32.totalorder %s347, %s349
      %p356 = scmp.eq.s32.totalorder %s40, 1
      %p357 = por %p355, %p356
      %p358 = scmp.ne.s32.totalorder %s349, %s350
      %p359 = scmp.eq.s32.totalorder %s40, 0
      %p360 = por %p358, %p359
      %p361 = scmp.ne.s32.totalorder %s349, %s350
      %p362 = scmp.eq.s32.totalorder %s41, 1
      %p363 = por %p361, %p362
      %p365 = scmp.ne.s32.totalorder %s350, %s364
      %p366 = scmp.eq.s32.totalorder %s41, 0
      %p367 = por %p365, %p366
      %s369 = sadd.s32 %s368, 1
      %p372 = scmp.eq.s32.totalorder %s35, 1
      %p373 = scmp.ne.s32.totalorder %s368, %s370
      %p374 = scmp.eq.s32.totalorder %s35, 0
      %p375 = por %p373, %p374
      %p376 = scmp.ne.s32.totalorder %s368, %s370
      %p377 = scmp.eq.s32.totalorder %s40, 1
      %p378 = por %p376, %p377
      %p379 = scmp.ne.s32.totalorder %s370, %s371
      %p380 = scmp.eq.s32.totalorder %s40, 0
      %p381 = por %p379, %p380
      %p382 = scmp.ne.s32.totalorder %s370, %s371
      %p383 = scmp.eq.s32.totalorder %s41, 1
      %p384 = por %p382, %p383
      %p386 = scmp.ne.s32.totalorder %s371, %s385
      %p387 = scmp.eq.s32.totalorder %s41, 0
      %p388 = por %p386, %p387
      %s390 = sadd.s32 %s389, 1
      %p393 = scmp.eq.s32.totalorder %s35, 1
      %p394 = scmp.ne.s32.totalorder %s389, %s391
      %p395 = scmp.eq.s32.totalorder %s35, 0
      %p396 = por %p394, %p395
      %p397 = scmp.ne.s32.totalorder %s389, %s391
      %p398 = scmp.eq.s32.totalorder %s40, 1
      %p399 = por %p397, %p398
      %p400 = scmp.ne.s32.totalorder %s391, %s392
      %p401 = scmp.eq.s32.totalorder %s40, 0
      %p402 = por %p400, %p401
      %p403 = scmp.ne.s32.totalorder %s391, %s392
      %p404 = scmp.eq.s32.totalorder %s41, 1
      %p405 = por %p403, %p404
      %p407 = scmp.ne.s32.totalorder %s392, %s406
      %p408 = scmp.eq.s32.totalorder %s41, 0
      %p409 = por %p407, %p408
      %s411 = sadd.s32 %s410, 1
      %p414 = scmp.eq.s32.totalorder %s35, 1
      %p415 = scmp.ne.s32.totalorder %s410, %s412
      %p416 = scmp.eq.s32.totalorder %s35, 0
      %p417 = por %p415, %p416
      %p418 = scmp.ne.s32.totalorder %s410, %s412
      %p419 = scmp.eq.s32.totalorder %s40, 1
      %p420 = por %p418, %p419
      %p421 = scmp.ne.s32.totalorder %s412, %s413
      %p422 = scmp.eq.s32.totalorder %s40, 0
      %p423 = por %p421, %p422
      %p424 = scmp.ne.s32.totalorder %s412, %s413
      %p425 = scmp.eq.s32.totalorder %s41, 1
      %p426 = por %p424, %p425
      %p428 = scmp.ne.s32.totalorder %s413, %s427
      %p429 = scmp.eq.s32.totalorder %s41, 0
      %p430 = por %p428, %p429
      %s432 = sadd.s32 %s431, 1
      %p435 = scmp.eq.s32.totalorder %s35, 1
      %p436 = scmp.ne.s32.totalorder %s431, %s433
      %p437 = scmp.eq.s32.totalorder %s35, 0
      %p438 = por %p436, %p437
      %p439 = scmp.ne.s32.totalorder %s431, %s433
      %p440 = scmp.eq.s32.totalorder %s40, 1
      %p441 = por %p439, %p440
      %p442 = scmp.ne.s32.totalorder %s433, %s434
      %p443 = scmp.eq.s32.totalorder %s40, 0
      %p444 = por %p442, %p443
      %p445 = scmp.ne.s32.totalorder %s433, %s434
      %p446 = scmp.eq.s32.totalorder %s41, 1
      %p447 = por %p445, %p446
      %p449 = scmp.ne.s32.totalorder %s434, %s448
      %p450 = scmp.eq.s32.totalorder %s41, 0
      %p451 = por %p449, %p450
      %s453 = sadd.s32 %s452, 1
      %p456 = scmp.eq.s32.totalorder %s35, 1
      %p457 = scmp.ne.s32.totalorder %s452, %s454
      %p458 = scmp.eq.s32.totalorder %s35, 0
      %p459 = por %p457, %p458
      %p460 = scmp.ne.s32.totalorder %s452, %s454
      %p461 = scmp.eq.s32.totalorder %s40, 1
      %p462 = por %p460, %p461
      %p463 = scmp.ne.s32.totalorder %s454, %s455
      %p464 = scmp.eq.s32.totalorder %s40, 0
      %p465 = por %p463, %p464
      %p466 = scmp.ne.s32.totalorder %s454, %s455
      %p467 = scmp.eq.s32.totalorder %s41, 1
      %p468 = por %p466, %p467
      %p470 = scmp.ne.s32.totalorder %s455, %s469
      %p471 = scmp.eq.s32.totalorder %s41, 0
      %p472 = por %p470, %p471
      %s474 = sadd.s32 %s473, 1
      %p477 = scmp.eq.s32.totalorder %s35, 1
      %p478 = scmp.ne.s32.totalorder %s473, %s475
      %p479 = scmp.eq.s32.totalorder %s35, 0
      %p480 = por %p478, %p479
      %p481 = scmp.ne.s32.totalorder %s473, %s475
      %p482 = scmp.eq.s32.totalorder %s40, 1
      %p483 = por %p481, %p482
      %p484 = scmp.ne.s32.totalorder %s475, %s476
      %p485 = scmp.eq.s32.totalorder %s40, 0
      %p486 = por %p484, %p485
      %p487 = scmp.ne.s32.totalorder %s475, %s476
      %p488 = scmp.eq.s32.totalorder %s41, 1
      %p489 = por %p487, %p488
      %p491 = scmp.ne.s32.totalorder %s476, %s490
      %p492 = scmp.eq.s32.totalorder %s41, 0
      %p493 = por %p491, %p492
      %s495 = sadd.s32 %s494, 1
      %p498 = scmp.eq.s32.totalorder %s35, 1
      %p499 = scmp.ne.s32.totalorder %s494, %s496
      %p500 = scmp.eq.s32.totalorder %s35, 0
      %p501 = por %p499, %p500
      %p502 = scmp.ne.s32.totalorder %s494, %s496
      %p503 = scmp.eq.s32.totalorder %s40, 1
      %p504 = por %p502, %p503
      %p505 = scmp.ne.s32.totalorder %s496, %s497
      %p506 = scmp.eq.s32.totalorder %s40, 0
      %p507 = por %p505, %p506
      %p508 = scmp.ne.s32.totalorder %s496, %s497
      %p509 = scmp.eq.s32.totalorder %s41, 1
      %p510 = por %p508, %p509
      %p512 = scmp.ne.s32.totalorder %s497, %s511
      %p513 = scmp.eq.s32.totalorder %s41, 0
      %p514 = por %p512, %p513
      %s515 = ssub.s32 %s35, %s42
      %p516 = scmp.eq.s32.totalorder %s515, 0
      %s518 = sadd.s32 %s517, 1
      %s519 = scalar_select %p516, %s517, %s518
      %p522 = pneg %p516
      %p523 = scmp.eq.s32.totalorder %s35, 1
      %p524 = por %p522, %p523
      %p525 = scmp.ne.s32.totalorder %s517, %s520
      %p526 = scmp.eq.s32.totalorder %s35, 0
      %p527 = por %p525, %p526
      %p528 = scmp.ne.s32.totalorder %s517, %s520
      %p529 = scmp.eq.s32.totalorder %s40, 1
      %p530 = por %p528, %p529
      %p531 = scmp.ne.s32.totalorder %s520, %s521
      %p532 = scmp.eq.s32.totalorder %s40, 0
      %p533 = por %p531, %p532
      %p534 = scmp.ne.s32.totalorder %s520, %s521
      %p535 = scmp.eq.s32.totalorder %s41, 1
      %p536 = por %p534, %p535
      %p538 = scmp.ne.s32.totalorder %s521, %s537
      %p539 = scmp.eq.s32.totalorder %s41, 0
      %p540 = por %p538, %p539
      %p541 = scmp.le.s32.totalorder 1, %s35
      %p542 = scmp.lt.s32.totalorder %s35, 3
      %p543 = pnand %p541, %p542
      %p544 = pneg %p543
      // Predicated region
      $region9: #{bert_classifier_forward.1} parent=5 // pred_check
        _
      $region10: #{bert_classifier_forward.1} parent=5 // pred_check_branch
        %546 = sbr.rel (%p543) target = $region12
      $region11: #{bert_classifier_forward.1} parent=5 // pred_region
        %s547 = ssub.s32 %s35, 1
        // Predicated region
        $region13: #{bert_classifier_forward.1} parent=11 // pred_check
          %p548 = pneg %p108
        $region14: #{bert_classifier_forward.1} parent=11 // pred_check_branch
          %550 = sbr.rel (%p548) target = $region16
        $region15: #{bert_classifier_forward.1} parent=11 // pred_region
          _
        $region16: #{bert_classifier_forward.1} parent=11 // pred_fallthru
          _
        // Predicated region
        $region17: #{bert_classifier_forward.1} parent=11 // pred_check
          %p551 = pneg %p129
        $region18: #{bert_classifier_forward.1} parent=11 // pred_check_branch
          %553 = sbr.rel (%p551) target = $region20
        $region19: #{bert_classifier_forward.1} parent=11 // pred_region
          _
        $region20: #{bert_classifier_forward.1} parent=11 // pred_fallthru
          _
        // Predicated region
        $region21: #{bert_classifier_forward.1} parent=11 // pred_check
          %p554 = pneg %p150
        $region22: #{bert_classifier_forward.1} parent=11 // pred_check_branch
          %556 = sbr.rel (%p554) target = $region24
        $region23: #{bert_classifier_forward.1} parent=11 // pred_region
          _
        $region24: #{bert_classifier_forward.1} parent=11 // pred_fallthru
          _
        // Predicated region
        $region25: #{bert_classifier_forward.1} parent=11 // pred_check
          %p557 = pneg %p171
        $region26: #{bert_classifier_forward.1} parent=11 // pred_check_branch
          %559 = sbr.rel (%p557) target = $region28
        $region27: #{bert_classifier_forward.1} parent=11 // pred_region
          _
        $region28: #{bert_classifier_forward.1} parent=11 // pred_fallthru
          _
        // Predicated region
        $region29: #{bert_classifier_forward.1} parent=11 // pred_check
          %p560 = pneg %p192
        $region30: #{bert_classifier_forward.1} parent=11 // pred_check_branch
          %562 = sbr.rel (%p560) target = $region32
        $region31: #{bert_classifier_forward.1} parent=11 // pred_region
          %s564 = ssub.s32 12288, 12288
          %565 = vsyncadd [#allocation3], %s564
          %s566 = sshll.u32 [#allocation2], 4
          %s567 = int_to_ptr.vmem [resolvable:$true] %s566
          %572 = dma.hbm_to_vmem [thread:$0]  %s6, 12288, %s567, [#allocation3], 384, 384, 24
        $region32: #{bert_classifier_forward.1} parent=11 // pred_fallthru
          _
        // Predicated region
        $region33: #{bert_classifier_forward.1} parent=11 // pred_check
          %p573 = pneg %p213
        $region34: #{bert_classifier_forward.1} parent=11 // pred_check_branch
          %575 = sbr.rel (%p573) target = $region36
        $region35: #{bert_classifier_forward.1} parent=11 // pred_region
          _
        $region36: #{bert_classifier_forward.1} parent=11 // pred_fallthru
          _
        // Predicated region
        $region37: #{bert_classifier_forward.1} parent=11 // pred_check
          %p576 = pneg %p234
        $region38: #{bert_classifier_forward.1} parent=11 // pred_check_branch
          %578 = sbr.rel (%p576) target = $region40
        $region39: #{bert_classifier_forward.1} parent=11 // pred_region
          %s580 = ssub.s32 4096, 4096
          %581 = vsyncadd [#allocation6], %s580
          %s582 = sshll.u32 [#allocation5], 4
          %s583 = int_to_ptr.vmem [resolvable:$true] %s582
          %588 = dma.hbm_to_vmem [thread:$0]  %s8, 4096, %s583, [#allocation6], 64, 64, 4
        $region40: #{bert_classifier_forward.1} parent=11 // pred_fallthru
          _
        // Predicated region
        $region41: #{bert_classifier_forward.1} parent=11 // pred_check
          %p589 = pneg %p255
        $region42: #{bert_classifier_forward.1} parent=11 // pred_check_branch
          %591 = sbr.rel (%p589) target = $region44
        $region43: #{bert_classifier_forward.1} parent=11 // pred_region
          _
        $region44: #{bert_classifier_forward.1} parent=11 // pred_fallthru
          _
        // Predicated region
        $region45: #{bert_classifier_forward.1} parent=11 // pred_check
          %p592 = pneg %p276
        $region46: #{bert_classifier_forward.1} parent=11 // pred_check_branch
          %594 = sbr.rel (%p592) target = $region48
        $region47: #{bert_classifier_forward.1} parent=11 // pred_region
          _
        $region48: #{bert_classifier_forward.1} parent=11 // pred_fallthru
          _
        // Predicated region
        $region49: #{bert_classifier_forward.1} parent=11 // pred_check
          %p595 = pneg %p297
        $region50: #{bert_classifier_forward.1} parent=11 // pred_check_branch
          %597 = sbr.rel (%p595) target = $region52
        $region51: #{bert_classifier_forward.1} parent=11 // pred_region
          _
        $region52: #{bert_classifier_forward.1} parent=11 // pred_fallthru
          _
        // Predicated region
        $region53: #{bert_classifier_forward.1} parent=11 // pred_check
          %p598 = pneg %p318
        $region54: #{bert_classifier_forward.1} parent=11 // pred_check_branch
          %600 = sbr.rel (%p598) target = $region56
        $region55: #{bert_classifier_forward.1} parent=11 // pred_region
          %s602 = ssub.s32 4096, 4096
          %603 = vsyncadd [#allocation6], %s602
          %s604 = sshll.u32 [#allocation7], 4
          %s605 = int_to_ptr.vmem [resolvable:$true] %s604
          %610 = dma.hbm_to_vmem [thread:$0]  %s12, 4096, %s605, [#allocation6], 128, 128, 8
        $region56: #{bert_classifier_forward.1} parent=11 // pred_fallthru
          _
        // Predicated region
        $region57: #{bert_classifier_forward.1} parent=11 // pred_check
          %p611 = pneg %p339
        $region58: #{bert_classifier_forward.1} parent=11 // pred_check_branch
          %613 = sbr.rel (%p611) target = $region60
        $region59: #{bert_classifier_forward.1} parent=11 // pred_region
          _
        $region60: #{bert_classifier_forward.1} parent=11 // pred_fallthru
          _
        // Predicated region
        $region61: #{bert_classifier_forward.1} parent=11 // pred_check
          %p614 = pneg %p360
        $region62: #{bert_classifier_forward.1} parent=11 // pred_check_branch
          %616 = sbr.rel (%p614) target = $region64
        $region63: #{bert_classifier_forward.1} parent=11 // pred_region
          %s618 = ssub.s32 4096, 4096
          %619 = vsyncadd [#allocation9], %s618
          %s620 = sshll.u32 [#allocation8], 4
          %s621 = int_to_ptr.vmem [resolvable:$true] %s620
          %626 = dma.hbm_to_vmem [thread:$0]  %s14, 4096, %s621, [#allocation9], 64, 64, 4
        $region64: #{bert_classifier_forward.1} parent=11 // pred_fallthru
          _
        // Predicated region
        $region65: #{bert_classifier_forward.1} parent=11 // pred_check
          %p627 = pneg %p381
        $region66: #{bert_classifier_forward.1} parent=11 // pred_check_branch
          %629 = sbr.rel (%p627) target = $region68
        $region67: #{bert_classifier_forward.1} parent=11 // pred_region
          _
        $region68: #{bert_classifier_forward.1} parent=11 // pred_fallthru
          _
        // Predicated region
        $region69: #{bert_classifier_forward.1} parent=11 // pred_check
          %p630 = pneg %p402
        $region70: #{bert_classifier_forward.1} parent=11 // pred_check_branch
          %632 = sbr.rel (%p630) target = $region72
        $region71: #{bert_classifier_forward.1} parent=11 // pred_region
          _
        $region72: #{bert_classifier_forward.1} parent=11 // pred_fallthru
          _
        // Predicated region
        $region73: #{bert_classifier_forward.1} parent=11 // pred_check
          %p633 = pneg %p423
        $region74: #{bert_classifier_forward.1} parent=11 // pred_check_branch
          %635 = sbr.rel (%p633) target = $region76
        $region75: #{bert_classifier_forward.1} parent=11 // pred_region
          _
        $region76: #{bert_classifier_forward.1} parent=11 // pred_fallthru
          _
        // Predicated region
        $region77: #{bert_classifier_forward.1} parent=11 // pred_check
          %p636 = pneg %p444
        $region78: #{bert_classifier_forward.1} parent=11 // pred_check_branch
          %638 = sbr.rel (%p636) target = $region80
        $region79: #{bert_classifier_forward.1} parent=11 // pred_region
          %s640 = ssub.s32 1024, 1024
          %641 = vsyncadd [#allocation9], %s640
          %s642 = sshll.u32 [#allocation10], 4
          %s643 = int_to_ptr.vmem [resolvable:$true] %s642
          %648 = dma.hbm_to_vmem [thread:$0]  %s18, 1024, %s643, [#allocation9], 64, 64, 4
        $region80: #{bert_classifier_forward.1} parent=11 // pred_fallthru
          _
        // Predicated region
        $region81: #{bert_classifier_forward.1} parent=11 // pred_check
          %p649 = pneg %p465
        $region82: #{bert_classifier_forward.1} parent=11 // pred_check_branch
          %651 = sbr.rel (%p649) target = $region84
        $region83: #{bert_classifier_forward.1} parent=11 // pred_region
          _
        $region84: #{bert_classifier_forward.1} parent=11 // pred_fallthru
          _
        // Predicated region
        $region85: #{bert_classifier_forward.1} parent=11 // pred_check
          %p652 = pneg %p486
        $region86: #{bert_classifier_forward.1} parent=11 // pred_check_branch
          %654 = sbr.rel (%p652) target = $region88
        $region87: #{bert_classifier_forward.1} parent=11 // pred_region
          %s656 = ssub.s32 1024, 1024
          %657 = vsyncadd [#allocation12], %s656
          %s658 = sshll.u32 [#allocation11], 4
          %s659 = int_to_ptr.vmem [resolvable:$true] %s658
          %664 = dma.hbm_to_vmem [thread:$0]  %s20, 1024, %s659, [#allocation12], 64, 64, 4
        $region88: #{bert_classifier_forward.1} parent=11 // pred_fallthru
          _
        // Predicated region
        $region89: #{bert_classifier_forward.1} parent=11 // pred_check
          %p665 = pneg %p507
        $region90: #{bert_classifier_forward.1} parent=11 // pred_check_branch
          %667 = sbr.rel (%p665) target = $region92
        $region91: #{bert_classifier_forward.1} parent=11 // pred_region
          _
        $region92: #{bert_classifier_forward.1} parent=11 // pred_fallthru
          _
      $region12: #{bert_classifier_forward.1} parent=5 // pred_fallthru
        _
      %p668 = scmp.lt.s32.totalorder %s35, 2
      // Predicated region
      $region93: #{bert_classifier_forward.1} parent=5 // pred_check
        %p669 = pneg %p668
      $region94: #{bert_classifier_forward.1} parent=5 // pred_check_branch
        %671 = sbr.rel (%p669) target = $region96
      $region95: #{bert_classifier_forward.1} parent=5 // pred_region
        // Predicated region
        $region97: #{bert_classifier_forward.1} parent=95 // pred_check
          %p672 = pneg %p55
        $region98: #{bert_classifier_forward.1} parent=95 // pred_check_branch
          %674 = sbr.rel (%p672) target = $region100
        $region99: #{bert_classifier_forward.1} parent=95 // pred_region
          %p675 = scmp.lt.s32.totalorder %s35, 1
          %s676 = scalar_select %p675, %s35, 1
          %s677 = smul.addr %s676, 8
          %s678 = scalar_lea.vmem %s0, %s677
        $region100: #{bert_classifier_forward.1} parent=95 // pred_fallthru
          _
        // Predicated region
        $region101: #{bert_classifier_forward.1} parent=95 // pred_check
          %p679 = pneg %p81
        $region102: #{bert_classifier_forward.1} parent=95 // pred_check_branch
          %681 = sbr.rel (%p679) target = $region104
        $region103: #{bert_classifier_forward.1} parent=95 // pred_region
          %p682 = scmp.lt.s32.totalorder %s35, 1
          %s683 = scalar_select %p682, %s35, 1
          %s684 = scalar_lea.vmem %s1, %s683
        $region104: #{bert_classifier_forward.1} parent=95 // pred_fallthru
          _
      $region96: #{bert_classifier_forward.1} parent=5 // pred_fallthru
        _
      %p685 = scmp.le.s32.totalorder 1, %s35
      %p686 = scmp.lt.s32.totalorder %s35, 3
      %p687 = pnand %p685, %p686
      %p688 = pneg %p687
      // Predicated region
      $region105: #{bert_classifier_forward.1} parent=5 // pred_check
        _
      $region106: #{bert_classifier_forward.1} parent=5 // pred_check_branch
        %690 = sbr.rel (%p687) target = $region108
      $region107: #{bert_classifier_forward.1} parent=5 // pred_region
        %s691 = ssub.s32 %s35, 1
        // Predicated region
        $region109: #{bert_classifier_forward.1} parent=107 // pred_check
          %p692 = pneg %p192
        $region110: #{bert_classifier_forward.1} parent=107 // pred_check_branch
          %694 = sbr.rel (%p692) target = $region112
        $region111: #{bert_classifier_forward.1} parent=107 // pred_region
          %695 = dma.done [#allocation3], 12288
        $region112: #{bert_classifier_forward.1} parent=107 // pred_fallthru
          _
        // Predicated region
        $region113: #{bert_classifier_forward.1} parent=107 // pred_check
          %p696 = pneg %p234
        $region114: #{bert_classifier_forward.1} parent=107 // pred_check_branch
          %698 = sbr.rel (%p696) target = $region116
        $region115: #{bert_classifier_forward.1} parent=107 // pred_region
          %699 = dma.done [#allocation6], 4096
        $region116: #{bert_classifier_forward.1} parent=107 // pred_fallthru
          _
        // Predicated region
        $region117: #{bert_classifier_forward.1} parent=107 // pred_check
          %p700 = pneg %p318
        $region118: #{bert_classifier_forward.1} parent=107 // pred_check_branch
          %702 = sbr.rel (%p700) target = $region120
        $region119: #{bert_classifier_forward.1} parent=107 // pred_region
          %703 = dma.done [#allocation6], 4096
        $region120: #{bert_classifier_forward.1} parent=107 // pred_fallthru
          _
        // Predicated region
        $region121: #{bert_classifier_forward.1} parent=107 // pred_check
          %p704 = pneg %p360
        $region122: #{bert_classifier_forward.1} parent=107 // pred_check_branch
          %706 = sbr.rel (%p704) target = $region124
        $region123: #{bert_classifier_forward.1} parent=107 // pred_region
          %707 = dma.done [#allocation9], 4096
        $region124: #{bert_classifier_forward.1} parent=107 // pred_fallthru
          _
        // Predicated region
        $region125: #{bert_classifier_forward.1} parent=107 // pred_check
          %p708 = pneg %p444
        $region126: #{bert_classifier_forward.1} parent=107 // pred_check_branch
          %710 = sbr.rel (%p708) target = $region128
        $region127: #{bert_classifier_forward.1} parent=107 // pred_region
          %711 = dma.done [#allocation9], 1024
        $region128: #{bert_classifier_forward.1} parent=107 // pred_fallthru
          _
        // Predicated region
        $region129: #{bert_classifier_forward.1} parent=107 // pred_check
          %p712 = pneg %p486
        $region130: #{bert_classifier_forward.1} parent=107 // pred_check_branch
          %714 = sbr.rel (%p712) target = $region132
        $region131: #{bert_classifier_forward.1} parent=107 // pred_region
          %715 = dma.done [#allocation12], 1024
        $region132: #{bert_classifier_forward.1} parent=107 // pred_fallthru
          _
        %p716 = scmp.lt.s32.totalorder %s40, 1
        %s717 = scalar_select %p716, %s40, 1
        %s718 = smul.addr %s717, 8
        %s719 = scalar_lea.vmem %s0, %s718
        %p720 = pneg %p61
        %p721 = pneg %p58
        %p722 = scmp.lt.s32.totalorder %s40, 1
        %s723 = scalar_select %p722, %s40, 1
        %s724 = scalar_lea.vmem %s1, %s723
        %p725 = pneg %p87
        %p726 = pneg %p84
        %p727 = pneg %p108
        %p728 = pneg %p105
        %p729 = pneg %p129
        %p730 = pneg %p126
        %p731 = pneg %p150
        %p732 = pneg %p147
        %p733 = pneg %p171
        %p734 = pneg %p168
        %p735 = pneg %p192
        %p736 = pneg %p189
        %p737 = pneg %p213
        %p738 = pneg %p210
        %p739 = pneg %p234
        %p740 = pneg %p231
        %p741 = pneg %p255
        %p742 = pneg %p252
        %p743 = pneg %p276
        %p744 = pneg %p273
        %p745 = pneg %p297
        %p746 = pneg %p294
        %p747 = pneg %p318
        %p748 = pneg %p315
        %p749 = pneg %p339
        %p750 = pneg %p336
        %p751 = pneg %p360
        %p752 = pneg %p357
        %p753 = pneg %p381
        %p754 = pneg %p378
        %p755 = pneg %p402
        %p756 = pneg %p399
        %p757 = pneg %p423
        %p758 = pneg %p420
        %p759 = pneg %p444
        %p760 = pneg %p441
        %p761 = pneg %p465
        %p762 = pneg %p462
        %p763 = pneg %p486
        %p764 = pneg %p483
        %p765 = pneg %p507
        %p766 = pneg %p504
        %p767 = pneg %p533
        %p768 = pneg %p530
        %s769 = sand.u32 %s520, 1
        %s770 = scalar_lea.sflag [#allocation4], %s769
        %s771 = sand.u32 %s520, 1
        %s772 = scalar_lea.vmem [#allocation13], %s771
        %p773 = scmp.lt.s32.totalorder %s40, 1
        %s774 = scalar_select %p773, %s40, 1
        %s775 = smul.addr %s774, 8
        %s776 = scalar_lea.vmem %s0, %s775
        %p777 = scmp.lt.s32.totalorder %s40, 1
        %s778 = scalar_select %p777, %s40, 1
        %s779 = scalar_lea.vmem %s1, %s778
        %v781 = vld [vmem:[%s776] sm:$0xff]
        %v782 = vlaneseq
        %v783 = vand.u32 %v782, 127
        %784 = vset.pattern.permute.xlu0 0
        %785 = vperm.xlu0 %784, %v781
        %v786 = vpop.permute.xlu0 %785
        %vm787 = vcmp.eq.s32.totalorder %v786, %v783
        %v788 = vsel %vm787, 1, 0
        %v789 = vcvt.s32.f32 %v788
        %v790 = vpack.c.bf16 %v789, %v789
        %v791 = vld [vmem:[%s2] sm:$0xf]
        %v792 = vld [vmem:[%s2 + $0x4] sm:$0xf]
        %v793 = vld [vmem:[%s2 + $0x8] sm:$0xf]
        %v794 = vld [vmem:[%s2 + $0xc] sm:$0xf]
        %v795 = vld [vmem:[%s2 + $0x10] sm:$0xf]
        %v796 = vld [vmem:[%s2 + $0x14] sm:$0xf]
        %v797 = vld [vmem:[%s2 + $0x18] sm:$0xf]
        %v798 = vld [vmem:[%s2 + $0x1c] sm:$0xf]
        %v799 = vld [vmem:[%s2 + $0x20] sm:$0xf]
        %v800 = vld [vmem:[%s2 + $0x24] sm:$0xf]
        %v801 = vld [vmem:[%s2 + $0x28] sm:$0xf]
        %v802 = vld [vmem:[%s2 + $0x2c] sm:$0xf]
        %v803 = vld [vmem:[%s2 + $0x30] sm:$0xf]
        %v804 = vld [vmem:[%s2 + $0x34] sm:$0xf]
        %v805 = vld [vmem:[%s2 + $0x38] sm:$0xf]
        %v806 = vld [vmem:[%s2 + $0x3c] sm:$0xf]
        %v807 = vld [vmem:[%s3] sm:$0xff]
        %v824 = vunpack.c.l.b16 %v791
        %v825 = vunpack.c.l.b16 %v792
        %v826 = vunpack.c.l.b16 %v793
        %v827 = vunpack.c.l.b16 %v794
        %v828 = vunpack.c.l.b16 %v795
        %v829 = vunpack.c.l.b16 %v796
        %v830 = vunpack.c.l.b16 %v797
        %v831 = vunpack.c.l.b16 %v798
        %v832 = vunpack.c.l.b16 %v799
        %v833 = vunpack.c.l.b16 %v800
        %v834 = vunpack.c.l.b16 %v801
        %v835 = vunpack.c.l.b16 %v802
        %v836 = vunpack.c.l.b16 %v803
        %v837 = vunpack.c.l.b16 %v804
        %v838 = vunpack.c.l.b16 %v805
        %v839 = vunpack.c.l.b16 %v806
        %v840 = vpack.c.b16 %v825, %v824
        %v841 = vpack.c.b16 %v827, %v826
        %v842 = vpack.c.b16 %v829, %v828
        %v843 = vpack.c.b16 %v831, %v830
        %v844 = vpack.c.b16 %v833, %v832
        %v845 = vpack.c.b16 %v835, %v834
        %v846 = vpack.c.b16 %v837, %v836
        %v847 = vpack.c.b16 %v839, %v838
        %856 = vmatprep.subr.bf16.mxu0 0
        %857 = vmatpush1.bf16.msra.mxu0 %v840
        %858 = vmatprep.subr.bf16.mxu0 0
        %859 = vmatpush1.bf16.msra.mxu0 %v841
        %860 = vmatprep.subr.bf16.mxu0 0
        %861 = vmatpush1.bf16.msra.mxu0 %v842
        %862 = vmatprep.subr.bf16.mxu0 0
        %863 = vmatpush1.bf16.msra.mxu0 %v843
        %864 = vmatprep.subr.bf16.mxu0 0
        %865 = vmatpush1.bf16.msra.mxu0 %v844
        %866 = vmatprep.subr.bf16.mxu0 0
        %867 = vmatpush1.bf16.msra.mxu0 %v845
        %868 = vmatprep.subr.bf16.mxu0 0
        %869 = vmatpush1.bf16.msra.mxu0 %v846
        %870 = vmatprep.subr.bf16.mxu0 0
        %871 = vmatpush1.bf16.msra.mxu0 %v847
        %872 = vmatprep.subr.bf16.mxu0 0
        %873 = vmatpush1.bf16.msra.mxu0 0
        %874 = vmatprep.subr.bf16.mxu0 0
        %875 = vmatpush1.bf16.msra.mxu0 0
        %876 = vmatprep.subr.bf16.mxu0 0
        %877 = vmatpush1.bf16.msra.mxu0 0
        %878 = vmatprep.subr.bf16.mxu0 0
        %879 = vmatpush1.bf16.msra.mxu0 0
        %880 = vmatprep.subr.bf16.mxu0 0
        %881 = vmatpush1.bf16.msra.mxu0 0
        %882 = vmatprep.subr.bf16.mxu0 0
        %883 = vmatpush1.bf16.msra.mxu0 0
        %884 = vmatprep.subr.bf16.mxu0 0
        %885 = vmatpush1.bf16.msra.mxu0 0
        %886 = vmatprep.subr.bf16.mxu0 0
        %887 = vmatpush1.bf16.msra.mxu0 0
        %888 = vmatprep.mubr.bf16.mxu0 0
        %889 = vmatmul.mubr.bf16.gmra.mrb[0].mxu0 %v790
        %v890 = vpop.f32.mrb[0].mxu0
        %v891 = vadd.f32 %v807, %v890
        %v892 = vpop.f32.mrb[0].mxu0
        %v893 = vpop.f32.mrb[0].mxu0
        %v894 = vpop.f32.mrb[0].mxu0
        %895 = vdwg.mxu0
        %v896 = vld [vmem:[%s4] sm:$0x1]
        %v897 = vld [vmem:[%s5] sm:$0x1]
        %898 = vadd.xlane.f32.xlu0 %v891
        %v899 = vpop.xlane.xlu0 %898
        %v900 = vrcp.pop 128.0
        %v901 = vmul.f32 %v899, %v900
        %v902 = vsub.f32 %v891, %v901
        %v903 = vmul.f32 %v902, %v902
        %904 = vadd.xlane.f32.xlu0 %v903
        %v905 = vpop.xlane.xlu0 %904
        %v906 = vmul.f32 %v905, %v900
        %v907 = vadd.f32 %v906, 1e-12
        %v908 = vrsqrt.pop %v907
        %v909 = vmul.f32 %v902, %v908
        %v911 = vlaneseq
        %v912 = vshrl.u32 %v911, 7
        %v913 = vsub.s32 0, %v912
        %v914 = vrot.slane %v896, %v913
        %v916 = vmul.f32 %v909, %v914
        %v918 = vlaneseq
        %v919 = vshrl.u32 %v918, 7
        %v920 = vsub.s32 0, %v919
        %v921 = vrot.slane %v897, %v920
        %v923 = vadd.f32 %v916, %v921
        %v924 = vld [vmem:[%s779] sm:$0x1]
        %v925 = vcvt.s32.f32 %v924
        %v926 = vsub.f32 1.0, %v925
        %v927 = vmul.f32 %v926, -10000.0
        %v928 = vpack.c.bf16 %v923, %v923
        %v929 = vld [vmem:[#allocation2] sm:$0xff]
        %v930 = vld [vmem:[#allocation2 + $0x8] sm:$0xff]
        %v931 = vld [vmem:[#allocation2 + $0x10] sm:$0xff]
        %v932 = vld [vmem:[#allocation2 + $0x18] sm:$0xff]
        %v933 = vld [vmem:[#allocation2 + $0x20] sm:$0xff]
        %v934 = vld [vmem:[#allocation2 + $0x28] sm:$0xff]
        %v935 = vld [vmem:[#allocation2 + $0x30] sm:$0xff]
        %v936 = vld [vmem:[#allocation2 + $0x38] sm:$0xff]
        %v937 = vld [vmem:[#allocation2 + $0x40] sm:$0xff]
        %v938 = vld [vmem:[#allocation2 + $0x48] sm:$0xff]
        %v939 = vld [vmem:[#allocation2 + $0x50] sm:$0xff]
        %v940 = vld [vmem:[#allocation2 + $0x58] sm:$0xff]
        %v941 = vld [vmem:[#allocation2 + $0x60] sm:$0xff]
        %v942 = vld [vmem:[#allocation2 + $0x68] sm:$0xff]
        %v943 = vld [vmem:[#allocation2 + $0x70] sm:$0xff]
        %v944 = vld [vmem:[#allocation2 + $0x78] sm:$0xff]
        %v945 = vld [vmem:[#allocation2 + $0x80] sm:$0xff]
        %v946 = vld [vmem:[#allocation2 + $0x88] sm:$0xff]
        %v947 = vld [vmem:[#allocation2 + $0x90] sm:$0xff]
        %v948 = vld [vmem:[#allocation2 + $0x98] sm:$0xff]
        %v949 = vld [vmem:[#allocation2 + $0xa0] sm:$0xff]
        %v950 = vld [vmem:[#allocation2 + $0xa8] sm:$0xff]
        %v951 = vld [vmem:[#allocation2 + $0xb0] sm:$0xff]
        %v952 = vld [vmem:[#allocation2 + $0xb8] sm:$0xff]
        %v953 = vld [vmem:[#allocation2 + $0xc0] sm:$0xff]
        %v954 = vld [vmem:[#allocation2 + $0xc8] sm:$0xff]
        %v955 = vld [vmem:[#allocation2 + $0xd0] sm:$0xff]
        %v956 = vld [vmem:[#allocation2 + $0xd8] sm:$0xff]
        %v957 = vld [vmem:[#allocation2 + $0xe0] sm:$0xff]
        %v958 = vld [vmem:[#allocation2 + $0xe8] sm:$0xff]
        %v959 = vld [vmem:[#allocation2 + $0xf0] sm:$0xff]
        %v960 = vld [vmem:[#allocation2 + $0xf8] sm:$0xff]
        %v961 = vld [vmem:[#allocation2 + $0x100] sm:$0xff]
        %v962 = vld [vmem:[#allocation2 + $0x108] sm:$0xff]
        %v963 = vld [vmem:[#allocation2 + $0x110] sm:$0xff]
        %v964 = vld [vmem:[#allocation2 + $0x118] sm:$0xff]
        %v965 = vld [vmem:[#allocation2 + $0x120] sm:$0xff]
        %v966 = vld [vmem:[#allocation2 + $0x128] sm:$0xff]
        %v967 = vld [vmem:[#allocation2 + $0x130] sm:$0xff]
        %v968 = vld [vmem:[#allocation2 + $0x138] sm:$0xff]
        %v969 = vld [vmem:[#allocation2 + $0x140] sm:$0xff]
        %v970 = vld [vmem:[#allocation2 + $0x148] sm:$0xff]
        %v971 = vld [vmem:[#allocation2 + $0x150] sm:$0xff]
        %v972 = vld [vmem:[#allocation2 + $0x158] sm:$0xff]
        %v973 = vld [vmem:[#allocation2 + $0x160] sm:$0xff]
        %v974 = vld [vmem:[#allocation2 + $0x168] sm:$0xff]
        %v975 = vld [vmem:[#allocation2 + $0x170] sm:$0xff]
        %v976 = vld [vmem:[#allocation2 + $0x178] sm:$0xff]
        %v977 = vld [vmem:[%s7] sm:$0x3f]
        %v979 = vlaneseq
        %v980 = vshrl.u32 %v979, 7
        %v981 = vsub.s32 0, %v980
        %v982 = vrot.slane %v977, %v981
        %v983 = vlaneseq
        %v984 = vshrl.u32 %v983, 7
        %v985 = vsub.s32 1, %v984
        %v986 = vrot.slane %v977, %v985
        %v987 = vlaneseq
        %v988 = vshrl.u32 %v987, 7
        %v989 = vsub.s32 2, %v988
        %v990 = vrot.slane %v977, %v989
        %v991 = vlaneseq
        %v992 = vshrl.u32 %v991, 7
        %v993 = vsub.s32 3, %v992
        %v994 = vrot.slane %v977, %v993
        %v995 = vlaneseq
        %v996 = vshrl.u32 %v995, 7
        %v997 = vsub.s32 4, %v996
        %v998 = vrot.slane %v977, %v997
        %v999 = vlaneseq
        %v1000 = vshrl.u32 %v999, 7
        %v1001 = vsub.s32 5, %v1000
        %v1002 = vrot.slane %v977, %v1001
        %v1057 = vunpack.c.l.b16 %v929
        %v1058 = vunpack.c.h.b16 %v929
        %v1059 = vunpack.c.l.b16 %v930
        %v1060 = vunpack.c.h.b16 %v930
        %v1061 = vunpack.c.l.b16 %v931
        %v1062 = vunpack.c.h.b16 %v931
        %v1063 = vunpack.c.l.b16 %v932
        %v1064 = vunpack.c.h.b16 %v932
        %v1065 = vunpack.c.l.b16 %v933
        %v1066 = vunpack.c.h.b16 %v933
        %v1067 = vunpack.c.l.b16 %v934
        %v1068 = vunpack.c.h.b16 %v934
        %v1069 = vunpack.c.l.b16 %v935
        %v1070 = vunpack.c.h.b16 %v935
        %v1071 = vunpack.c.l.b16 %v936
        %v1072 = vunpack.c.h.b16 %v936
        %v1073 = vunpack.c.l.b16 %v937
        %v1074 = vunpack.c.h.b16 %v937
        %v1075 = vunpack.c.l.b16 %v938
        %v1076 = vunpack.c.h.b16 %v938
        %v1077 = vunpack.c.l.b16 %v939
        %v1078 = vunpack.c.h.b16 %v939
        %v1079 = vunpack.c.l.b16 %v940
        %v1080 = vunpack.c.h.b16 %v940
        %v1081 = vunpack.c.l.b16 %v941
        %v1082 = vunpack.c.h.b16 %v941
        %v1083 = vunpack.c.l.b16 %v942
        %v1084 = vunpack.c.h.b16 %v942
        %v1085 = vunpack.c.l.b16 %v943
        %v1086 = vunpack.c.h.b16 %v943
        %v1087 = vunpack.c.l.b16 %v944
        %v1088 = vunpack.c.h.b16 %v944
        %v1089 = vunpack.c.l.b16 %v945
        %v1090 = vunpack.c.h.b16 %v945
        %v1091 = vunpack.c.l.b16 %v946
        %v1092 = vunpack.c.h.b16 %v946
        %v1093 = vunpack.c.l.b16 %v947
        %v1094 = vunpack.c.h.b16 %v947
        %v1095 = vunpack.c.l.b16 %v948
        %v1096 = vunpack.c.h.b16 %v948
        %v1097 = vunpack.c.l.b16 %v949
        %v1098 = vunpack.c.h.b16 %v949
        %v1099 = vunpack.c.l.b16 %v950
        %v1100 = vunpack.c.h.b16 %v950
        %v1101 = vunpack.c.l.b16 %v951
        %v1102 = vunpack.c.h.b16 %v951
        %v1103 = vunpack.c.l.b16 %v952
        %v1104 = vunpack.c.h.b16 %v952
        %v1105 = vunpack.c.l.b16 %v953
        %v1106 = vunpack.c.h.b16 %v953
        %v1107 = vunpack.c.l.b16 %v954
        %v1108 = vunpack.c.h.b16 %v954
        %v1109 = vunpack.c.l.b16 %v955
        %v1110 = vunpack.c.h.b16 %v955
        %v1111 = vunpack.c.l.b16 %v956
        %v1112 = vunpack.c.h.b16 %v956
        %v1113 = vunpack.c.l.b16 %v957
        %v1114 = vunpack.c.h.b16 %v957
        %v1115 = vunpack.c.l.b16 %v958
        %v1116 = vunpack.c.h.b16 %v958
        %v1117 = vunpack.c.l.b16 %v959
        %v1118 = vunpack.c.h.b16 %v959
        %v1119 = vunpack.c.l.b16 %v960
        %v1120 = vunpack.c.h.b16 %v960
        %v1121 = vunpack.c.l.b16 %v961
        %v1122 = vunpack.c.h.b16 %v961
        %v1123 = vunpack.c.l.b16 %v962
        %v1124 = vunpack.c.h.b16 %v962
        %v1125 = vunpack.c.l.b16 %v963
        %v1126 = vunpack.c.h.b16 %v963
        %v1127 = vunpack.c.l.b16 %v964
        %v1128 = vunpack.c.h.b16 %v964
        %v1129 = vunpack.c.l.b16 %v965
        %v1130 = vunpack.c.h.b16 %v965
        %v1131 = vunpack.c.l.b16 %v966
        %v1132 = vunpack.c.h.b16 %v966
        %v1133 = vunpack.c.l.b16 %v967
        %v1134 = vunpack.c.h.b16 %v967
        %v1135 = vunpack.c.l.b16 %v968
        %v1136 = vunpack.c.h.b16 %v968
        %v1137 = vunpack.c.l.b16 %v969
        %v1138 = vunpack.c.h.b16 %v969
        %v1139 = vunpack.c.l.b16 %v970
        %v1140 = vunpack.c.h.b16 %v970
        %v1141 = vunpack.c.l.b16 %v971
        %v1142 = vunpack.c.h.b16 %v971
        %v1143 = vunpack.c.l.b16 %v972
        %v1144 = vunpack.c.h.b16 %v972
        %v1145 = vunpack.c.l.b16 %v973
        %v1146 = vunpack.c.h.b16 %v973
        %v1147 = vunpack.c.l.b16 %v974
        %v1148 = vunpack.c.h.b16 %v974
        %v1149 = vunpack.c.l.b16 %v975
        %v1150 = vunpack.c.h.b16 %v975
        %v1151 = vunpack.c.l.b16 %v976
        %v1152 = vunpack.c.h.b16 %v976
        %v1153 = vpack.c.b16 %v1063, %v1057
        %v1154 = vpack.c.b16 %v1064, %v1058
        %v1155 = vpack.c.b16 %v1065, %v1059
        %v1156 = vpack.c.b16 %v1066, %v1060
        %v1157 = vpack.c.b16 %v1067, %v1061
        %v1158 = vpack.c.b16 %v1068, %v1062
        %v1159 = vpack.c.b16 %v1075, %v1069
        %v1160 = vpack.c.b16 %v1076, %v1070
        %v1161 = vpack.c.b16 %v1077, %v1071
        %v1162 = vpack.c.b16 %v1078, %v1072
        %v1163 = vpack.c.b16 %v1079, %v1073
        %v1164 = vpack.c.b16 %v1080, %v1074
        %v1165 = vpack.c.b16 %v1087, %v1081
        %v1166 = vpack.c.b16 %v1088, %v1082
        %v1167 = vpack.c.b16 %v1089, %v1083
        %v1168 = vpack.c.b16 %v1090, %v1084
        %v1169 = vpack.c.b16 %v1091, %v1085
        %v1170 = vpack.c.b16 %v1092, %v1086
        %v1171 = vpack.c.b16 %v1099, %v1093
        %v1172 = vpack.c.b16 %v1100, %v1094
        %v1173 = vpack.c.b16 %v1101, %v1095
        %v1174 = vpack.c.b16 %v1102, %v1096
        %v1175 = vpack.c.b16 %v1103, %v1097
        %v1176 = vpack.c.b16 %v1104, %v1098
        %v1177 = vpack.c.b16 %v1111, %v1105
        %v1178 = vpack.c.b16 %v1112, %v1106
        %v1179 = vpack.c.b16 %v1113, %v1107
        %v1180 = vpack.c.b16 %v1114, %v1108
        %v1181 = vpack.c.b16 %v1115, %v1109
        %v1182 = vpack.c.b16 %v1116, %v1110
        %v1183 = vpack.c.b16 %v1123, %v1117
        %v1184 = vpack.c.b16 %v1124, %v1118
        %v1185 = vpack.c.b16 %v1125, %v1119
        %v1186 = vpack.c.b16 %v1126, %v1120
        %v1187 = vpack.c.b16 %v1127, %v1121
        %v1188 = vpack.c.b16 %v1128, %v1122
        %v1189 = vpack.c.b16 %v1135, %v1129
        %v1190 = vpack.c.b16 %v1136, %v1130
        %v1191 = vpack.c.b16 %v1137, %v1131
        %v1192 = vpack.c.b16 %v1138, %v1132
        %v1193 = vpack.c.b16 %v1139, %v1133
        %v1194 = vpack.c.b16 %v1140, %v1134
        %v1195 = vpack.c.b16 %v1147, %v1141
        %v1196 = vpack.c.b16 %v1148, %v1142
        %v1197 = vpack.c.b16 %v1149, %v1143
        %v1198 = vpack.c.b16 %v1150, %v1144
        %v1199 = vpack.c.b16 %v1151, %v1145
        %v1200 = vpack.c.b16 %v1152, %v1146
        %1249 = vmatprep.subr.bf16.mxu0 %v1154
        %1250 = vmatpush1.bf16.msra.mxu0 %v1153
        %1251 = vmatprep.subr.bf16.mxu0 %v1160
        %1252 = vmatpush1.bf16.msra.mxu0 %v1159
        %1253 = vmatprep.subr.bf16.mxu0 %v1166
        %1254 = vmatpush1.bf16.msra.mxu0 %v1165
        %1255 = vmatprep.subr.bf16.mxu0 %v1172
        %1256 = vmatpush1.bf16.msra.mxu0 %v1171
        %1257 = vmatprep.subr.bf16.mxu0 %v1178
        %1258 = vmatpush1.bf16.msra.mxu0 %v1177
        %1259 = vmatprep.subr.bf16.mxu0 %v1184
        %1260 = vmatpush1.bf16.msra.mxu0 %v1183
        %1261 = vmatprep.subr.bf16.mxu0 %v1190
        %1262 = vmatpush1.bf16.msra.mxu0 %v1189
        %1263 = vmatprep.subr.bf16.mxu0 %v1196
        %1264 = vmatpush1.bf16.msra.mxu0 %v1195
        %1265 = vmatprep.subr.bf16.mxu0 0
        %1266 = vmatpush1.bf16.msra.mxu0 0
        %1267 = vmatprep.subr.bf16.mxu0 0
        %1268 = vmatpush1.bf16.msra.mxu0 0
        %1269 = vmatprep.subr.bf16.mxu0 0
        %1270 = vmatpush1.bf16.msra.mxu0 0
        %1271 = vmatprep.subr.bf16.mxu0 0
        %1272 = vmatpush1.bf16.msra.mxu0 0
        %1273 = vmatprep.subr.bf16.mxu0 0
        %1274 = vmatpush1.bf16.msra.mxu0 0
        %1275 = vmatprep.subr.bf16.mxu0 0
        %1276 = vmatpush1.bf16.msra.mxu0 0
        %1277 = vmatprep.subr.bf16.mxu0 0
        %1278 = vmatpush1.bf16.msra.mxu0 0
        %1279 = vmatprep.subr.bf16.mxu0 0
        %1280 = vmatpush1.bf16.msra.mxu0 0
        %1281 = vmatprep.mubr.bf16.mxu0 0
        %1282 = vmatmul.mubr.bf16.gmra.mrb[0].mxu0 %v928
        %v1283 = vpop.f32.mrb[0].mxu0
        %v1284 = vadd.f32 %v982, %v1283
        %v1285 = vpop.f32.mrb[0].mxu0
        %v1286 = vadd.f32 %v986, %v1285
        %v1287 = vpop.f32.mrb[0].mxu0
        %v1288 = vpop.f32.mrb[0].mxu0
        %1289 = vdwg.mxu0
        %1290 = vmatprep.subr.bf16.mxu0 %v1156
        %1291 = vmatpush1.bf16.msra.mxu0 %v1155
        %1292 = vmatprep.subr.bf16.mxu0 %v1162
        %1293 = vmatpush1.bf16.msra.mxu0 %v1161
        %1294 = vmatprep.subr.bf16.mxu0 %v1168
        %1295 = vmatpush1.bf16.msra.mxu0 %v1167
        %1296 = vmatprep.subr.bf16.mxu0 %v1174
        %1297 = vmatpush1.bf16.msra.mxu0 %v1173
        %1298 = vmatprep.subr.bf16.mxu0 %v1180
        %1299 = vmatpush1.bf16.msra.mxu0 %v1179
        %1300 = vmatprep.subr.bf16.mxu0 %v1186
        %1301 = vmatpush1.bf16.msra.mxu0 %v1185
        %1302 = vmatprep.subr.bf16.mxu0 %v1192
        %1303 = vmatpush1.bf16.msra.mxu0 %v1191
        %1304 = vmatprep.subr.bf16.mxu0 %v1198
        %1305 = vmatpush1.bf16.msra.mxu0 %v1197
        %1306 = vmatprep.subr.bf16.mxu0 0
        %1307 = vmatpush1.bf16.msra.mxu0 0
        %1308 = vmatprep.subr.bf16.mxu0 0
        %1309 = vmatpush1.bf16.msra.mxu0 0
        %1310 = vmatprep.subr.bf16.mxu0 0
        %1311 = vmatpush1.bf16.msra.mxu0 0
        %1312 = vmatprep.subr.bf16.mxu0 0
        %1313 = vmatpush1.bf16.msra.mxu0 0
        %1314 = vmatprep.subr.bf16.mxu0 0
        %1315 = vmatpush1.bf16.msra.mxu0 0
        %1316 = vmatprep.subr.bf16.mxu0 0
        %1317 = vmatpush1.bf16.msra.mxu0 0
        %1318 = vmatprep.subr.bf16.mxu0 0
        %1319 = vmatpush1.bf16.msra.mxu0 0
        %1320 = vmatprep.subr.bf16.mxu0 0
        %1321 = vmatpush1.bf16.msra.mxu0 0
        %1322 = vmatprep.mubr.bf16.mxu0 0
        %1323 = vmatmul.mubr.bf16.gmra.mrb[0].mxu0 %v928
        %v1324 = vpop.f32.mrb[0].mxu0
        %v1325 = vadd.f32 %v990, %v1324
        %v1326 = vpop.f32.mrb[0].mxu0
        %v1327 = vadd.f32 %v994, %v1326
        %v1328 = vpop.f32.mrb[0].mxu0
        %v1329 = vpop.f32.mrb[0].mxu0
        %1330 = vdwg.mxu0
        %1331 = vmatprep.subr.bf16.mxu0 %v1158
        %1332 = vmatpush1.bf16.msra.mxu0 %v1157
        %1333 = vmatprep.subr.bf16.mxu0 %v1164
        %1334 = vmatpush1.bf16.msra.mxu0 %v1163
        %1335 = vmatprep.subr.bf16.mxu0 %v1170
        %1336 = vmatpush1.bf16.msra.mxu0 %v1169
        %1337 = vmatprep.subr.bf16.mxu0 %v1176
        %1338 = vmatpush1.bf16.msra.mxu0 %v1175
        %1339 = vmatprep.subr.bf16.mxu0 %v1182
        %1340 = vmatpush1.bf16.msra.mxu0 %v1181
        %1341 = vmatprep.subr.bf16.mxu0 %v1188
        %1342 = vmatpush1.bf16.msra.mxu0 %v1187
        %1343 = vmatprep.subr.bf16.mxu0 %v1194
        %1344 = vmatpush1.bf16.msra.mxu0 %v1193
        %1345 = vmatprep.subr.bf16.mxu0 %v1200
        %1346 = vmatpush1.bf16.msra.mxu0 %v1199
        %1347 = vmatprep.subr.bf16.mxu0 0
        %1348 = vmatpush1.bf16.msra.mxu0 0
        %1349 = vmatprep.subr.bf16.mxu0 0
        %1350 = vmatpush1.bf16.msra.mxu0 0
        %1351 = vmatprep.subr.bf16.mxu0 0
        %1352 = vmatpush1.bf16.msra.mxu0 0
        %1353 = vmatprep.subr.bf16.mxu0 0
        %1354 = vmatpush1.bf16.msra.mxu0 0
        %1355 = vmatprep.subr.bf16.mxu0 0
        %1356 = vmatpush1.bf16.msra.mxu0 0
        %1357 = vmatprep.subr.bf16.mxu0 0
        %1358 = vmatpush1.bf16.msra.mxu0 0
        %1359 = vmatprep.subr.bf16.mxu0 0
        %1360 = vmatpush1.bf16.msra.mxu0 0
        %1361 = vmatprep.subr.bf16.mxu0 0
        %1362 = vmatpush1.bf16.msra.mxu0 0
        %1363 = vmatprep.mubr.bf16.mxu0 0
        %1364 = vmatmul.mubr.bf16.gmra.mrb[0].mxu0 %v928
        %v1365 = vpop.f32.mrb[0].mxu0
        %v1366 = vadd.f32 %v998, %v1365
        %v1367 = vpop.f32.mrb[0].mxu0
        %v1368 = vadd.f32 %v1002, %v1367
        %v1369 = vpop.f32.mrb[0].mxu0
        %v1370 = vpop.f32.mrb[0].mxu0
        %1371 = vdwg.mxu0
        %v1372 = vpack.c.bf16 %v1284, %v1284
        %v1373 = vpack.c.bf16 %v1325, %v1325
        %1374 = vmatprep.subr.bf16.mxu0 0
        %1375 = vmatpush1.bf16.xpose.msra.mxu0 %v1373
        %1376 = vmatprep.subr.bf16.mxu0 0
        %1377 = vmatpush1.bf16.xpose.msra.mxu0 0
        %1378 = vmatprep.subr.bf16.mxu0 0
        %1379 = vmatpush1.bf16.xpose.msra.mxu0 0
        %1380 = vmatprep.subr.bf16.mxu0 0
        %1381 = vmatpush1.bf16.xpose.msra.mxu0 0
        %1382 = vmatprep.subr.bf16.mxu0 0
        %1383 = vmatpush1.bf16.xpose.msra.mxu0 0
        %1384 = vmatprep.subr.bf16.mxu0 0
        %1385 = vmatpush1.bf16.xpose.msra.mxu0 0
        %1386 = vmatprep.subr.bf16.mxu0 0
        %1387 = vmatpush1.bf16.xpose.msra.mxu0 0
        %1388 = vmatprep.subr.bf16.mxu0 0
        %1389 = vmatpush1.bf16.xpose.msra.mxu0 0
        %1390 = vmatprep.subr.bf16.mxu0 0
        %1391 = vmatpush1.bf16.xpose.msra.mxu0 0
        %1392 = vmatprep.subr.bf16.mxu0 0
        %1393 = vmatpush1.bf16.xpose.msra.mxu0 0
        %1394 = vmatprep.subr.bf16.mxu0 0
        %1395 = vmatpush1.bf16.xpose.msra.mxu0 0
        %1396 = vmatprep.subr.bf16.mxu0 0
        %1397 = vmatpush1.bf16.xpose.msra.mxu0 0
        %1398 = vmatprep.subr.bf16.mxu0 0
        %1399 = vmatpush1.bf16.xpose.msra.mxu0 0
        %1400 = vmatprep.subr.bf16.mxu0 0
        %1401 = vmatpush1.bf16.xpose.msra.mxu0 0
        %1402 = vmatprep.subr.bf16.mxu0 0
        %1403 = vmatpush1.bf16.xpose.msra.mxu0 0
        %1404 = vmatprep.subr.bf16.mxu0 0
        %1405 = vmatpush1.bf16.xpose.msra.mxu0 0
        %1406 = vmatprep.mubr.bf16.mxu0 0
        %1407 = vmatmul.mubr.bf16.gmra.mrb[0].mxu0 %v1372
        %v1408 = vpop.f32.mrb[0].mxu0
        %v1409 = vadd.f32 0.0, %v1408
        %v1410 = vpop.f32.mrb[0].mxu0
        %v1411 = vpop.f32.mrb[0].mxu0
        %v1412 = vpop.f32.mrb[0].mxu0
        %1413 = vdwg.mxu0
        %v1414 = vmul.f32 %v1409, 0.125
        %v1416 = vlaneseq
        %v1417 = vshrl.u32 %v1416, 7
        %v1418 = vsub.s32 0, %v1417
        %v1419 = vrot.slane %v927, %v1418
        %v1421 = vadd.f32 %v1414, %v1419
        %vm1422 = vcmask 64512
        %v1423 = vsel %vm1422, %v1421, -inf
        %1424 = vmax.xlane.f32.xlu0 %v1423
        %v1425 = vpop.xlane.xlu0 %1424
        %v1426 = vsub.f32 %v1421, %v1425
        %v1427 = vmul.f32 %v1426, 1.442695
        %v1428 = vpow.pop %v1427
        %v1429 = vsel %vm1422, %v1428, 0.0
        %1430 = vadd.xlane.f32.xlu0 %v1429
        %v1431 = vpop.xlane.xlu0 %1430
        %v1432 = vrcp.pop %v1431
        %v1433 = vmul.f32 %v1428, %v1432
        %v1434 = vpack.c.bf16 %v1433, %v1433
        %v1435 = vpack.c.bf16 %v1366, %v1366
        %v1437 = vsel %vm1422, %v1434, 0
        %vm1439 = vcmask 1043456
        %v1441 = vsel %vm1439, %v1435, 0
        %1443 = vmatprep.subr.bf16.mxu0 0
        %1444 = vmatpush1.bf16.msra.mxu0 %v1441
        %1445 = vmatprep.subr.bf16.mxu0 0
        %1446 = vmatpush1.bf16.msra.mxu0 0
        %1447 = vmatprep.subr.bf16.mxu0 0
        %1448 = vmatpush1.bf16.msra.mxu0 0
        %1449 = vmatprep.subr.bf16.mxu0 0
        %1450 = vmatpush1.bf16.msra.mxu0 0
        %1451 = vmatprep.subr.bf16.mxu0 0
        %1452 = vmatpush1.bf16.msra.mxu0 0
        %1453 = vmatprep.subr.bf16.mxu0 0
        %1454 = vmatpush1.bf16.msra.mxu0 0
        %1455 = vmatprep.subr.bf16.mxu0 0
        %1456 = vmatpush1.bf16.msra.mxu0 0
        %1457 = vmatprep.subr.bf16.mxu0 0
        %1458 = vmatpush1.bf16.msra.mxu0 0
        %1459 = vmatprep.subr.bf16.mxu0 0
        %1460 = vmatpush1.bf16.msra.mxu0 0
        %1461 = vmatprep.subr.bf16.mxu0 0
        %1462 = vmatpush1.bf16.msra.mxu0 0
        %1463 = vmatprep.subr.bf16.mxu0 0
        %1464 = vmatpush1.bf16.msra.mxu0 0
        %1465 = vmatprep.subr.bf16.mxu0 0
        %1466 = vmatpush1.bf16.msra.mxu0 0
        %1467 = vmatprep.subr.bf16.mxu0 0
        %1468 = vmatpush1.bf16.msra.mxu0 0
        %1469 = vmatprep.subr.bf16.mxu0 0
        %1470 = vmatpush1.bf16.msra.mxu0 0
        %1471 = vmatprep.subr.bf16.mxu0 0
        %1472 = vmatpush1.bf16.msra.mxu0 0
        %1473 = vmatprep.subr.bf16.mxu0 0
        %1474 = vmatpush1.bf16.msra.mxu0 0
        %1475 = vmatprep.mubr.bf16.mxu0 0
        %1476 = vmatmul.mubr.bf16.gmra.mrb[0].mxu0 %v1437
        %v1477 = vpop.f32.mrb[0].mxu0
        %v1478 = vadd.f32 0.0, %v1477
        %v1479 = vpop.f32.mrb[0].mxu0
        %v1480 = vpop.f32.mrb[0].mxu0
        %v1481 = vpop.f32.mrb[0].mxu0
        %1482 = vdwg.mxu0
        %v1483 = vpack.c.bf16 %v1478, %v1478
        %v1484 = vld [vmem:[#allocation5] sm:$0xf]
        %v1485 = vld [vmem:[#allocation5 + $0x4] sm:$0xf]
        %v1486 = vld [vmem:[#allocation5 + $0x8] sm:$0xf]
        %v1487 = vld [vmem:[#allocation5 + $0xc] sm:$0xf]
        %v1488 = vld [vmem:[#allocation5 + $0x10] sm:$0xf]
        %v1489 = vld [vmem:[#allocation5 + $0x14] sm:$0xf]
        %v1490 = vld [vmem:[#allocation5 + $0x18] sm:$0xf]
        %v1491 = vld [vmem:[#allocation5 + $0x1c] sm:$0xf]
        %v1492 = vld [vmem:[#allocation5 + $0x20] sm:$0xf]
        %v1493 = vld [vmem:[#allocation5 + $0x24] sm:$0xf]
        %v1494 = vld [vmem:[#allocation5 + $0x28] sm:$0xf]
        %v1495 = vld [vmem:[#allocation5 + $0x2c] sm:$0xf]
        %v1496 = vld [vmem:[#allocation5 + $0x30] sm:$0xf]
        %v1497 = vld [vmem:[#allocation5 + $0x34] sm:$0xf]
        %v1498 = vld [vmem:[#allocation5 + $0x38] sm:$0xf]
        %v1499 = vld [vmem:[#allocation5 + $0x3c] sm:$0xf]
        %v1500 = vpack.c.bf16 %v1286, %v1286
        %v1501 = vpack.c.bf16 %v1327, %v1327
        %1502 = vmatprep.subr.bf16.mxu0 0
        %1503 = vmatpush1.bf16.xpose.msra.mxu0 %v1501
        %1504 = vmatprep.subr.bf16.mxu0 0
        %1505 = vmatpush1.bf16.xpose.msra.mxu0 0
        %1506 = vmatprep.subr.bf16.mxu0 0
        %1507 = vmatpush1.bf16.xpose.msra.mxu0 0
        %1508 = vmatprep.subr.bf16.mxu0 0
        %1509 = vmatpush1.bf16.xpose.msra.mxu0 0
        %1510 = vmatprep.subr.bf16.mxu0 0
        %1511 = vmatpush1.bf16.xpose.msra.mxu0 0
        %1512 = vmatprep.subr.bf16.mxu0 0
        %1513 = vmatpush1.bf16.xpose.msra.mxu0 0
        %1514 = vmatprep.subr.bf16.mxu0 0
        %1515 = vmatpush1.bf16.xpose.msra.mxu0 0
        %1516 = vmatprep.subr.bf16.mxu0 0
        %1517 = vmatpush1.bf16.xpose.msra.mxu0 0
        %1518 = vmatprep.subr.bf16.mxu0 0
        %1519 = vmatpush1.bf16.xpose.msra.mxu0 0
        %1520 = vmatprep.subr.bf16.mxu0 0
        %1521 = vmatpush1.bf16.xpose.msra.mxu0 0
        %1522 = vmatprep.subr.bf16.mxu0 0
        %1523 = vmatpush1.bf16.xpose.msra.mxu0 0
        %1524 = vmatprep.subr.bf16.mxu0 0
        %1525 = vmatpush1.bf16.xpose.msra.mxu0 0
        %1526 = vmatprep.subr.bf16.mxu0 0
        %1527 = vmatpush1.bf16.xpose.msra.mxu0 0
        %1528 = vmatprep.subr.bf16.mxu0 0
        %1529 = vmatpush1.bf16.xpose.msra.mxu0 0
        %1530 = vmatprep.subr.bf16.mxu0 0
        %1531 = vmatpush1.bf16.xpose.msra.mxu0 0
        %1532 = vmatprep.subr.bf16.mxu0 0
        %1533 = vmatpush1.bf16.xpose.msra.mxu0 0
        %1534 = vmatprep.mubr.bf16.mxu0 0
        %1535 = vmatmul.mubr.bf16.gmra.mrb[0].mxu0 %v1500
        %v1536 = vpop.f32.mrb[0].mxu0
        %v1537 = vadd.f32 0.0, %v1536
        %v1538 = vpop.f32.mrb[0].mxu0
        %v1539 = vpop.f32.mrb[0].mxu0
        %v1540 = vpop.f32.mrb[0].mxu0
        %1541 = vdwg.mxu0
        %v1542 = vmul.f32 %v1537, 0.125
        %v1543 = vadd.f32 %v1542, %v1419
        %v1544 = vsel %vm1422, %v1543, -inf
        %1545 = vmax.xlane.f32.xlu0 %v1544
        %v1546 = vpop.xlane.xlu0 %1545
        %v1547 = vsub.f32 %v1543, %v1546
        %v1548 = vmul.f32 %v1547, 1.442695
        %v1549 = vpow.pop %v1548
        %v1550 = vsel %vm1422, %v1549, 0.0
        %1551 = vadd.xlane.f32.xlu0 %v1550
        %v1552 = vpop.xlane.xlu0 %1551
        %v1553 = vrcp.pop %v1552
        %v1554 = vmul.f32 %v1549, %v1553
        %v1555 = vpack.c.bf16 %v1554, %v1554
        %v1556 = vpack.c.bf16 %v1368, %v1368
        %v1558 = vsel %vm1422, %v1555, 0
        %v1561 = vsel %vm1439, %v1556, 0
        %1563 = vmatprep.subr.bf16.mxu0 0
        %1564 = vmatpush1.bf16.msra.mxu0 %v1561
        %1565 = vmatprep.subr.bf16.mxu0 0
        %1566 = vmatpush1.bf16.msra.mxu0 0
        %1567 = vmatprep.subr.bf16.mxu0 0
        %1568 = vmatpush1.bf16.msra.mxu0 0
        %1569 = vmatprep.subr.bf16.mxu0 0
        %1570 = vmatpush1.bf16.msra.mxu0 0
        %1571 = vmatprep.subr.bf16.mxu0 0
        %1572 = vmatpush1.bf16.msra.mxu0 0
        %1573 = vmatprep.subr.bf16.mxu0 0
        %1574 = vmatpush1.bf16.msra.mxu0 0
        %1575 = vmatprep.subr.bf16.mxu0 0
        %1576 = vmatpush1.bf16.msra.mxu0 0
        %1577 = vmatprep.subr.bf16.mxu0 0
        %1578 = vmatpush1.bf16.msra.mxu0 0
        %1579 = vmatprep.subr.bf16.mxu0 0
        %1580 = vmatpush1.bf16.msra.mxu0 0
        %1581 = vmatprep.subr.bf16.mxu0 0
        %1582 = vmatpush1.bf16.msra.mxu0 0
        %1583 = vmatprep.subr.bf16.mxu0 0
        %1584 = vmatpush1.bf16.msra.mxu0 0
        %1585 = vmatprep.subr.bf16.mxu0 0
        %1586 = vmatpush1.bf16.msra.mxu0 0
        %1587 = vmatprep.subr.bf16.mxu0 0
        %1588 = vmatpush1.bf16.msra.mxu0 0
        %1589 = vmatprep.subr.bf16.mxu0 0
        %1590 = vmatpush1.bf16.msra.mxu0 0
        %1591 = vmatprep.subr.bf16.mxu0 0
        %1592 = vmatpush1.bf16.msra.mxu0 0
        %1593 = vmatprep.subr.bf16.mxu0 0
        %1594 = vmatpush1.bf16.msra.mxu0 0
        %1595 = vmatprep.mubr.bf16.mxu0 0
        %1596 = vmatmul.mubr.bf16.gmra.mrb[0].mxu0 %v1558
        %v1597 = vpop.f32.mrb[0].mxu0
        %v1598 = vadd.f32 0.0, %v1597
        %v1599 = vpop.f32.mrb[0].mxu0
        %v1600 = vpop.f32.mrb[0].mxu0
        %v1601 = vpop.f32.mrb[0].mxu0
        %1602 = vdwg.mxu0
        %v1603 = vpack.c.bf16 %v1598, %v1598
        %s1604 = scalar_lea.vmem [#allocation5], 64
        %v1605 = vld [vmem:[%s1604] sm:$0xf]
        %v1606 = vld [vmem:[%s1604 + $0x4] sm:$0xf]
        %v1607 = vld [vmem:[%s1604 + $0x8] sm:$0xf]
        %v1608 = vld [vmem:[%s1604 + $0xc] sm:$0xf]
        %v1609 = vld [vmem:[%s1604 + $0x10] sm:$0xf]
        %v1610 = vld [vmem:[%s1604 + $0x14] sm:$0xf]
        %v1611 = vld [vmem:[%s1604 + $0x18] sm:$0xf]
        %v1612 = vld [vmem:[%s1604 + $0x1c] sm:$0xf]
        %v1613 = vld [vmem:[%s1604 + $0x20] sm:$0xf]
        %v1614 = vld [vmem:[%s1604 + $0x24] sm:$0xf]
        %v1615 = vld [vmem:[%s1604 + $0x28] sm:$0xf]
        %v1616 = vld [vmem:[%s1604 + $0x2c] sm:$0xf]
        %v1617 = vld [vmem:[%s1604 + $0x30] sm:$0xf]
        %v1618 = vld [vmem:[%s1604 + $0x34] sm:$0xf]
        %v1619 = vld [vmem:[%s1604 + $0x38] sm:$0xf]
        %v1620 = vld [vmem:[%s1604 + $0x3c] sm:$0xf]
        %v1637 = vunpack.c.l.b16 %v1605
        %v1638 = vunpack.c.l.b16 %v1606
        %v1639 = vunpack.c.l.b16 %v1607
        %v1640 = vunpack.c.l.b16 %v1608
        %v1641 = vunpack.c.l.b16 %v1609
        %v1642 = vunpack.c.l.b16 %v1610
        %v1643 = vunpack.c.l.b16 %v1611
        %v1644 = vunpack.c.l.b16 %v1612
        %v1645 = vunpack.c.l.b16 %v1613
        %v1646 = vunpack.c.l.b16 %v1614
        %v1647 = vunpack.c.l.b16 %v1615
        %v1648 = vunpack.c.l.b16 %v1616
        %v1649 = vunpack.c.l.b16 %v1617
        %v1650 = vunpack.c.l.b16 %v1618
        %v1651 = vunpack.c.l.b16 %v1619
        %v1652 = vunpack.c.l.b16 %v1620
        %v1653 = vpack.c.b16 %v1638, %v1637
        %v1654 = vpack.c.b16 %v1640, %v1639
        %v1655 = vpack.c.b16 %v1642, %v1641
        %v1656 = vpack.c.b16 %v1644, %v1643
        %v1657 = vpack.c.b16 %v1646, %v1645
        %v1658 = vpack.c.b16 %v1648, %v1647
        %v1659 = vpack.c.b16 %v1650, %v1649
        %v1660 = vpack.c.b16 %v1652, %v1651
        %1669 = vmatprep.subr.bf16.mxu0 0
        %1670 = vmatpush1.bf16.msra.mxu0 %v1653
        %1671 = vmatprep.subr.bf16.mxu0 0
        %1672 = vmatpush1.bf16.msra.mxu0 %v1654
        %1673 = vmatprep.subr.bf16.mxu0 0
        %1674 = vmatpush1.bf16.msra.mxu0 %v1655
        %1675 = vmatprep.subr.bf16.mxu0 0
        %1676 = vmatpush1.bf16.msra.mxu0 %v1656
        %1677 = vmatprep.subr.bf16.mxu0 0
        %1678 = vmatpush1.bf16.msra.mxu0 %v1657
        %1679 = vmatprep.subr.bf16.mxu0 0
        %1680 = vmatpush1.bf16.msra.mxu0 %v1658
        %1681 = vmatprep.subr.bf16.mxu0 0
        %1682 = vmatpush1.bf16.msra.mxu0 %v1659
        %1683 = vmatprep.subr.bf16.mxu0 0
        %1684 = vmatpush1.bf16.msra.mxu0 %v1660
        %1685 = vmatprep.subr.bf16.mxu0 0
        %1686 = vmatpush1.bf16.msra.mxu0 0
        %1687 = vmatprep.subr.bf16.mxu0 0
        %1688 = vmatpush1.bf16.msra.mxu0 0
        %1689 = vmatprep.subr.bf16.mxu0 0
        %1690 = vmatpush1.bf16.msra.mxu0 0
        %1691 = vmatprep.subr.bf16.mxu0 0
        %1692 = vmatpush1.bf16.msra.mxu0 0
        %1693 = vmatprep.subr.bf16.mxu0 0
        %1694 = vmatpush1.bf16.msra.mxu0 0
        %1695 = vmatprep.subr.bf16.mxu0 0
        %1696 = vmatpush1.bf16.msra.mxu0 0
        %1697 = vmatprep.subr.bf16.mxu0 0
        %1698 = vmatpush1.bf16.msra.mxu0 0
        %1699 = vmatprep.subr.bf16.mxu0 0
        %1700 = vmatpush1.bf16.msra.mxu0 0
        %1701 = vmatprep.mubr.bf16.mxu0 0
        %1702 = vmatmul.mubr.bf16.gmra.mrb[0].mxu0 %v1603
        %v1703 = vpop.f32.mrb[0].mxu0
        %v1704 = vadd.f32 0.0, %v1703
        %v1705 = vpop.f32.mrb[0].mxu0
        %v1706 = vpop.f32.mrb[0].mxu0
        %v1707 = vpop.f32.mrb[0].mxu0
        %1708 = vdwg.mxu0
        %v1725 = vunpack.c.l.b16 %v1484
        %v1726 = vunpack.c.l.b16 %v1485
        %v1727 = vunpack.c.l.b16 %v1486
        %v1728 = vunpack.c.l.b16 %v1487
        %v1729 = vunpack.c.l.b16 %v1488
        %v1730 = vunpack.c.l.b16 %v1489
        %v1731 = vunpack.c.l.b16 %v1490
        %v1732 = vunpack.c.l.b16 %v1491
        %v1733 = vunpack.c.l.b16 %v1492
        %v1734 = vunpack.c.l.b16 %v1493
        %v1735 = vunpack.c.l.b16 %v1494
        %v1736 = vunpack.c.l.b16 %v1495
        %v1737 = vunpack.c.l.b16 %v1496
        %v1738 = vunpack.c.l.b16 %v1497
        %v1739 = vunpack.c.l.b16 %v1498
        %v1740 = vunpack.c.l.b16 %v1499
        %v1741 = vpack.c.b16 %v1726, %v1725
        %v1742 = vpack.c.b16 %v1728, %v1727
        %v1743 = vpack.c.b16 %v1730, %v1729
        %v1744 = vpack.c.b16 %v1732, %v1731
        %v1745 = vpack.c.b16 %v1734, %v1733
        %v1746 = vpack.c.b16 %v1736, %v1735
        %v1747 = vpack.c.b16 %v1738, %v1737
        %v1748 = vpack.c.b16 %v1740, %v1739
        %1757 = vmatprep.subr.bf16.mxu0 0
        %1758 = vmatpush1.bf16.msra.mxu0 %v1741
        %1759 = vmatprep.subr.bf16.mxu0 0
        %1760 = vmatpush1.bf16.msra.mxu0 %v1742
        %1761 = vmatprep.subr.bf16.mxu0 0
        %1762 = vmatpush1.bf16.msra.mxu0 %v1743
        %1763 = vmatprep.subr.bf16.mxu0 0
        %1764 = vmatpush1.bf16.msra.mxu0 %v1744
        %1765 = vmatprep.subr.bf16.mxu0 0
        %1766 = vmatpush1.bf16.msra.mxu0 %v1745
        %1767 = vmatprep.subr.bf16.mxu0 0
        %1768 = vmatpush1.bf16.msra.mxu0 %v1746
        %1769 = vmatprep.subr.bf16.mxu0 0
        %1770 = vmatpush1.bf16.msra.mxu0 %v1747
        %1771 = vmatprep.subr.bf16.mxu0 0
        %1772 = vmatpush1.bf16.msra.mxu0 %v1748
        %1773 = vmatprep.subr.bf16.mxu0 0
        %1774 = vmatpush1.bf16.msra.mxu0 0
        %1775 = vmatprep.subr.bf16.mxu0 0
        %1776 = vmatpush1.bf16.msra.mxu0 0
        %1777 = vmatprep.subr.bf16.mxu0 0
        %1778 = vmatpush1.bf16.msra.mxu0 0
        %1779 = vmatprep.subr.bf16.mxu0 0
        %1780 = vmatpush1.bf16.msra.mxu0 0
        %1781 = vmatprep.subr.bf16.mxu0 0
        %1782 = vmatpush1.bf16.msra.mxu0 0
        %1783 = vmatprep.subr.bf16.mxu0 0
        %1784 = vmatpush1.bf16.msra.mxu0 0
        %1785 = vmatprep.subr.bf16.mxu0 0
        %1786 = vmatpush1.bf16.msra.mxu0 0
        %1787 = vmatprep.subr.bf16.mxu0 0
        %1788 = vmatpush1.bf16.msra.mxu0 0
        %1789 = vmatprep.mubr.bf16.mxu0 0
        %1790 = vmatmul.mubr.bf16.gmra.mrb[0].mxu0 %v1483
        %v1791 = vpop.f32.mrb[0].mxu0
        %v1792 = vadd.f32 %v1704, %v1791
        %v1793 = vpop.f32.mrb[0].mxu0
        %v1794 = vpop.f32.mrb[0].mxu0
        %v1795 = vpop.f32.mrb[0].mxu0
        %1796 = vdwg.mxu0
        %v1797 = vld [vmem:[%s9] sm:$0x1]
        %v1799 = vlaneseq
        %v1800 = vshrl.u32 %v1799, 7
        %v1801 = vsub.s32 0, %v1800
        %v1802 = vrot.slane %v1797, %v1801
        %v1804 = vadd.f32 %v1792, %v1802
        %v1805 = vadd.f32 %v1804, %v923
        %v1806 = vld [vmem:[%s10] sm:$0x1]
        %v1807 = vld [vmem:[%s11] sm:$0x1]
        %1808 = vadd.xlane.f32.xlu0 %v1805
        %v1809 = vpop.xlane.xlu0 %1808
        %v1810 = vmul.f32 %v1809, %v900
        %v1811 = vsub.f32 %v1805, %v1810
        %v1812 = vmul.f32 %v1811, %v1811
        %1813 = vadd.xlane.f32.xlu0 %v1812
        %v1814 = vpop.xlane.xlu0 %1813
        %v1815 = vmul.f32 %v1814, %v900
        %v1816 = vadd.f32 %v1815, 1e-12
        %v1817 = vrsqrt.pop %v1816
        %v1818 = vmul.f32 %v1811, %v1817
        %v1820 = vlaneseq
        %v1821 = vshrl.u32 %v1820, 7
        %v1822 = vsub.s32 0, %v1821
        %v1823 = vrot.slane %v1806, %v1822
        %v1825 = vmul.f32 %v1818, %v1823
        %v1827 = vlaneseq
        %v1828 = vshrl.u32 %v1827, 7
        %v1829 = vsub.s32 0, %v1828
        %v1830 = vrot.slane %v1807, %v1829
        %v1832 = vadd.f32 %v1825, %v1830
        %v1833 = vpack.c.bf16 %v1832, %v1832
        %v1834 = vld [vmem:[#allocation7] sm:$0xff]
        %v1835 = vld [vmem:[#allocation7 + $0x8] sm:$0xff]
        %v1836 = vld [vmem:[#allocation7 + $0x10] sm:$0xff]
        %v1837 = vld [vmem:[#allocation7 + $0x18] sm:$0xff]
        %v1838 = vld [vmem:[#allocation7 + $0x20] sm:$0xff]
        %v1839 = vld [vmem:[#allocation7 + $0x28] sm:$0xff]
        %v1840 = vld [vmem:[#allocation7 + $0x30] sm:$0xff]
        %v1841 = vld [vmem:[#allocation7 + $0x38] sm:$0xff]
        %v1842 = vld [vmem:[#allocation7 + $0x40] sm:$0xff]
        %v1843 = vld [vmem:[#allocation7 + $0x48] sm:$0xff]
        %v1844 = vld [vmem:[#allocation7 + $0x50] sm:$0xff]
        %v1845 = vld [vmem:[#allocation7 + $0x58] sm:$0xff]
        %v1846 = vld [vmem:[#allocation7 + $0x60] sm:$0xff]
        %v1847 = vld [vmem:[#allocation7 + $0x68] sm:$0xff]
        %v1848 = vld [vmem:[#allocation7 + $0x70] sm:$0xff]
        %v1849 = vld [vmem:[#allocation7 + $0x78] sm:$0xff]
        %v1850 = vld [vmem:[%s13] sm:$0x3]
        %v1852 = vlaneseq
        %v1853 = vshrl.u32 %v1852, 7
        %v1854 = vsub.s32 0, %v1853
        %v1855 = vrot.slane %v1850, %v1854
        %v1856 = vlaneseq
        %v1857 = vshrl.u32 %v1856, 7
        %v1858 = vsub.s32 1, %v1857
        %v1859 = vrot.slane %v1850, %v1858
        %v1878 = vunpack.c.l.b16 %v1834
        %v1879 = vunpack.c.h.b16 %v1834
        %v1880 = vunpack.c.l.b16 %v1835
        %v1881 = vunpack.c.h.b16 %v1835
        %v1882 = vunpack.c.l.b16 %v1836
        %v1883 = vunpack.c.h.b16 %v1836
        %v1884 = vunpack.c.l.b16 %v1837
        %v1885 = vunpack.c.h.b16 %v1837
        %v1886 = vunpack.c.l.b16 %v1838
        %v1887 = vunpack.c.h.b16 %v1838
        %v1888 = vunpack.c.l.b16 %v1839
        %v1889 = vunpack.c.h.b16 %v1839
        %v1890 = vunpack.c.l.b16 %v1840
        %v1891 = vunpack.c.h.b16 %v1840
        %v1892 = vunpack.c.l.b16 %v1841
        %v1893 = vunpack.c.h.b16 %v1841
        %v1894 = vunpack.c.l.b16 %v1842
        %v1895 = vunpack.c.h.b16 %v1842
        %v1896 = vunpack.c.l.b16 %v1843
        %v1897 = vunpack.c.h.b16 %v1843
        %v1898 = vunpack.c.l.b16 %v1844
        %v1899 = vunpack.c.h.b16 %v1844
        %v1900 = vunpack.c.l.b16 %v1845
        %v1901 = vunpack.c.h.b16 %v1845
        %v1902 = vunpack.c.l.b16 %v1846
        %v1903 = vunpack.c.h.b16 %v1846
        %v1904 = vunpack.c.l.b16 %v1847
        %v1905 = vunpack.c.h.b16 %v1847
        %v1906 = vunpack.c.l.b16 %v1848
        %v1907 = vunpack.c.h.b16 %v1848
        %v1908 = vunpack.c.l.b16 %v1849
        %v1909 = vunpack.c.h.b16 %v1849
        %v1910 = vpack.c.b16 %v1880, %v1878
        %v1911 = vpack.c.b16 %v1881, %v1879
        %v1912 = vpack.c.b16 %v1884, %v1882
        %v1913 = vpack.c.b16 %v1885, %v1883
        %v1914 = vpack.c.b16 %v1888, %v1886
        %v1915 = vpack.c.b16 %v1889, %v1887
        %v1916 = vpack.c.b16 %v1892, %v1890
        %v1917 = vpack.c.b16 %v1893, %v1891
        %v1918 = vpack.c.b16 %v1896, %v1894
        %v1919 = vpack.c.b16 %v1897, %v1895
        %v1920 = vpack.c.b16 %v1900, %v1898
        %v1921 = vpack.c.b16 %v1901, %v1899
        %v1922 = vpack.c.b16 %v1904, %v1902
        %v1923 = vpack.c.b16 %v1905, %v1903
        %v1924 = vpack.c.b16 %v1908, %v1906
        %v1925 = vpack.c.b16 %v1909, %v1907
        %1942 = vmatprep.subr.bf16.mxu0 %v1911
        %1943 = vmatpush1.bf16.msra.mxu0 %v1910
        %1944 = vmatprep.subr.bf16.mxu0 %v1913
        %1945 = vmatpush1.bf16.msra.mxu0 %v1912
        %1946 = vmatprep.subr.bf16.mxu0 %v1915
        %1947 = vmatpush1.bf16.msra.mxu0 %v1914
        %1948 = vmatprep.subr.bf16.mxu0 %v1917
        %1949 = vmatpush1.bf16.msra.mxu0 %v1916
        %1950 = vmatprep.subr.bf16.mxu0 %v1919
        %1951 = vmatpush1.bf16.msra.mxu0 %v1918
        %1952 = vmatprep.subr.bf16.mxu0 %v1921
        %1953 = vmatpush1.bf16.msra.mxu0 %v1920
        %1954 = vmatprep.subr.bf16.mxu0 %v1923
        %1955 = vmatpush1.bf16.msra.mxu0 %v1922
        %1956 = vmatprep.subr.bf16.mxu0 %v1925
        %1957 = vmatpush1.bf16.msra.mxu0 %v1924
        %1958 = vmatprep.subr.bf16.mxu0 0
        %1959 = vmatpush1.bf16.msra.mxu0 0
        %1960 = vmatprep.subr.bf16.mxu0 0
        %1961 = vmatpush1.bf16.msra.mxu0 0
        %1962 = vmatprep.subr.bf16.mxu0 0
        %1963 = vmatpush1.bf16.msra.mxu0 0
        %1964 = vmatprep.subr.bf16.mxu0 0
        %1965 = vmatpush1.bf16.msra.mxu0 0
        %1966 = vmatprep.subr.bf16.mxu0 0
        %1967 = vmatpush1.bf16.msra.mxu0 0
        %1968 = vmatprep.subr.bf16.mxu0 0
        %1969 = vmatpush1.bf16.msra.mxu0 0
        %1970 = vmatprep.subr.bf16.mxu0 0
        %1971 = vmatpush1.bf16.msra.mxu0 0
        %1972 = vmatprep.subr.bf16.mxu0 0
        %1973 = vmatpush1.bf16.msra.mxu0 0
        %1974 = vmatprep.mubr.bf16.mxu0 0
        %1975 = vmatmul.mubr.bf16.gmra.mrb[0].mxu0 %v1833
        %v1976 = vpop.f32.mrb[0].mxu0
        %v1977 = vadd.f32 %v1855, %v1976
        %v1978 = vpop.f32.mrb[0].mxu0
        %v1979 = vadd.f32 %v1859, %v1978
        %v1980 = vpop.f32.mrb[0].mxu0
        %v1981 = vpop.f32.mrb[0].mxu0
        %1982 = vdwg.mxu0
        %v1983 = vmul.f32 %v1977, 0.5
        %v1984 = vmul.f32 %v1979, 0.5
        %v1985 = vmul.f32 %v1977, 0.044715
        %v1986 = vmul.f32 %v1979, 0.044715
        %v1987 = vmul.f32 %v1985, %v1977
        %v1988 = vmul.f32 %v1986, %v1979
        %v1989 = vmul.f32 %v1987, %v1977
        %v1990 = vmul.f32 %v1988, %v1979
        %v1991 = vadd.f32 %v1977, %v1989
        %v1992 = vadd.f32 %v1979, %v1990
        %v1993 = vmul.f32 %v1991, 0.7978846
        %v1994 = vmul.f32 %v1992, 0.7978846
        %v1995 = vtanh.pop %v1993
        %v1996 = vtanh.pop %v1994
        %v1997 = vadd.f32 %v1995, 1.0
        %v1998 = vadd.f32 %v1996, 1.0
        %v1999 = vmul.f32 %v1983, %v1997
        %v2000 = vmul.f32 %v1984, %v1998
        %v2001 = vpack.c.bf16 %v1999, %v1999
        %v2002 = vpack.c.bf16 %v2000, %v2000
        %v2003 = vld [vmem:[#allocation8] sm:$0xf]
        %v2004 = vld [vmem:[#allocation8 + $0x4] sm:$0xf]
        %v2005 = vld [vmem:[#allocation8 + $0x8] sm:$0xf]
        %v2006 = vld [vmem:[#allocation8 + $0xc] sm:$0xf]
        %v2007 = vld [vmem:[#allocation8 + $0x10] sm:$0xf]
        %v2008 = vld [vmem:[#allocation8 + $0x14] sm:$0xf]
        %v2009 = vld [vmem:[#allocation8 + $0x18] sm:$0xf]
        %v2010 = vld [vmem:[#allocation8 + $0x1c] sm:$0xf]
        %v2011 = vld [vmem:[#allocation8 + $0x20] sm:$0xf]
        %v2012 = vld [vmem:[#allocation8 + $0x24] sm:$0xf]
        %v2013 = vld [vmem:[#allocation8 + $0x28] sm:$0xf]
        %v2014 = vld [vmem:[#allocation8 + $0x2c] sm:$0xf]
        %v2015 = vld [vmem:[#allocation8 + $0x30] sm:$0xf]
        %v2016 = vld [vmem:[#allocation8 + $0x34] sm:$0xf]
        %v2017 = vld [vmem:[#allocation8 + $0x38] sm:$0xf]
        %v2018 = vld [vmem:[#allocation8 + $0x3c] sm:$0xf]
        %v2019 = vld [vmem:[#allocation8 + $0x40] sm:$0xf]
        %v2020 = vld [vmem:[#allocation8 + $0x44] sm:$0xf]
        %v2021 = vld [vmem:[#allocation8 + $0x48] sm:$0xf]
        %v2022 = vld [vmem:[#allocation8 + $0x4c] sm:$0xf]
        %v2023 = vld [vmem:[#allocation8 + $0x50] sm:$0xf]
        %v2024 = vld [vmem:[#allocation8 + $0x54] sm:$0xf]
        %v2025 = vld [vmem:[#allocation8 + $0x58] sm:$0xf]
        %v2026 = vld [vmem:[#allocation8 + $0x5c] sm:$0xf]
        %v2027 = vld [vmem:[#allocation8 + $0x60] sm:$0xf]
        %v2028 = vld [vmem:[#allocation8 + $0x64] sm:$0xf]
        %v2029 = vld [vmem:[#allocation8 + $0x68] sm:$0xf]
        %v2030 = vld [vmem:[#allocation8 + $0x6c] sm:$0xf]
        %v2031 = vld [vmem:[#allocation8 + $0x70] sm:$0xf]
        %v2032 = vld [vmem:[#allocation8 + $0x74] sm:$0xf]
        %v2033 = vld [vmem:[#allocation8 + $0x78] sm:$0xf]
        %v2034 = vld [vmem:[#allocation8 + $0x7c] sm:$0xf]
        %v2035 = vld [vmem:[%s15] sm:$0x1]
        %v2037 = vlaneseq
        %v2038 = vshrl.u32 %v2037, 7
        %v2039 = vsub.s32 0, %v2038
        %v2040 = vrot.slane %v2035, %v2039
        %v2074 = vunpack.c.l.b16 %v2003
        %v2075 = vunpack.c.l.b16 %v2004
        %v2076 = vunpack.c.l.b16 %v2005
        %v2077 = vunpack.c.l.b16 %v2006
        %v2078 = vunpack.c.l.b16 %v2007
        %v2079 = vunpack.c.l.b16 %v2008
        %v2080 = vunpack.c.l.b16 %v2009
        %v2081 = vunpack.c.l.b16 %v2010
        %v2082 = vunpack.c.l.b16 %v2011
        %v2083 = vunpack.c.l.b16 %v2012
        %v2084 = vunpack.c.l.b16 %v2013
        %v2085 = vunpack.c.l.b16 %v2014
        %v2086 = vunpack.c.l.b16 %v2015
        %v2087 = vunpack.c.l.b16 %v2016
        %v2088 = vunpack.c.l.b16 %v2017
        %v2089 = vunpack.c.l.b16 %v2018
        %v2090 = vunpack.c.l.b16 %v2019
        %v2091 = vunpack.c.l.b16 %v2020
        %v2092 = vunpack.c.l.b16 %v2021
        %v2093 = vunpack.c.l.b16 %v2022
        %v2094 = vunpack.c.l.b16 %v2023
        %v2095 = vunpack.c.l.b16 %v2024
        %v2096 = vunpack.c.l.b16 %v2025
        %v2097 = vunpack.c.l.b16 %v2026
        %v2098 = vunpack.c.l.b16 %v2027
        %v2099 = vunpack.c.l.b16 %v2028
        %v2100 = vunpack.c.l.b16 %v2029
        %v2101 = vunpack.c.l.b16 %v2030
        %v2102 = vunpack.c.l.b16 %v2031
        %v2103 = vunpack.c.l.b16 %v2032
        %v2104 = vunpack.c.l.b16 %v2033
        %v2105 = vunpack.c.l.b16 %v2034
        %v2106 = vpack.c.b16 %v2075, %v2074
        %v2107 = vpack.c.b16 %v2077, %v2076
        %v2108 = vpack.c.b16 %v2079, %v2078
        %v2109 = vpack.c.b16 %v2081, %v2080
        %v2110 = vpack.c.b16 %v2083, %v2082
        %v2111 = vpack.c.b16 %v2085, %v2084
        %v2112 = vpack.c.b16 %v2087, %v2086
        %v2113 = vpack.c.b16 %v2089, %v2088
        %v2114 = vpack.c.b16 %v2091, %v2090
        %v2115 = vpack.c.b16 %v2093, %v2092
        %v2116 = vpack.c.b16 %v2095, %v2094
        %v2117 = vpack.c.b16 %v2097, %v2096
        %v2118 = vpack.c.b16 %v2099, %v2098
        %v2119 = vpack.c.b16 %v2101, %v2100
        %v2120 = vpack.c.b16 %v2103, %v2102
        %v2121 = vpack.c.b16 %v2105, %v2104
        %2138 = vmatprep.subr.bf16.mxu0 0
        %2139 = vmatpush1.bf16.msra.mxu0 %v2106
        %2140 = vmatprep.subr.bf16.mxu0 0
        %2141 = vmatpush1.bf16.msra.mxu0 %v2107
        %2142 = vmatprep.subr.bf16.mxu0 0
        %2143 = vmatpush1.bf16.msra.mxu0 %v2108
        %2144 = vmatprep.subr.bf16.mxu0 0
        %2145 = vmatpush1.bf16.msra.mxu0 %v2109
        %2146 = vmatprep.subr.bf16.mxu0 0
        %2147 = vmatpush1.bf16.msra.mxu0 %v2110
        %2148 = vmatprep.subr.bf16.mxu0 0
        %2149 = vmatpush1.bf16.msra.mxu0 %v2111
        %2150 = vmatprep.subr.bf16.mxu0 0
        %2151 = vmatpush1.bf16.msra.mxu0 %v2112
        %2152 = vmatprep.subr.bf16.mxu0 0
        %2153 = vmatpush1.bf16.msra.mxu0 %v2113
        %2154 = vmatprep.subr.bf16.mxu0 0
        %2155 = vmatpush1.bf16.msra.mxu0 %v2114
        %2156 = vmatprep.subr.bf16.mxu0 0
        %2157 = vmatpush1.bf16.msra.mxu0 %v2115
        %2158 = vmatprep.subr.bf16.mxu0 0
        %2159 = vmatpush1.bf16.msra.mxu0 %v2116
        %2160 = vmatprep.subr.bf16.mxu0 0
        %2161 = vmatpush1.bf16.msra.mxu0 %v2117
        %2162 = vmatprep.subr.bf16.mxu0 0
        %2163 = vmatpush1.bf16.msra.mxu0 %v2118
        %2164 = vmatprep.subr.bf16.mxu0 0
        %2165 = vmatpush1.bf16.msra.mxu0 %v2119
        %2166 = vmatprep.subr.bf16.mxu0 0
        %2167 = vmatpush1.bf16.msra.mxu0 %v2120
        %2168 = vmatprep.subr.bf16.mxu0 0
        %2169 = vmatpush1.bf16.msra.mxu0 %v2121
        %2170 = vmatprep.mubr.bf16.mxu0 %v2002
        %2171 = vmatmul.mubr.bf16.gmra.mrb[0].mxu0 %v2001
        %v2172 = vpop.f32.mrb[0].mxu0
        %v2173 = vadd.f32 %v2040, %v2172
        %v2174 = vpop.f32.mrb[0].mxu0
        %v2175 = vpop.f32.mrb[0].mxu0
        %v2176 = vpop.f32.mrb[0].mxu0
        %2177 = vdwg.mxu0
        %v2178 = vadd.f32 %v2173, %v1832
        %v2179 = vld [vmem:[%s16] sm:$0x1]
        %v2180 = vld [vmem:[%s17] sm:$0x1]
        %2181 = vadd.xlane.f32.xlu0 %v2178
        %v2182 = vpop.xlane.xlu0 %2181
        %v2183 = vmul.f32 %v2182, %v900
        %v2184 = vsub.f32 %v2178, %v2183
        %v2185 = vmul.f32 %v2184, %v2184
        %2186 = vadd.xlane.f32.xlu0 %v2185
        %v2187 = vpop.xlane.xlu0 %2186
        %v2188 = vmul.f32 %v2187, %v900
        %v2189 = vadd.f32 %v2188, 1e-12
        %v2190 = vrsqrt.pop %v2189
        %v2191 = vmul.f32 %v2184, %v2190
        %v2193 = vlaneseq
        %v2194 = vshrl.u32 %v2193, 7
        %v2195 = vsub.s32 0, %v2194
        %v2196 = vrot.slane %v2179, %v2195
        %v2198 = vmul.f32 %v2191, %v2196
        %v2200 = vlaneseq
        %v2201 = vshrl.u32 %v2200, 7
        %v2202 = vsub.s32 0, %v2201
        %v2203 = vrot.slane %v2180, %v2202
        %v2205 = vadd.f32 %v2198, %v2203
        %v2206 = vpack.c.bf16 %v2205, %v2205
        %s2207 = scalar_lea.vmem [#allocation2], 384
        %v2208 = vld [vmem:[%s2207] sm:$0xff]
        %v2209 = vld [vmem:[%s2207 + $0x8] sm:$0xff]
        %v2210 = vld [vmem:[%s2207 + $0x10] sm:$0xff]
        %v2211 = vld [vmem:[%s2207 + $0x18] sm:$0xff]
        %v2212 = vld [vmem:[%s2207 + $0x20] sm:$0xff]
        %v2213 = vld [vmem:[%s2207 + $0x28] sm:$0xff]
        %v2214 = vld [vmem:[%s2207 + $0x30] sm:$0xff]
        %v2215 = vld [vmem:[%s2207 + $0x38] sm:$0xff]
        %v2216 = vld [vmem:[%s2207 + $0x40] sm:$0xff]
        %v2217 = vld [vmem:[%s2207 + $0x48] sm:$0xff]
        %v2218 = vld [vmem:[%s2207 + $0x50] sm:$0xff]
        %v2219 = vld [vmem:[%s2207 + $0x58] sm:$0xff]
        %v2220 = vld [vmem:[%s2207 + $0x60] sm:$0xff]
        %v2221 = vld [vmem:[%s2207 + $0x68] sm:$0xff]
        %v2222 = vld [vmem:[%s2207 + $0x70] sm:$0xff]
        %v2223 = vld [vmem:[%s2207 + $0x78] sm:$0xff]
        %v2224 = vld [vmem:[%s2207 + $0x80] sm:$0xff]
        %v2225 = vld [vmem:[%s2207 + $0x88] sm:$0xff]
        %v2226 = vld [vmem:[%s2207 + $0x90] sm:$0xff]
        %v2227 = vld [vmem:[%s2207 + $0x98] sm:$0xff]
        %v2228 = vld [vmem:[%s2207 + $0xa0] sm:$0xff]
        %v2229 = vld [vmem:[%s2207 + $0xa8] sm:$0xff]
        %v2230 = vld [vmem:[%s2207 + $0xb0] sm:$0xff]
        %v2231 = vld [vmem:[%s2207 + $0xb8] sm:$0xff]
        %v2232 = vld [vmem:[%s2207 + $0xc0] sm:$0xff]
        %v2233 = vld [vmem:[%s2207 + $0xc8] sm:$0xff]
        %v2234 = vld [vmem:[%s2207 + $0xd0] sm:$0xff]
        %v2235 = vld [vmem:[%s2207 + $0xd8] sm:$0xff]
        %v2236 = vld [vmem:[%s2207 + $0xe0] sm:$0xff]
        %v2237 = vld [vmem:[%s2207 + $0xe8] sm:$0xff]
        %v2238 = vld [vmem:[%s2207 + $0xf0] sm:$0xff]
        %v2239 = vld [vmem:[%s2207 + $0xf8] sm:$0xff]
        %v2240 = vld [vmem:[%s2207 + $0x100] sm:$0xff]
        %v2241 = vld [vmem:[%s2207 + $0x108] sm:$0xff]
        %v2242 = vld [vmem:[%s2207 + $0x110] sm:$0xff]
        %v2243 = vld [vmem:[%s2207 + $0x118] sm:$0xff]
        %v2244 = vld [vmem:[%s2207 + $0x120] sm:$0xff]
        %v2245 = vld [vmem:[%s2207 + $0x128] sm:$0xff]
        %v2246 = vld [vmem:[%s2207 + $0x130] sm:$0xff]
        %v2247 = vld [vmem:[%s2207 + $0x138] sm:$0xff]
        %v2248 = vld [vmem:[%s2207 + $0x140] sm:$0xff]
        %v2249 = vld [vmem:[%s2207 + $0x148] sm:$0xff]
        %v2250 = vld [vmem:[%s2207 + $0x150] sm:$0xff]
        %v2251 = vld [vmem:[%s2207 + $0x158] sm:$0xff]
        %v2252 = vld [vmem:[%s2207 + $0x160] sm:$0xff]
        %v2253 = vld [vmem:[%s2207 + $0x168] sm:$0xff]
        %v2254 = vld [vmem:[%s2207 + $0x170] sm:$0xff]
        %v2255 = vld [vmem:[%s2207 + $0x178] sm:$0xff]
        %s2256 = scalar_lea.vmem %s7, 6
        %v2257 = vld [vmem:[%s2256] sm:$0x3f]
        %v2259 = vlaneseq
        %v2260 = vshrl.u32 %v2259, 7
        %v2261 = vsub.s32 0, %v2260
        %v2262 = vrot.slane %v2257, %v2261
        %v2263 = vlaneseq
        %v2264 = vshrl.u32 %v2263, 7
        %v2265 = vsub.s32 1, %v2264
        %v2266 = vrot.slane %v2257, %v2265
        %v2267 = vlaneseq
        %v2268 = vshrl.u32 %v2267, 7
        %v2269 = vsub.s32 2, %v2268
        %v2270 = vrot.slane %v2257, %v2269
        %v2271 = vlaneseq
        %v2272 = vshrl.u32 %v2271, 7
        %v2273 = vsub.s32 3, %v2272
        %v2274 = vrot.slane %v2257, %v2273
        %v2275 = vlaneseq
        %v2276 = vshrl.u32 %v2275, 7
        %v2277 = vsub.s32 4, %v2276
        %v2278 = vrot.slane %v2257, %v2277
        %v2279 = vlaneseq
        %v2280 = vshrl.u32 %v2279, 7
        %v2281 = vsub.s32 5, %v2280
        %v2282 = vrot.slane %v2257, %v2281
        %v2337 = vunpack.c.l.b16 %v2208
        %v2338 = vunpack.c.h.b16 %v2208
        %v2339 = vunpack.c.l.b16 %v2209
        %v2340 = vunpack.c.h.b16 %v2209
        %v2341 = vunpack.c.l.b16 %v2210
        %v2342 = vunpack.c.h.b16 %v2210
        %v2343 = vunpack.c.l.b16 %v2211
        %v2344 = vunpack.c.h.b16 %v2211
        %v2345 = vunpack.c.l.b16 %v2212
        %v2346 = vunpack.c.h.b16 %v2212
        %v2347 = vunpack.c.l.b16 %v2213
        %v2348 = vunpack.c.h.b16 %v2213
        %v2349 = vunpack.c.l.b16 %v2214
        %v2350 = vunpack.c.h.b16 %v2214
        %v2351 = vunpack.c.l.b16 %v2215
        %v2352 = vunpack.c.h.b16 %v2215
        %v2353 = vunpack.c.l.b16 %v2216
        %v2354 = vunpack.c.h.b16 %v2216
        %v2355 = vunpack.c.l.b16 %v2217
        %v2356 = vunpack.c.h.b16 %v2217
        %v2357 = vunpack.c.l.b16 %v2218
        %v2358 = vunpack.c.h.b16 %v2218
        %v2359 = vunpack.c.l.b16 %v2219
        %v2360 = vunpack.c.h.b16 %v2219
        %v2361 = vunpack.c.l.b16 %v2220
        %v2362 = vunpack.c.h.b16 %v2220
        %v2363 = vunpack.c.l.b16 %v2221
        %v2364 = vunpack.c.h.b16 %v2221
        %v2365 = vunpack.c.l.b16 %v2222
        %v2366 = vunpack.c.h.b16 %v2222
        %v2367 = vunpack.c.l.b16 %v2223
        %v2368 = vunpack.c.h.b16 %v2223
        %v2369 = vunpack.c.l.b16 %v2224
        %v2370 = vunpack.c.h.b16 %v2224
        %v2371 = vunpack.c.l.b16 %v2225
        %v2372 = vunpack.c.h.b16 %v2225
        %v2373 = vunpack.c.l.b16 %v2226
        %v2374 = vunpack.c.h.b16 %v2226
        %v2375 = vunpack.c.l.b16 %v2227
        %v2376 = vunpack.c.h.b16 %v2227
        %v2377 = vunpack.c.l.b16 %v2228
        %v2378 = vunpack.c.h.b16 %v2228
        %v2379 = vunpack.c.l.b16 %v2229
        %v2380 = vunpack.c.h.b16 %v2229
        %v2381 = vunpack.c.l.b16 %v2230
        %v2382 = vunpack.c.h.b16 %v2230
        %v2383 = vunpack.c.l.b16 %v2231
        %v2384 = vunpack.c.h.b16 %v2231
        %v2385 = vunpack.c.l.b16 %v2232
        %v2386 = vunpack.c.h.b16 %v2232
        %v2387 = vunpack.c.l.b16 %v2233
        %v2388 = vunpack.c.h.b16 %v2233
        %v2389 = vunpack.c.l.b16 %v2234
        %v2390 = vunpack.c.h.b16 %v2234
        %v2391 = vunpack.c.l.b16 %v2235
        %v2392 = vunpack.c.h.b16 %v2235
        %v2393 = vunpack.c.l.b16 %v2236
        %v2394 = vunpack.c.h.b16 %v2236
        %v2395 = vunpack.c.l.b16 %v2237
        %v2396 = vunpack.c.h.b16 %v2237
        %v2397 = vunpack.c.l.b16 %v2238
        %v2398 = vunpack.c.h.b16 %v2238
        %v2399 = vunpack.c.l.b16 %v2239
        %v2400 = vunpack.c.h.b16 %v2239
        %v2401 = vunpack.c.l.b16 %v2240
        %v2402 = vunpack.c.h.b16 %v2240
        %v2403 = vunpack.c.l.b16 %v2241
        %v2404 = vunpack.c.h.b16 %v2241
        %v2405 = vunpack.c.l.b16 %v2242
        %v2406 = vunpack.c.h.b16 %v2242
        %v2407 = vunpack.c.l.b16 %v2243
        %v2408 = vunpack.c.h.b16 %v2243
        %v2409 = vunpack.c.l.b16 %v2244
        %v2410 = vunpack.c.h.b16 %v2244
        %v2411 = vunpack.c.l.b16 %v2245
        %v2412 = vunpack.c.h.b16 %v2245
        %v2413 = vunpack.c.l.b16 %v2246
        %v2414 = vunpack.c.h.b16 %v2246
        %v2415 = vunpack.c.l.b16 %v2247
        %v2416 = vunpack.c.h.b16 %v2247
        %v2417 = vunpack.c.l.b16 %v2248
        %v2418 = vunpack.c.h.b16 %v2248
        %v2419 = vunpack.c.l.b16 %v2249
        %v2420 = vunpack.c.h.b16 %v2249
        %v2421 = vunpack.c.l.b16 %v2250
        %v2422 = vunpack.c.h.b16 %v2250
        %v2423 = vunpack.c.l.b16 %v2251
        %v2424 = vunpack.c.h.b16 %v2251
        %v2425 = vunpack.c.l.b16 %v2252
        %v2426 = vunpack.c.h.b16 %v2252
        %v2427 = vunpack.c.l.b16 %v2253
        %v2428 = vunpack.c.h.b16 %v2253
        %v2429 = vunpack.c.l.b16 %v2254
        %v2430 = vunpack.c.h.b16 %v2254
        %v2431 = vunpack.c.l.b16 %v2255
        %v2432 = vunpack.c.h.b16 %v2255
        %v2433 = vpack.c.b16 %v2343, %v2337
        %v2434 = vpack.c.b16 %v2344, %v2338
        %v2435 = vpack.c.b16 %v2345, %v2339
        %v2436 = vpack.c.b16 %v2346, %v2340
        %v2437 = vpack.c.b16 %v2347, %v2341
        %v2438 = vpack.c.b16 %v2348, %v2342
        %v2439 = vpack.c.b16 %v2355, %v2349
        %v2440 = vpack.c.b16 %v2356, %v2350
        %v2441 = vpack.c.b16 %v2357, %v2351
        %v2442 = vpack.c.b16 %v2358, %v2352
        %v2443 = vpack.c.b16 %v2359, %v2353
        %v2444 = vpack.c.b16 %v2360, %v2354
        %v2445 = vpack.c.b16 %v2367, %v2361
        %v2446 = vpack.c.b16 %v2368, %v2362
        %v2447 = vpack.c.b16 %v2369, %v2363
        %v2448 = vpack.c.b16 %v2370, %v2364
        %v2449 = vpack.c.b16 %v2371, %v2365
        %v2450 = vpack.c.b16 %v2372, %v2366
        %v2451 = vpack.c.b16 %v2379, %v2373
        %v2452 = vpack.c.b16 %v2380, %v2374
        %v2453 = vpack.c.b16 %v2381, %v2375
        %v2454 = vpack.c.b16 %v2382, %v2376
        %v2455 = vpack.c.b16 %v2383, %v2377
        %v2456 = vpack.c.b16 %v2384, %v2378
        %v2457 = vpack.c.b16 %v2391, %v2385
        %v2458 = vpack.c.b16 %v2392, %v2386
        %v2459 = vpack.c.b16 %v2393, %v2387
        %v2460 = vpack.c.b16 %v2394, %v2388
        %v2461 = vpack.c.b16 %v2395, %v2389
        %v2462 = vpack.c.b16 %v2396, %v2390
        %v2463 = vpack.c.b16 %v2403, %v2397
        %v2464 = vpack.c.b16 %v2404, %v2398
        %v2465 = vpack.c.b16 %v2405, %v2399
        %v2466 = vpack.c.b16 %v2406, %v2400
        %v2467 = vpack.c.b16 %v2407, %v2401
        %v2468 = vpack.c.b16 %v2408, %v2402
        %v2469 = vpack.c.b16 %v2415, %v2409
        %v2470 = vpack.c.b16 %v2416, %v2410
        %v2471 = vpack.c.b16 %v2417, %v2411
        %v2472 = vpack.c.b16 %v2418, %v2412
        %v2473 = vpack.c.b16 %v2419, %v2413
        %v2474 = vpack.c.b16 %v2420, %v2414
        %v2475 = vpack.c.b16 %v2427, %v2421
        %v2476 = vpack.c.b16 %v2428, %v2422
        %v2477 = vpack.c.b16 %v2429, %v2423
        %v2478 = vpack.c.b16 %v2430, %v2424
        %v2479 = vpack.c.b16 %v2431, %v2425
        %v2480 = vpack.c.b16 %v2432, %v2426
        %2529 = vmatprep.subr.bf16.mxu0 %v2434
        %2530 = vmatpush1.bf16.msra.mxu0 %v2433
        %2531 = vmatprep.subr.bf16.mxu0 %v2440
        %2532 = vmatpush1.bf16.msra.mxu0 %v2439
        %2533 = vmatprep.subr.bf16.mxu0 %v2446
        %2534 = vmatpush1.bf16.msra.mxu0 %v2445
        %2535 = vmatprep.subr.bf16.mxu0 %v2452
        %2536 = vmatpush1.bf16.msra.mxu0 %v2451
        %2537 = vmatprep.subr.bf16.mxu0 %v2458
        %2538 = vmatpush1.bf16.msra.mxu0 %v2457
        %2539 = vmatprep.subr.bf16.mxu0 %v2464
        %2540 = vmatpush1.bf16.msra.mxu0 %v2463
        %2541 = vmatprep.subr.bf16.mxu0 %v2470
        %2542 = vmatpush1.bf16.msra.mxu0 %v2469
        %2543 = vmatprep.subr.bf16.mxu0 %v2476
        %2544 = vmatpush1.bf16.msra.mxu0 %v2475
        %2545 = vmatprep.subr.bf16.mxu0 0
        %2546 = vmatpush1.bf16.msra.mxu0 0
        %2547 = vmatprep.subr.bf16.mxu0 0
        %2548 = vmatpush1.bf16.msra.mxu0 0
        %2549 = vmatprep.subr.bf16.mxu0 0
        %2550 = vmatpush1.bf16.msra.mxu0 0
        %2551 = vmatprep.subr.bf16.mxu0 0
        %2552 = vmatpush1.bf16.msra.mxu0 0
        %2553 = vmatprep.subr.bf16.mxu0 0
        %2554 = vmatpush1.bf16.msra.mxu0 0
        %2555 = vmatprep.subr.bf16.mxu0 0
        %2556 = vmatpush1.bf16.msra.mxu0 0
        %2557 = vmatprep.subr.bf16.mxu0 0
        %2558 = vmatpush1.bf16.msra.mxu0 0
        %2559 = vmatprep.subr.bf16.mxu0 0
        %2560 = vmatpush1.bf16.msra.mxu0 0
        %2561 = vmatprep.mubr.bf16.mxu0 0
        %2562 = vmatmul.mubr.bf16.gmra.mrb[0].mxu0 %v2206
        %v2563 = vpop.f32.mrb[0].mxu0
        %v2564 = vadd.f32 %v2262, %v2563
        %v2565 = vpop.f32.mrb[0].mxu0
        %v2566 = vadd.f32 %v2266, %v2565
        %v2567 = vpop.f32.mrb[0].mxu0
        %v2568 = vpop.f32.mrb[0].mxu0
        %2569 = vdwg.mxu0
        %2570 = vmatprep.subr.bf16.mxu0 %v2436
        %2571 = vmatpush1.bf16.msra.mxu0 %v2435
        %2572 = vmatprep.subr.bf16.mxu0 %v2442
        %2573 = vmatpush1.bf16.msra.mxu0 %v2441
        %2574 = vmatprep.subr.bf16.mxu0 %v2448
        %2575 = vmatpush1.bf16.msra.mxu0 %v2447
        %2576 = vmatprep.subr.bf16.mxu0 %v2454
        %2577 = vmatpush1.bf16.msra.mxu0 %v2453
        %2578 = vmatprep.subr.bf16.mxu0 %v2460
        %2579 = vmatpush1.bf16.msra.mxu0 %v2459
        %2580 = vmatprep.subr.bf16.mxu0 %v2466
        %2581 = vmatpush1.bf16.msra.mxu0 %v2465
        %2582 = vmatprep.subr.bf16.mxu0 %v2472
        %2583 = vmatpush1.bf16.msra.mxu0 %v2471
        %2584 = vmatprep.subr.bf16.mxu0 %v2478
        %2585 = vmatpush1.bf16.msra.mxu0 %v2477
        %2586 = vmatprep.subr.bf16.mxu0 0
        %2587 = vmatpush1.bf16.msra.mxu0 0
        %2588 = vmatprep.subr.bf16.mxu0 0
        %2589 = vmatpush1.bf16.msra.mxu0 0
        %2590 = vmatprep.subr.bf16.mxu0 0
        %2591 = vmatpush1.bf16.msra.mxu0 0
        %2592 = vmatprep.subr.bf16.mxu0 0
        %2593 = vmatpush1.bf16.msra.mxu0 0
        %2594 = vmatprep.subr.bf16.mxu0 0
        %2595 = vmatpush1.bf16.msra.mxu0 0
        %2596 = vmatprep.subr.bf16.mxu0 0
        %2597 = vmatpush1.bf16.msra.mxu0 0
        %2598 = vmatprep.subr.bf16.mxu0 0
        %2599 = vmatpush1.bf16.msra.mxu0 0
        %2600 = vmatprep.subr.bf16.mxu0 0
        %2601 = vmatpush1.bf16.msra.mxu0 0
        %2602 = vmatprep.mubr.bf16.mxu0 0
        %2603 = vmatmul.mubr.bf16.gmra.mrb[0].mxu0 %v2206
        %v2604 = vpop.f32.mrb[0].mxu0
        %v2605 = vadd.f32 %v2270, %v2604
        %v2606 = vpop.f32.mrb[0].mxu0
        %v2607 = vadd.f32 %v2274, %v2606
        %v2608 = vpop.f32.mrb[0].mxu0
        %v2609 = vpop.f32.mrb[0].mxu0
        %2610 = vdwg.mxu0
        %2611 = vmatprep.subr.bf16.mxu0 %v2438
        %2612 = vmatpush1.bf16.msra.mxu0 %v2437
        %2613 = vmatprep.subr.bf16.mxu0 %v2444
        %2614 = vmatpush1.bf16.msra.mxu0 %v2443
        %2615 = vmatprep.subr.bf16.mxu0 %v2450
        %2616 = vmatpush1.bf16.msra.mxu0 %v2449
        %2617 = vmatprep.subr.bf16.mxu0 %v2456
        %2618 = vmatpush1.bf16.msra.mxu0 %v2455
        %2619 = vmatprep.subr.bf16.mxu0 %v2462
        %2620 = vmatpush1.bf16.msra.mxu0 %v2461
        %2621 = vmatprep.subr.bf16.mxu0 %v2468
        %2622 = vmatpush1.bf16.msra.mxu0 %v2467
        %2623 = vmatprep.subr.bf16.mxu0 %v2474
        %2624 = vmatpush1.bf16.msra.mxu0 %v2473
        %2625 = vmatprep.subr.bf16.mxu0 %v2480
        %2626 = vmatpush1.bf16.msra.mxu0 %v2479
        %2627 = vmatprep.subr.bf16.mxu0 0
        %2628 = vmatpush1.bf16.msra.mxu0 0
        %2629 = vmatprep.subr.bf16.mxu0 0
        %2630 = vmatpush1.bf16.msra.mxu0 0
        %2631 = vmatprep.subr.bf16.mxu0 0
        %2632 = vmatpush1.bf16.msra.mxu0 0
        %2633 = vmatprep.subr.bf16.mxu0 0
        %2634 = vmatpush1.bf16.msra.mxu0 0
        %2635 = vmatprep.subr.bf16.mxu0 0
        %2636 = vmatpush1.bf16.msra.mxu0 0
        %2637 = vmatprep.subr.bf16.mxu0 0
        %2638 = vmatpush1.bf16.msra.mxu0 0
        %2639 = vmatprep.subr.bf16.mxu0 0
        %2640 = vmatpush1.bf16.msra.mxu0 0
        %2641 = vmatprep.subr.bf16.mxu0 0
        %2642 = vmatpush1.bf16.msra.mxu0 0
        %2643 = vmatprep.mubr.bf16.mxu0 0
        %2644 = vmatmul.mubr.bf16.gmra.mrb[0].mxu0 %v2206
        %v2645 = vpop.f32.mrb[0].mxu0
        %v2646 = vadd.f32 %v2278, %v2645
        %v2647 = vpop.f32.mrb[0].mxu0
        %v2648 = vadd.f32 %v2282, %v2647
        %v2649 = vpop.f32.mrb[0].mxu0
        %v2650 = vpop.f32.mrb[0].mxu0
        %2651 = vdwg.mxu0
        %v2652 = vpack.c.bf16 %v2564, %v2564
        %v2653 = vpack.c.bf16 %v2605, %v2605
        %2654 = vmatprep.subr.bf16.mxu0 0
        %2655 = vmatpush1.bf16.xpose.msra.mxu0 %v2653
        %2656 = vmatprep.subr.bf16.mxu0 0
        %2657 = vmatpush1.bf16.xpose.msra.mxu0 0
        %2658 = vmatprep.subr.bf16.mxu0 0
        %2659 = vmatpush1.bf16.xpose.msra.mxu0 0
        %2660 = vmatprep.subr.bf16.mxu0 0
        %2661 = vmatpush1.bf16.xpose.msra.mxu0 0
        %2662 = vmatprep.subr.bf16.mxu0 0
        %2663 = vmatpush1.bf16.xpose.msra.mxu0 0
        %2664 = vmatprep.subr.bf16.mxu0 0
        %2665 = vmatpush1.bf16.xpose.msra.mxu0 0
        %2666 = vmatprep.subr.bf16.mxu0 0
        %2667 = vmatpush1.bf16.xpose.msra.mxu0 0
        %2668 = vmatprep.subr.bf16.mxu0 0
        %2669 = vmatpush1.bf16.xpose.msra.mxu0 0
        %2670 = vmatprep.subr.bf16.mxu0 0
        %2671 = vmatpush1.bf16.xpose.msra.mxu0 0
        %2672 = vmatprep.subr.bf16.mxu0 0
        %2673 = vmatpush1.bf16.xpose.msra.mxu0 0
        %2674 = vmatprep.subr.bf16.mxu0 0
        %2675 = vmatpush1.bf16.xpose.msra.mxu0 0
        %2676 = vmatprep.subr.bf16.mxu0 0
        %2677 = vmatpush1.bf16.xpose.msra.mxu0 0
        %2678 = vmatprep.subr.bf16.mxu0 0
        %2679 = vmatpush1.bf16.xpose.msra.mxu0 0
        %2680 = vmatprep.subr.bf16.mxu0 0
        %2681 = vmatpush1.bf16.xpose.msra.mxu0 0
        %2682 = vmatprep.subr.bf16.mxu0 0
        %2683 = vmatpush1.bf16.xpose.msra.mxu0 0
        %2684 = vmatprep.subr.bf16.mxu0 0
        %2685 = vmatpush1.bf16.xpose.msra.mxu0 0
        %2686 = vmatprep.mubr.bf16.mxu0 0
        %2687 = vmatmul.mubr.bf16.gmra.mrb[0].mxu0 %v2652
        %v2688 = vpop.f32.mrb[0].mxu0
        %v2689 = vadd.f32 0.0, %v2688
        %v2690 = vpop.f32.mrb[0].mxu0
        %v2691 = vpop.f32.mrb[0].mxu0
        %v2692 = vpop.f32.mrb[0].mxu0
        %2693 = vdwg.mxu0
        %v2694 = vmul.f32 %v2689, 0.125
        %v2695 = vadd.f32 %v2694, %v1419
        %v2696 = vsel %vm1422, %v2695, -inf
        %2697 = vmax.xlane.f32.xlu0 %v2696
        %v2698 = vpop.xlane.xlu0 %2697
        %v2699 = vsub.f32 %v2695, %v2698
        %v2700 = vmul.f32 %v2699, 1.442695
        %v2701 = vpow.pop %v2700
        %v2702 = vsel %vm1422, %v2701, 0.0
        %2703 = vadd.xlane.f32.xlu0 %v2702
        %v2704 = vpop.xlane.xlu0 %2703
        %v2705 = vrcp.pop %v2704
        %v2706 = vmul.f32 %v2701, %v2705
        %v2707 = vpack.c.bf16 %v2706, %v2706
        %v2708 = vpack.c.bf16 %v2646, %v2646
        %v2710 = vsel %vm1422, %v2707, 0
        %v2713 = vsel %vm1439, %v2708, 0
        %2715 = vmatprep.subr.bf16.mxu0 0
        %2716 = vmatpush1.bf16.msra.mxu0 %v2713
        %2717 = vmatprep.subr.bf16.mxu0 0
        %2718 = vmatpush1.bf16.msra.mxu0 0
        %2719 = vmatprep.subr.bf16.mxu0 0
        %2720 = vmatpush1.bf16.msra.mxu0 0
        %2721 = vmatprep.subr.bf16.mxu0 0
        %2722 = vmatpush1.bf16.msra.mxu0 0
        %2723 = vmatprep.subr.bf16.mxu0 0
        %2724 = vmatpush1.bf16.msra.mxu0 0
        %2725 = vmatprep.subr.bf16.mxu0 0
        %2726 = vmatpush1.bf16.msra.mxu0 0
        %2727 = vmatprep.subr.bf16.mxu0 0
        %2728 = vmatpush1.bf16.msra.mxu0 0
        %2729 = vmatprep.subr.bf16.mxu0 0
        %2730 = vmatpush1.bf16.msra.mxu0 0
        %2731 = vmatprep.subr.bf16.mxu0 0
        %2732 = vmatpush1.bf16.msra.mxu0 0
        %2733 = vmatprep.subr.bf16.mxu0 0
        %2734 = vmatpush1.bf16.msra.mxu0 0
        %2735 = vmatprep.subr.bf16.mxu0 0
        %2736 = vmatpush1.bf16.msra.mxu0 0
        %2737 = vmatprep.subr.bf16.mxu0 0
        %2738 = vmatpush1.bf16.msra.mxu0 0
        %2739 = vmatprep.subr.bf16.mxu0 0
        %2740 = vmatpush1.bf16.msra.mxu0 0
        %2741 = vmatprep.subr.bf16.mxu0 0
        %2742 = vmatpush1.bf16.msra.mxu0 0
        %2743 = vmatprep.subr.bf16.mxu0 0
        %2744 = vmatpush1.bf16.msra.mxu0 0
        %2745 = vmatprep.subr.bf16.mxu0 0
        %2746 = vmatpush1.bf16.msra.mxu0 0
        %2747 = vmatprep.mubr.bf16.mxu0 0
        %2748 = vmatmul.mubr.bf16.gmra.mrb[0].mxu0 %v2710
        %v2749 = vpop.f32.mrb[0].mxu0
        %v2750 = vadd.f32 0.0, %v2749
        %v2751 = vpop.f32.mrb[0].mxu0
        %v2752 = vpop.f32.mrb[0].mxu0
        %v2753 = vpop.f32.mrb[0].mxu0
        %2754 = vdwg.mxu0
        %v2755 = vpack.c.bf16 %v2750, %v2750
        %s2756 = scalar_lea.vmem [#allocation5], 128
        %v2757 = vld [vmem:[%s2756] sm:$0xf]
        %v2758 = vld [vmem:[%s2756 + $0x4] sm:$0xf]
        %v2759 = vld [vmem:[%s2756 + $0x8] sm:$0xf]
        %v2760 = vld [vmem:[%s2756 + $0xc] sm:$0xf]
        %v2761 = vld [vmem:[%s2756 + $0x10] sm:$0xf]
        %v2762 = vld [vmem:[%s2756 + $0x14] sm:$0xf]
        %v2763 = vld [vmem:[%s2756 + $0x18] sm:$0xf]
        %v2764 = vld [vmem:[%s2756 + $0x1c] sm:$0xf]
        %v2765 = vld [vmem:[%s2756 + $0x20] sm:$0xf]
        %v2766 = vld [vmem:[%s2756 + $0x24] sm:$0xf]
        %v2767 = vld [vmem:[%s2756 + $0x28] sm:$0xf]
        %v2768 = vld [vmem:[%s2756 + $0x2c] sm:$0xf]
        %v2769 = vld [vmem:[%s2756 + $0x30] sm:$0xf]
        %v2770 = vld [vmem:[%s2756 + $0x34] sm:$0xf]
        %v2771 = vld [vmem:[%s2756 + $0x38] sm:$0xf]
        %v2772 = vld [vmem:[%s2756 + $0x3c] sm:$0xf]
        %v2773 = vpack.c.bf16 %v2566, %v2566
        %v2774 = vpack.c.bf16 %v2607, %v2607
        %2775 = vmatprep.subr.bf16.mxu0 0
        %2776 = vmatpush1.bf16.xpose.msra.mxu0 %v2774
        %2777 = vmatprep.subr.bf16.mxu0 0
        %2778 = vmatpush1.bf16.xpose.msra.mxu0 0
        %2779 = vmatprep.subr.bf16.mxu0 0
        %2780 = vmatpush1.bf16.xpose.msra.mxu0 0
        %2781 = vmatprep.subr.bf16.mxu0 0
        %2782 = vmatpush1.bf16.xpose.msra.mxu0 0
        %2783 = vmatprep.subr.bf16.mxu0 0
        %2784 = vmatpush1.bf16.xpose.msra.mxu0 0
        %2785 = vmatprep.subr.bf16.mxu0 0
        %2786 = vmatpush1.bf16.xpose.msra.mxu0 0
        %2787 = vmatprep.subr.bf16.mxu0 0
        %2788 = vmatpush1.bf16.xpose.msra.mxu0 0
        %2789 = vmatprep.subr.bf16.mxu0 0
        %2790 = vmatpush1.bf16.xpose.msra.mxu0 0
        %2791 = vmatprep.subr.bf16.mxu0 0
        %2792 = vmatpush1.bf16.xpose.msra.mxu0 0
        %2793 = vmatprep.subr.bf16.mxu0 0
        %2794 = vmatpush1.bf16.xpose.msra.mxu0 0
        %2795 = vmatprep.subr.bf16.mxu0 0
        %2796 = vmatpush1.bf16.xpose.msra.mxu0 0
        %2797 = vmatprep.subr.bf16.mxu0 0
        %2798 = vmatpush1.bf16.xpose.msra.mxu0 0
        %2799 = vmatprep.subr.bf16.mxu0 0
        %2800 = vmatpush1.bf16.xpose.msra.mxu0 0
        %2801 = vmatprep.subr.bf16.mxu0 0
        %2802 = vmatpush1.bf16.xpose.msra.mxu0 0
        %2803 = vmatprep.subr.bf16.mxu0 0
        %2804 = vmatpush1.bf16.xpose.msra.mxu0 0
        %2805 = vmatprep.subr.bf16.mxu0 0
        %2806 = vmatpush1.bf16.xpose.msra.mxu0 0
        %2807 = vmatprep.mubr.bf16.mxu0 0
        %2808 = vmatmul.mubr.bf16.gmra.mrb[0].mxu0 %v2773
        %v2809 = vpop.f32.mrb[0].mxu0
        %v2810 = vadd.f32 0.0, %v2809
        %v2811 = vpop.f32.mrb[0].mxu0
        %v2812 = vpop.f32.mrb[0].mxu0
        %v2813 = vpop.f32.mrb[0].mxu0
        %2814 = vdwg.mxu0
        %v2815 = vmul.f32 %v2810, 0.125
        %v2816 = vadd.f32 %v2815, %v1419
        %v2817 = vsel %vm1422, %v2816, -inf
        %2818 = vmax.xlane.f32.xlu0 %v2817
        %v2819 = vpop.xlane.xlu0 %2818
        %v2820 = vsub.f32 %v2816, %v2819
        %v2821 = vmul.f32 %v2820, 1.442695
        %v2822 = vpow.pop %v2821
        %v2823 = vsel %vm1422, %v2822, 0.0
        %2824 = vadd.xlane.f32.xlu0 %v2823
        %v2825 = vpop.xlane.xlu0 %2824
        %v2826 = vrcp.pop %v2825
        %v2827 = vmul.f32 %v2822, %v2826
        %v2828 = vpack.c.bf16 %v2827, %v2827
        %v2829 = vpack.c.bf16 %v2648, %v2648
        %v2831 = vsel %vm1422, %v2828, 0
        %v2834 = vsel %vm1439, %v2829, 0
        %2836 = vmatprep.subr.bf16.mxu0 0
        %2837 = vmatpush1.bf16.msra.mxu0 %v2834
        %2838 = vmatprep.subr.bf16.mxu0 0
        %2839 = vmatpush1.bf16.msra.mxu0 0
        %2840 = vmatprep.subr.bf16.mxu0 0
        %2841 = vmatpush1.bf16.msra.mxu0 0
        %2842 = vmatprep.subr.bf16.mxu0 0
        %2843 = vmatpush1.bf16.msra.mxu0 0
        %2844 = vmatprep.subr.bf16.mxu0 0
        %2845 = vmatpush1.bf16.msra.mxu0 0
        %2846 = vmatprep.subr.bf16.mxu0 0
        %2847 = vmatpush1.bf16.msra.mxu0 0
        %2848 = vmatprep.subr.bf16.mxu0 0
        %2849 = vmatpush1.bf16.msra.mxu0 0
        %2850 = vmatprep.subr.bf16.mxu0 0
        %2851 = vmatpush1.bf16.msra.mxu0 0
        %2852 = vmatprep.subr.bf16.mxu0 0
        %2853 = vmatpush1.bf16.msra.mxu0 0
        %2854 = vmatprep.subr.bf16.mxu0 0
        %2855 = vmatpush1.bf16.msra.mxu0 0
        %2856 = vmatprep.subr.bf16.mxu0 0
        %2857 = vmatpush1.bf16.msra.mxu0 0
        %2858 = vmatprep.subr.bf16.mxu0 0
        %2859 = vmatpush1.bf16.msra.mxu0 0
        %2860 = vmatprep.subr.bf16.mxu0 0
        %2861 = vmatpush1.bf16.msra.mxu0 0
        %2862 = vmatprep.subr.bf16.mxu0 0
        %2863 = vmatpush1.bf16.msra.mxu0 0
        %2864 = vmatprep.subr.bf16.mxu0 0
        %2865 = vmatpush1.bf16.msra.mxu0 0
        %2866 = vmatprep.subr.bf16.mxu0 0
        %2867 = vmatpush1.bf16.msra.mxu0 0
        %2868 = vmatprep.mubr.bf16.mxu0 0
        %2869 = vmatmul.mubr.bf16.gmra.mrb[0].mxu0 %v2831
        %v2870 = vpop.f32.mrb[0].mxu0
        %v2871 = vadd.f32 0.0, %v2870
        %v2872 = vpop.f32.mrb[0].mxu0
        %v2873 = vpop.f32.mrb[0].mxu0
        %v2874 = vpop.f32.mrb[0].mxu0
        %2875 = vdwg.mxu0
        %v2876 = vpack.c.bf16 %v2871, %v2871
        %s2877 = scalar_lea.vmem [#allocation5], 192
        %v2878 = vld [vmem:[%s2877] sm:$0xf]
        %v2879 = vld [vmem:[%s2877 + $0x4] sm:$0xf]
        %v2880 = vld [vmem:[%s2877 + $0x8] sm:$0xf]
        %v2881 = vld [vmem:[%s2877 + $0xc] sm:$0xf]
        %v2882 = vld [vmem:[%s2877 + $0x10] sm:$0xf]
        %v2883 = vld [vmem:[%s2877 + $0x14] sm:$0xf]
        %v2884 = vld [vmem:[%s2877 + $0x18] sm:$0xf]
        %v2885 = vld [vmem:[%s2877 + $0x1c] sm:$0xf]
        %v2886 = vld [vmem:[%s2877 + $0x20] sm:$0xf]
        %v2887 = vld [vmem:[%s2877 + $0x24] sm:$0xf]
        %v2888 = vld [vmem:[%s2877 + $0x28] sm:$0xf]
        %v2889 = vld [vmem:[%s2877 + $0x2c] sm:$0xf]
        %v2890 = vld [vmem:[%s2877 + $0x30] sm:$0xf]
        %v2891 = vld [vmem:[%s2877 + $0x34] sm:$0xf]
        %v2892 = vld [vmem:[%s2877 + $0x38] sm:$0xf]
        %v2893 = vld [vmem:[%s2877 + $0x3c] sm:$0xf]
        %v2910 = vunpack.c.l.b16 %v2878
        %v2911 = vunpack.c.l.b16 %v2879
        %v2912 = vunpack.c.l.b16 %v2880
        %v2913 = vunpack.c.l.b16 %v2881
        %v2914 = vunpack.c.l.b16 %v2882
        %v2915 = vunpack.c.l.b16 %v2883
        %v2916 = vunpack.c.l.b16 %v2884
        %v2917 = vunpack.c.l.b16 %v2885
        %v2918 = vunpack.c.l.b16 %v2886
        %v2919 = vunpack.c.l.b16 %v2887
        %v2920 = vunpack.c.l.b16 %v2888
        %v2921 = vunpack.c.l.b16 %v2889
        %v2922 = vunpack.c.l.b16 %v2890
        %v2923 = vunpack.c.l.b16 %v2891
        %v2924 = vunpack.c.l.b16 %v2892
        %v2925 = vunpack.c.l.b16 %v2893
        %v2926 = vpack.c.b16 %v2911, %v2910
        %v2927 = vpack.c.b16 %v2913, %v2912
        %v2928 = vpack.c.b16 %v2915, %v2914
        %v2929 = vpack.c.b16 %v2917, %v2916
        %v2930 = vpack.c.b16 %v2919, %v2918
        %v2931 = vpack.c.b16 %v2921, %v2920
        %v2932 = vpack.c.b16 %v2923, %v2922
        %v2933 = vpack.c.b16 %v2925, %v2924
        %2942 = vmatprep.subr.bf16.mxu0 0
        %2943 = vmatpush1.bf16.msra.mxu0 %v2926
        %2944 = vmatprep.subr.bf16.mxu0 0
        %2945 = vmatpush1.bf16.msra.mxu0 %v2927
        %2946 = vmatprep.subr.bf16.mxu0 0
        %2947 = vmatpush1.bf16.msra.mxu0 %v2928
        %2948 = vmatprep.subr.bf16.mxu0 0
        %2949 = vmatpush1.bf16.msra.mxu0 %v2929
        %2950 = vmatprep.subr.bf16.mxu0 0
        %2951 = vmatpush1.bf16.msra.mxu0 %v2930
        %2952 = vmatprep.subr.bf16.mxu0 0
        %2953 = vmatpush1.bf16.msra.mxu0 %v2931
        %2954 = vmatprep.subr.bf16.mxu0 0
        %2955 = vmatpush1.bf16.msra.mxu0 %v2932
        %2956 = vmatprep.subr.bf16.mxu0 0
        %2957 = vmatpush1.bf16.msra.mxu0 %v2933
        %2958 = vmatprep.subr.bf16.mxu0 0
        %2959 = vmatpush1.bf16.msra.mxu0 0
        %2960 = vmatprep.subr.bf16.mxu0 0
        %2961 = vmatpush1.bf16.msra.mxu0 0
        %2962 = vmatprep.subr.bf16.mxu0 0
        %2963 = vmatpush1.bf16.msra.mxu0 0
        %2964 = vmatprep.subr.bf16.mxu0 0
        %2965 = vmatpush1.bf16.msra.mxu0 0
        %2966 = vmatprep.subr.bf16.mxu0 0
        %2967 = vmatpush1.bf16.msra.mxu0 0
        %2968 = vmatprep.subr.bf16.mxu0 0
        %2969 = vmatpush1.bf16.msra.mxu0 0
        %2970 = vmatprep.subr.bf16.mxu0 0
        %2971 = vmatpush1.bf16.msra.mxu0 0
        %2972 = vmatprep.subr.bf16.mxu0 0
        %2973 = vmatpush1.bf16.msra.mxu0 0
        %2974 = vmatprep.mubr.bf16.mxu0 0
        %2975 = vmatmul.mubr.bf16.gmra.mrb[0].mxu0 %v2876
        %v2976 = vpop.f32.mrb[0].mxu0
        %v2977 = vadd.f32 0.0, %v2976
        %v2978 = vpop.f32.mrb[0].mxu0
        %v2979 = vpop.f32.mrb[0].mxu0
        %v2980 = vpop.f32.mrb[0].mxu0
        %2981 = vdwg.mxu0
        %v2998 = vunpack.c.l.b16 %v2757
        %v2999 = vunpack.c.l.b16 %v2758
        %v3000 = vunpack.c.l.b16 %v2759
        %v3001 = vunpack.c.l.b16 %v2760
        %v3002 = vunpack.c.l.b16 %v2761
        %v3003 = vunpack.c.l.b16 %v2762
        %v3004 = vunpack.c.l.b16 %v2763
        %v3005 = vunpack.c.l.b16 %v2764
        %v3006 = vunpack.c.l.b16 %v2765
        %v3007 = vunpack.c.l.b16 %v2766
        %v3008 = vunpack.c.l.b16 %v2767
        %v3009 = vunpack.c.l.b16 %v2768
        %v3010 = vunpack.c.l.b16 %v2769
        %v3011 = vunpack.c.l.b16 %v2770
        %v3012 = vunpack.c.l.b16 %v2771
        %v3013 = vunpack.c.l.b16 %v2772
        %v3014 = vpack.c.b16 %v2999, %v2998
        %v3015 = vpack.c.b16 %v3001, %v3000
        %v3016 = vpack.c.b16 %v3003, %v3002
        %v3017 = vpack.c.b16 %v3005, %v3004
        %v3018 = vpack.c.b16 %v3007, %v3006
        %v3019 = vpack.c.b16 %v3009, %v3008
        %v3020 = vpack.c.b16 %v3011, %v3010
        %v3021 = vpack.c.b16 %v3013, %v3012
        %3030 = vmatprep.subr.bf16.mxu0 0
        %3031 = vmatpush1.bf16.msra.mxu0 %v3014
        %3032 = vmatprep.subr.bf16.mxu0 0
        %3033 = vmatpush1.bf16.msra.mxu0 %v3015
        %3034 = vmatprep.subr.bf16.mxu0 0
        %3035 = vmatpush1.bf16.msra.mxu0 %v3016
        %3036 = vmatprep.subr.bf16.mxu0 0
        %3037 = vmatpush1.bf16.msra.mxu0 %v3017
        %3038 = vmatprep.subr.bf16.mxu0 0
        %3039 = vmatpush1.bf16.msra.mxu0 %v3018
        %3040 = vmatprep.subr.bf16.mxu0 0
        %3041 = vmatpush1.bf16.msra.mxu0 %v3019
        %3042 = vmatprep.subr.bf16.mxu0 0
        %3043 = vmatpush1.bf16.msra.mxu0 %v3020
        %3044 = vmatprep.subr.bf16.mxu0 0
        %3045 = vmatpush1.bf16.msra.mxu0 %v3021
        %3046 = vmatprep.subr.bf16.mxu0 0
        %3047 = vmatpush1.bf16.msra.mxu0 0
        %3048 = vmatprep.subr.bf16.mxu0 0
        %3049 = vmatpush1.bf16.msra.mxu0 0
        %3050 = vmatprep.subr.bf16.mxu0 0
        %3051 = vmatpush1.bf16.msra.mxu0 0
        %3052 = vmatprep.subr.bf16.mxu0 0
        %3053 = vmatpush1.bf16.msra.mxu0 0
        %3054 = vmatprep.subr.bf16.mxu0 0
        %3055 = vmatpush1.bf16.msra.mxu0 0
        %3056 = vmatprep.subr.bf16.mxu0 0
        %3057 = vmatpush1.bf16.msra.mxu0 0
        %3058 = vmatprep.subr.bf16.mxu0 0
        %3059 = vmatpush1.bf16.msra.mxu0 0
        %3060 = vmatprep.subr.bf16.mxu0 0
        %3061 = vmatpush1.bf16.msra.mxu0 0
        %3062 = vmatprep.mubr.bf16.mxu0 0
        %3063 = vmatmul.mubr.bf16.gmra.mrb[0].mxu0 %v2755
        %v3064 = vpop.f32.mrb[0].mxu0
        %v3065 = vadd.f32 %v2977, %v3064
        %v3066 = vpop.f32.mrb[0].mxu0
        %v3067 = vpop.f32.mrb[0].mxu0
        %v3068 = vpop.f32.mrb[0].mxu0
        %3069 = vdwg.mxu0
        %s3070 = scalar_lea.vmem %s9, 1
        %v3071 = vld [vmem:[%s3070] sm:$0x1]
        %v3073 = vlaneseq
        %v3074 = vshrl.u32 %v3073, 7
        %v3075 = vsub.s32 0, %v3074
        %v3076 = vrot.slane %v3071, %v3075
        %v3078 = vadd.f32 %v3065, %v3076
        %v3079 = vadd.f32 %v3078, %v2205
        %s3080 = scalar_lea.vmem %s10, 1
        %v3081 = vld [vmem:[%s3080] sm:$0x1]
        %s3082 = scalar_lea.vmem %s11, 1
        %v3083 = vld [vmem:[%s3082] sm:$0x1]
        %3084 = vadd.xlane.f32.xlu0 %v3079
        %v3085 = vpop.xlane.xlu0 %3084
        %v3086 = vmul.f32 %v3085, %v900
        %v3087 = vsub.f32 %v3079, %v3086
        %v3088 = vmul.f32 %v3087, %v3087
        %3089 = vadd.xlane.f32.xlu0 %v3088
        %v3090 = vpop.xlane.xlu0 %3089
        %v3091 = vmul.f32 %v3090, %v900
        %v3092 = vadd.f32 %v3091, 1e-12
        %v3093 = vrsqrt.pop %v3092
        %v3094 = vmul.f32 %v3087, %v3093
        %v3096 = vlaneseq
        %v3097 = vshrl.u32 %v3096, 7
        %v3098 = vsub.s32 0, %v3097
        %v3099 = vrot.slane %v3081, %v3098
        %v3101 = vmul.f32 %v3094, %v3099
        %v3103 = vlaneseq
        %v3104 = vshrl.u32 %v3103, 7
        %v3105 = vsub.s32 0, %v3104
        %v3106 = vrot.slane %v3083, %v3105
        %v3108 = vadd.f32 %v3101, %v3106
        %v3109 = vpack.c.bf16 %v3108, %v3108
        %s3110 = scalar_lea.vmem [#allocation7], 128
        %v3111 = vld [vmem:[%s3110] sm:$0xff]
        %v3112 = vld [vmem:[%s3110 + $0x8] sm:$0xff]
        %v3113 = vld [vmem:[%s3110 + $0x10] sm:$0xff]
        %v3114 = vld [vmem:[%s3110 + $0x18] sm:$0xff]
        %v3115 = vld [vmem:[%s3110 + $0x20] sm:$0xff]
        %v3116 = vld [vmem:[%s3110 + $0x28] sm:$0xff]
        %v3117 = vld [vmem:[%s3110 + $0x30] sm:$0xff]
        %v3118 = vld [vmem:[%s3110 + $0x38] sm:$0xff]
        %v3119 = vld [vmem:[%s3110 + $0x40] sm:$0xff]
        %v3120 = vld [vmem:[%s3110 + $0x48] sm:$0xff]
        %v3121 = vld [vmem:[%s3110 + $0x50] sm:$0xff]
        %v3122 = vld [vmem:[%s3110 + $0x58] sm:$0xff]
        %v3123 = vld [vmem:[%s3110 + $0x60] sm:$0xff]
        %v3124 = vld [vmem:[%s3110 + $0x68] sm:$0xff]
        %v3125 = vld [vmem:[%s3110 + $0x70] sm:$0xff]
        %v3126 = vld [vmem:[%s3110 + $0x78] sm:$0xff]
        %s3127 = scalar_lea.vmem %s13, 2
        %v3128 = vld [vmem:[%s3127] sm:$0x3]
        %v3130 = vlaneseq
        %v3131 = vshrl.u32 %v3130, 7
        %v3132 = vsub.s32 0, %v3131
        %v3133 = vrot.slane %v3128, %v3132
        %v3134 = vlaneseq
        %v3135 = vshrl.u32 %v3134, 7
        %v3136 = vsub.s32 1, %v3135
        %v3137 = vrot.slane %v3128, %v3136
        %v3156 = vunpack.c.l.b16 %v3111
        %v3157 = vunpack.c.h.b16 %v3111
        %v3158 = vunpack.c.l.b16 %v3112
        %v3159 = vunpack.c.h.b16 %v3112
        %v3160 = vunpack.c.l.b16 %v3113
        %v3161 = vunpack.c.h.b16 %v3113
        %v3162 = vunpack.c.l.b16 %v3114
        %v3163 = vunpack.c.h.b16 %v3114
        %v3164 = vunpack.c.l.b16 %v3115
        %v3165 = vunpack.c.h.b16 %v3115
        %v3166 = vunpack.c.l.b16 %v3116
        %v3167 = vunpack.c.h.b16 %v3116
        %v3168 = vunpack.c.l.b16 %v3117
        %v3169 = vunpack.c.h.b16 %v3117
        %v3170 = vunpack.c.l.b16 %v3118
        %v3171 = vunpack.c.h.b16 %v3118
        %v3172 = vunpack.c.l.b16 %v3119
        %v3173 = vunpack.c.h.b16 %v3119
        %v3174 = vunpack.c.l.b16 %v3120
        %v3175 = vunpack.c.h.b16 %v3120
        %v3176 = vunpack.c.l.b16 %v3121
        %v3177 = vunpack.c.h.b16 %v3121
        %v3178 = vunpack.c.l.b16 %v3122
        %v3179 = vunpack.c.h.b16 %v3122
        %v3180 = vunpack.c.l.b16 %v3123
        %v3181 = vunpack.c.h.b16 %v3123
        %v3182 = vunpack.c.l.b16 %v3124
        %v3183 = vunpack.c.h.b16 %v3124
        %v3184 = vunpack.c.l.b16 %v3125
        %v3185 = vunpack.c.h.b16 %v3125
        %v3186 = vunpack.c.l.b16 %v3126
        %v3187 = vunpack.c.h.b16 %v3126
        %v3188 = vpack.c.b16 %v3158, %v3156
        %v3189 = vpack.c.b16 %v3159, %v3157
        %v3190 = vpack.c.b16 %v3162, %v3160
        %v3191 = vpack.c.b16 %v3163, %v3161
        %v3192 = vpack.c.b16 %v3166, %v3164
        %v3193 = vpack.c.b16 %v3167, %v3165
        %v3194 = vpack.c.b16 %v3170, %v3168
        %v3195 = vpack.c.b16 %v3171, %v3169
        %v3196 = vpack.c.b16 %v3174, %v3172
        %v3197 = vpack.c.b16 %v3175, %v3173
        %v3198 = vpack.c.b16 %v3178, %v3176
        %v3199 = vpack.c.b16 %v3179, %v3177
        %v3200 = vpack.c.b16 %v3182, %v3180
        %v3201 = vpack.c.b16 %v3183, %v3181
        %v3202 = vpack.c.b16 %v3186, %v3184
        %v3203 = vpack.c.b16 %v3187, %v3185
        %3220 = vmatprep.subr.bf16.mxu0 %v3189
        %3221 = vmatpush1.bf16.msra.mxu0 %v3188
        %3222 = vmatprep.subr.bf16.mxu0 %v3191
        %3223 = vmatpush1.bf16.msra.mxu0 %v3190
        %3224 = vmatprep.subr.bf16.mxu0 %v3193
        %3225 = vmatpush1.bf16.msra.mxu0 %v3192
        %3226 = vmatprep.subr.bf16.mxu0 %v3195
        %3227 = vmatpush1.bf16.msra.mxu0 %v3194
        %3228 = vmatprep.subr.bf16.mxu0 %v3197
        %3229 = vmatpush1.bf16.msra.mxu0 %v3196
        %3230 = vmatprep.subr.bf16.mxu0 %v3199
        %3231 = vmatpush1.bf16.msra.mxu0 %v3198
        %3232 = vmatprep.subr.bf16.mxu0 %v3201
        %3233 = vmatpush1.bf16.msra.mxu0 %v3200
        %3234 = vmatprep.subr.bf16.mxu0 %v3203
        %3235 = vmatpush1.bf16.msra.mxu0 %v3202
        %3236 = vmatprep.subr.bf16.mxu0 0
        %3237 = vmatpush1.bf16.msra.mxu0 0
        %3238 = vmatprep.subr.bf16.mxu0 0
        %3239 = vmatpush1.bf16.msra.mxu0 0
        %3240 = vmatprep.subr.bf16.mxu0 0
        %3241 = vmatpush1.bf16.msra.mxu0 0
        %3242 = vmatprep.subr.bf16.mxu0 0
        %3243 = vmatpush1.bf16.msra.mxu0 0
        %3244 = vmatprep.subr.bf16.mxu0 0
        %3245 = vmatpush1.bf16.msra.mxu0 0
        %3246 = vmatprep.subr.bf16.mxu0 0
        %3247 = vmatpush1.bf16.msra.mxu0 0
        %3248 = vmatprep.subr.bf16.mxu0 0
        %3249 = vmatpush1.bf16.msra.mxu0 0
        %3250 = vmatprep.subr.bf16.mxu0 0
        %3251 = vmatpush1.bf16.msra.mxu0 0
        %3252 = vmatprep.mubr.bf16.mxu0 0
        %3253 = vmatmul.mubr.bf16.gmra.mrb[0].mxu0 %v3109
        %v3254 = vpop.f32.mrb[0].mxu0
        %v3255 = vadd.f32 %v3133, %v3254
        %v3256 = vpop.f32.mrb[0].mxu0
        %v3257 = vadd.f32 %v3137, %v3256
        %v3258 = vpop.f32.mrb[0].mxu0
        %v3259 = vpop.f32.mrb[0].mxu0
        %3260 = vdwg.mxu0
        %v3261 = vmul.f32 %v3255, 0.5
        %v3262 = vmul.f32 %v3257, 0.5
        %v3263 = vmul.f32 %v3255, 0.044715
        %v3264 = vmul.f32 %v3257, 0.044715
        %v3265 = vmul.f32 %v3263, %v3255
        %v3266 = vmul.f32 %v3264, %v3257
        %v3267 = vmul.f32 %v3265, %v3255
        %v3268 = vmul.f32 %v3266, %v3257
        %v3269 = vadd.f32 %v3255, %v3267
        %v3270 = vadd.f32 %v3257, %v3268
        %v3271 = vmul.f32 %v3269, 0.7978846
        %v3272 = vmul.f32 %v3270, 0.7978846
        %v3273 = vtanh.pop %v3271
        %v3274 = vtanh.pop %v3272
        %v3275 = vadd.f32 %v3273, 1.0
        %v3276 = vadd.f32 %v3274, 1.0
        %v3277 = vmul.f32 %v3261, %v3275
        %v3278 = vmul.f32 %v3262, %v3276
        %v3279 = vpack.c.bf16 %v3277, %v3277
        %v3280 = vpack.c.bf16 %v3278, %v3278
        %s3281 = scalar_lea.vmem [#allocation8], 128
        %v3282 = vld [vmem:[%s3281] sm:$0xf]
        %v3283 = vld [vmem:[%s3281 + $0x4] sm:$0xf]
        %v3284 = vld [vmem:[%s3281 + $0x8] sm:$0xf]
        %v3285 = vld [vmem:[%s3281 + $0xc] sm:$0xf]
        %v3286 = vld [vmem:[%s3281 + $0x10] sm:$0xf]
        %v3287 = vld [vmem:[%s3281 + $0x14] sm:$0xf]
        %v3288 = vld [vmem:[%s3281 + $0x18] sm:$0xf]
        %v3289 = vld [vmem:[%s3281 + $0x1c] sm:$0xf]
        %v3290 = vld [vmem:[%s3281 + $0x20] sm:$0xf]
        %v3291 = vld [vmem:[%s3281 + $0x24] sm:$0xf]
        %v3292 = vld [vmem:[%s3281 + $0x28] sm:$0xf]
        %v3293 = vld [vmem:[%s3281 + $0x2c] sm:$0xf]
        %v3294 = vld [vmem:[%s3281 + $0x30] sm:$0xf]
        %v3295 = vld [vmem:[%s3281 + $0x34] sm:$0xf]
        %v3296 = vld [vmem:[%s3281 + $0x38] sm:$0xf]
        %v3297 = vld [vmem:[%s3281 + $0x3c] sm:$0xf]
        %v3298 = vld [vmem:[%s3281 + $0x40] sm:$0xf]
        %v3299 = vld [vmem:[%s3281 + $0x44] sm:$0xf]
        %v3300 = vld [vmem:[%s3281 + $0x48] sm:$0xf]
        %v3301 = vld [vmem:[%s3281 + $0x4c] sm:$0xf]
        %v3302 = vld [vmem:[%s3281 + $0x50] sm:$0xf]
        %v3303 = vld [vmem:[%s3281 + $0x54] sm:$0xf]
        %v3304 = vld [vmem:[%s3281 + $0x58] sm:$0xf]
        %v3305 = vld [vmem:[%s3281 + $0x5c] sm:$0xf]
        %v3306 = vld [vmem:[%s3281 + $0x60] sm:$0xf]
        %v3307 = vld [vmem:[%s3281 + $0x64] sm:$0xf]
        %v3308 = vld [vmem:[%s3281 + $0x68] sm:$0xf]
        %v3309 = vld [vmem:[%s3281 + $0x6c] sm:$0xf]
        %v3310 = vld [vmem:[%s3281 + $0x70] sm:$0xf]
        %v3311 = vld [vmem:[%s3281 + $0x74] sm:$0xf]
        %v3312 = vld [vmem:[%s3281 + $0x78] sm:$0xf]
        %v3313 = vld [vmem:[%s3281 + $0x7c] sm:$0xf]
        %s3314 = scalar_lea.vmem %s15, 1
        %v3315 = vld [vmem:[%s3314] sm:$0x1]
        %v3317 = vlaneseq
        %v3318 = vshrl.u32 %v3317, 7
        %v3319 = vsub.s32 0, %v3318
        %v3320 = vrot.slane %v3315, %v3319
        %v3354 = vunpack.c.l.b16 %v3282
        %v3355 = vunpack.c.l.b16 %v3283
        %v3356 = vunpack.c.l.b16 %v3284
        %v3357 = vunpack.c.l.b16 %v3285
        %v3358 = vunpack.c.l.b16 %v3286
        %v3359 = vunpack.c.l.b16 %v3287
        %v3360 = vunpack.c.l.b16 %v3288
        %v3361 = vunpack.c.l.b16 %v3289
        %v3362 = vunpack.c.l.b16 %v3290
        %v3363 = vunpack.c.l.b16 %v3291
        %v3364 = vunpack.c.l.b16 %v3292
        %v3365 = vunpack.c.l.b16 %v3293
        %v3366 = vunpack.c.l.b16 %v3294
        %v3367 = vunpack.c.l.b16 %v3295
        %v3368 = vunpack.c.l.b16 %v3296
        %v3369 = vunpack.c.l.b16 %v3297
        %v3370 = vunpack.c.l.b16 %v3298
        %v3371 = vunpack.c.l.b16 %v3299
        %v3372 = vunpack.c.l.b16 %v3300
        %v3373 = vunpack.c.l.b16 %v3301
        %v3374 = vunpack.c.l.b16 %v3302
        %v3375 = vunpack.c.l.b16 %v3303
        %v3376 = vunpack.c.l.b16 %v3304
        %v3377 = vunpack.c.l.b16 %v3305
        %v3378 = vunpack.c.l.b16 %v3306
        %v3379 = vunpack.c.l.b16 %v3307
        %v3380 = vunpack.c.l.b16 %v3308
        %v3381 = vunpack.c.l.b16 %v3309
        %v3382 = vunpack.c.l.b16 %v3310
        %v3383 = vunpack.c.l.b16 %v3311
        %v3384 = vunpack.c.l.b16 %v3312
        %v3385 = vunpack.c.l.b16 %v3313
        %v3386 = vpack.c.b16 %v3355, %v3354
        %v3387 = vpack.c.b16 %v3357, %v3356
        %v3388 = vpack.c.b16 %v3359, %v3358
        %v3389 = vpack.c.b16 %v3361, %v3360
        %v3390 = vpack.c.b16 %v3363, %v3362
        %v3391 = vpack.c.b16 %v3365, %v3364
        %v3392 = vpack.c.b16 %v3367, %v3366
        %v3393 = vpack.c.b16 %v3369, %v3368
        %v3394 = vpack.c.b16 %v3371, %v3370
        %v3395 = vpack.c.b16 %v3373, %v3372
        %v3396 = vpack.c.b16 %v3375, %v3374
        %v3397 = vpack.c.b16 %v3377, %v3376
        %v3398 = vpack.c.b16 %v3379, %v3378
        %v3399 = vpack.c.b16 %v3381, %v3380
        %v3400 = vpack.c.b16 %v3383, %v3382
        %v3401 = vpack.c.b16 %v3385, %v3384
        %3418 = vmatprep.subr.bf16.mxu0 0
        %3419 = vmatpush1.bf16.msra.mxu0 %v3386
        %3420 = vmatprep.subr.bf16.mxu0 0
        %3421 = vmatpush1.bf16.msra.mxu0 %v3387
        %3422 = vmatprep.subr.bf16.mxu0 0
        %3423 = vmatpush1.bf16.msra.mxu0 %v3388
        %3424 = vmatprep.subr.bf16.mxu0 0
        %3425 = vmatpush1.bf16.msra.mxu0 %v3389
        %3426 = vmatprep.subr.bf16.mxu0 0
        %3427 = vmatpush1.bf16.msra.mxu0 %v3390
        %3428 = vmatprep.subr.bf16.mxu0 0
        %3429 = vmatpush1.bf16.msra.mxu0 %v3391
        %3430 = vmatprep.subr.bf16.mxu0 0
        %3431 = vmatpush1.bf16.msra.mxu0 %v3392
        %3432 = vmatprep.subr.bf16.mxu0 0
        %3433 = vmatpush1.bf16.msra.mxu0 %v3393
        %3434 = vmatprep.subr.bf16.mxu0 0
        %3435 = vmatpush1.bf16.msra.mxu0 %v3394
        %3436 = vmatprep.subr.bf16.mxu0 0
        %3437 = vmatpush1.bf16.msra.mxu0 %v3395
        %3438 = vmatprep.subr.bf16.mxu0 0
        %3439 = vmatpush1.bf16.msra.mxu0 %v3396
        %3440 = vmatprep.subr.bf16.mxu0 0
        %3441 = vmatpush1.bf16.msra.mxu0 %v3397
        %3442 = vmatprep.subr.bf16.mxu0 0
        %3443 = vmatpush1.bf16.msra.mxu0 %v3398
        %3444 = vmatprep.subr.bf16.mxu0 0
        %3445 = vmatpush1.bf16.msra.mxu0 %v3399
        %3446 = vmatprep.subr.bf16.mxu0 0
        %3447 = vmatpush1.bf16.msra.mxu0 %v3400
        %3448 = vmatprep.subr.bf16.mxu0 0
        %3449 = vmatpush1.bf16.msra.mxu0 %v3401
        %3450 = vmatprep.mubr.bf16.mxu0 %v3280
        %3451 = vmatmul.mubr.bf16.gmra.mrb[0].mxu0 %v3279
        %v3452 = vpop.f32.mrb[0].mxu0
        %v3453 = vadd.f32 %v3320, %v3452
        %v3454 = vpop.f32.mrb[0].mxu0
        %v3455 = vpop.f32.mrb[0].mxu0
        %v3456 = vpop.f32.mrb[0].mxu0
        %3457 = vdwg.mxu0
        %v3458 = vadd.f32 %v3453, %v3108
        %s3459 = scalar_lea.vmem %s16, 1
        %v3460 = vld [vmem:[%s3459] sm:$0x1]
        %s3461 = scalar_lea.vmem %s17, 1
        %v3462 = vld [vmem:[%s3461] sm:$0x1]
        %3463 = vadd.xlane.f32.xlu0 %v3458
        %v3464 = vpop.xlane.xlu0 %3463
        %v3465 = vmul.f32 %v3464, %v900
        %v3466 = vsub.f32 %v3458, %v3465
        %v3467 = vmul.f32 %v3466, %v3466
        %3468 = vadd.xlane.f32.xlu0 %v3467
        %v3469 = vpop.xlane.xlu0 %3468
        %v3470 = vmul.f32 %v3469, %v900
        %v3471 = vadd.f32 %v3470, 1e-12
        %v3472 = vrsqrt.pop %v3471
        %v3473 = vmul.f32 %v3466, %v3472
        %v3475 = vlaneseq
        %v3476 = vshrl.u32 %v3475, 7
        %v3477 = vsub.s32 0, %v3476
        %v3478 = vrot.slane %v3460, %v3477
        %v3480 = vmul.f32 %v3473, %v3478
        %v3482 = vlaneseq
        %v3483 = vshrl.u32 %v3482, 7
        %v3484 = vsub.s32 0, %v3483
        %v3485 = vrot.slane %v3462, %v3484
        %v3487 = vadd.f32 %v3480, %v3485
        %v3488 = vpack.c.bf16 %v3487, %v3487
        %v3489 = vld [vmem:[#allocation10] sm:$0xf]
        %v3490 = vld [vmem:[#allocation10 + $0x4] sm:$0xf]
        %v3491 = vld [vmem:[#allocation10 + $0x8] sm:$0xf]
        %v3492 = vld [vmem:[#allocation10 + $0xc] sm:$0xf]
        %v3493 = vld [vmem:[#allocation10 + $0x10] sm:$0xf]
        %v3494 = vld [vmem:[#allocation10 + $0x14] sm:$0xf]
        %v3495 = vld [vmem:[#allocation10 + $0x18] sm:$0xf]
        %v3496 = vld [vmem:[#allocation10 + $0x1c] sm:$0xf]
        %v3497 = vld [vmem:[#allocation10 + $0x20] sm:$0xf]
        %v3498 = vld [vmem:[#allocation10 + $0x24] sm:$0xf]
        %v3499 = vld [vmem:[#allocation10 + $0x28] sm:$0xf]
        %v3500 = vld [vmem:[#allocation10 + $0x2c] sm:$0xf]
        %v3501 = vld [vmem:[#allocation10 + $0x30] sm:$0xf]
        %v3502 = vld [vmem:[#allocation10 + $0x34] sm:$0xf]
        %v3503 = vld [vmem:[#allocation10 + $0x38] sm:$0xf]
        %v3504 = vld [vmem:[#allocation10 + $0x3c] sm:$0xf]
        %v3505 = vld [vmem:[%s19] sm:$0x1]
        %v3522 = vunpack.c.l.b16 %v3489
        %v3523 = vunpack.c.l.b16 %v3490
        %v3524 = vunpack.c.l.b16 %v3491
        %v3525 = vunpack.c.l.b16 %v3492
        %v3526 = vunpack.c.l.b16 %v3493
        %v3527 = vunpack.c.l.b16 %v3494
        %v3528 = vunpack.c.l.b16 %v3495
        %v3529 = vunpack.c.l.b16 %v3496
        %v3530 = vunpack.c.l.b16 %v3497
        %v3531 = vunpack.c.l.b16 %v3498
        %v3532 = vunpack.c.l.b16 %v3499
        %v3533 = vunpack.c.l.b16 %v3500
        %v3534 = vunpack.c.l.b16 %v3501
        %v3535 = vunpack.c.l.b16 %v3502
        %v3536 = vunpack.c.l.b16 %v3503
        %v3537 = vunpack.c.l.b16 %v3504
        %v3538 = vpack.c.b16 %v3523, %v3522
        %v3539 = vpack.c.b16 %v3525, %v3524
        %v3540 = vpack.c.b16 %v3527, %v3526
        %v3541 = vpack.c.b16 %v3529, %v3528
        %v3542 = vpack.c.b16 %v3531, %v3530
        %v3543 = vpack.c.b16 %v3533, %v3532
        %v3544 = vpack.c.b16 %v3535, %v3534
        %v3545 = vpack.c.b16 %v3537, %v3536
        %3554 = vmatprep.subr.bf16.mxu0 0
        %3555 = vmatpush1.bf16.msra.mxu0 %v3538
        %3556 = vmatprep.subr.bf16.mxu0 0
        %3557 = vmatpush1.bf16.msra.mxu0 %v3539
        %3558 = vmatprep.subr.bf16.mxu0 0
        %3559 = vmatpush1.bf16.msra.mxu0 %v3540
        %3560 = vmatprep.subr.bf16.mxu0 0
        %3561 = vmatpush1.bf16.msra.mxu0 %v3541
        %3562 = vmatprep.subr.bf16.mxu0 0
        %3563 = vmatpush1.bf16.msra.mxu0 %v3542
        %3564 = vmatprep.subr.bf16.mxu0 0
        %3565 = vmatpush1.bf16.msra.mxu0 %v3543
        %3566 = vmatprep.subr.bf16.mxu0 0
        %3567 = vmatpush1.bf16.msra.mxu0 %v3544
        %3568 = vmatprep.subr.bf16.mxu0 0
        %3569 = vmatpush1.bf16.msra.mxu0 %v3545
        %3570 = vmatprep.subr.bf16.mxu0 0
        %3571 = vmatpush1.bf16.msra.mxu0 0
        %3572 = vmatprep.subr.bf16.mxu0 0
        %3573 = vmatpush1.bf16.msra.mxu0 0
        %3574 = vmatprep.subr.bf16.mxu0 0
        %3575 = vmatpush1.bf16.msra.mxu0 0
        %3576 = vmatprep.subr.bf16.mxu0 0
        %3577 = vmatpush1.bf16.msra.mxu0 0
        %3578 = vmatprep.subr.bf16.mxu0 0
        %3579 = vmatpush1.bf16.msra.mxu0 0
        %3580 = vmatprep.subr.bf16.mxu0 0
        %3581 = vmatpush1.bf16.msra.mxu0 0
        %3582 = vmatprep.subr.bf16.mxu0 0
        %3583 = vmatpush1.bf16.msra.mxu0 0
        %3584 = vmatprep.subr.bf16.mxu0 0
        %3585 = vmatpush1.bf16.msra.mxu0 0
        %3586 = vmatprep.mubr.bf16.mxu0 0
        %3587 = vmatmul.mubr.bf16.gmra.mrb[0].mxu0 %v3488
        %v3588 = vpop.f32.mrb[0].mxu0
        %v3589 = vadd.f32 %v3505, %v3588
        %v3590 = vpop.f32.mrb[0].mxu0
        %v3591 = vpop.f32.mrb[0].mxu0
        %v3592 = vpop.f32.mrb[0].mxu0
        %3593 = vdwg.mxu0
        %v3594 = vtanh.pop %v3589
        %v3595 = vpack.c.bf16 %v3594, %v3594
        %v3596 = vld [vmem:[#allocation11] sm:$0xf]
        %v3597 = vld [vmem:[#allocation11 + $0x4] sm:$0xf]
        %v3598 = vld [vmem:[#allocation11 + $0x8] sm:$0xf]
        %v3599 = vld [vmem:[#allocation11 + $0xc] sm:$0xf]
        %v3600 = vld [vmem:[#allocation11 + $0x10] sm:$0xf]
        %v3601 = vld [vmem:[#allocation11 + $0x14] sm:$0xf]
        %v3602 = vld [vmem:[#allocation11 + $0x18] sm:$0xf]
        %v3603 = vld [vmem:[#allocation11 + $0x1c] sm:$0xf]
        %v3604 = vld [vmem:[#allocation11 + $0x20] sm:$0xf]
        %v3605 = vld [vmem:[#allocation11 + $0x24] sm:$0xf]
        %v3606 = vld [vmem:[#allocation11 + $0x28] sm:$0xf]
        %v3607 = vld [vmem:[#allocation11 + $0x2c] sm:$0xf]
        %v3608 = vld [vmem:[#allocation11 + $0x30] sm:$0xf]
        %v3609 = vld [vmem:[#allocation11 + $0x34] sm:$0xf]
        %v3610 = vld [vmem:[#allocation11 + $0x38] sm:$0xf]
        %v3611 = vld [vmem:[#allocation11 + $0x3c] sm:$0xf]
        %v3612 = vld [vmem:[%s21] sm:$0x1]
        %v3629 = vunpack.c.l.b16 %v3596
        %v3630 = vunpack.c.l.b16 %v3597
        %v3631 = vunpack.c.l.b16 %v3598
        %v3632 = vunpack.c.l.b16 %v3599
        %v3633 = vunpack.c.l.b16 %v3600
        %v3634 = vunpack.c.l.b16 %v3601
        %v3635 = vunpack.c.l.b16 %v3602
        %v3636 = vunpack.c.l.b16 %v3603
        %v3637 = vunpack.c.l.b16 %v3604
        %v3638 = vunpack.c.l.b16 %v3605
        %v3639 = vunpack.c.l.b16 %v3606
        %v3640 = vunpack.c.l.b16 %v3607
        %v3641 = vunpack.c.l.b16 %v3608
        %v3642 = vunpack.c.l.b16 %v3609
        %v3643 = vunpack.c.l.b16 %v3610
        %v3644 = vunpack.c.l.b16 %v3611
        %v3645 = vpack.c.b16 %v3630, %v3629
        %v3646 = vpack.c.b16 %v3632, %v3631
        %v3647 = vpack.c.b16 %v3634, %v3633
        %v3648 = vpack.c.b16 %v3636, %v3635
        %v3649 = vpack.c.b16 %v3638, %v3637
        %v3650 = vpack.c.b16 %v3640, %v3639
        %v3651 = vpack.c.b16 %v3642, %v3641
        %v3652 = vpack.c.b16 %v3644, %v3643
        %3661 = vmatprep.subr.bf16.mxu0 0
        %3662 = vmatpush1.bf16.msra.mxu0 %v3645
        %3663 = vmatprep.subr.bf16.mxu0 0
        %3664 = vmatpush1.bf16.msra.mxu0 %v3646
        %3665 = vmatprep.subr.bf16.mxu0 0
        %3666 = vmatpush1.bf16.msra.mxu0 %v3647
        %3667 = vmatprep.subr.bf16.mxu0 0
        %3668 = vmatpush1.bf16.msra.mxu0 %v3648
        %3669 = vmatprep.subr.bf16.mxu0 0
        %3670 = vmatpush1.bf16.msra.mxu0 %v3649
        %3671 = vmatprep.subr.bf16.mxu0 0
        %3672 = vmatpush1.bf16.msra.mxu0 %v3650
        %3673 = vmatprep.subr.bf16.mxu0 0
        %3674 = vmatpush1.bf16.msra.mxu0 %v3651
        %3675 = vmatprep.subr.bf16.mxu0 0
        %3676 = vmatpush1.bf16.msra.mxu0 %v3652
        %3677 = vmatprep.subr.bf16.mxu0 0
        %3678 = vmatpush1.bf16.msra.mxu0 0
        %3679 = vmatprep.subr.bf16.mxu0 0
        %3680 = vmatpush1.bf16.msra.mxu0 0
        %3681 = vmatprep.subr.bf16.mxu0 0
        %3682 = vmatpush1.bf16.msra.mxu0 0
        %3683 = vmatprep.subr.bf16.mxu0 0
        %3684 = vmatpush1.bf16.msra.mxu0 0
        %3685 = vmatprep.subr.bf16.mxu0 0
        %3686 = vmatpush1.bf16.msra.mxu0 0
        %3687 = vmatprep.subr.bf16.mxu0 0
        %3688 = vmatpush1.bf16.msra.mxu0 0
        %3689 = vmatprep.subr.bf16.mxu0 0
        %3690 = vmatpush1.bf16.msra.mxu0 0
        %3691 = vmatprep.subr.bf16.mxu0 0
        %3692 = vmatpush1.bf16.msra.mxu0 0
        %3693 = vmatprep.mubr.bf16.mxu0 0
        %3694 = vmatmul.mubr.bf16.gmra.mrb[0].mxu0 %v3595
        %v3695 = vpop.f32.mrb[0].mxu0
        %v3696 = vadd.f32 %v3612, %v3695
        %v3697 = vpop.f32.mrb[0].mxu0
        %v3698 = vpop.f32.mrb[0].mxu0
        %v3699 = vpop.f32.mrb[0].mxu0
        %3700 = vdwg.mxu0
        %vm3701 = vcmp.lt.s32.totalorder %v783, 4
        %v3702 = vsel %vm3701, %v3696, -1e+30
        %vm3703 = vcmask 1040384
        %v3704 = vsel %vm3703, %v3702, -inf
        %3705 = vmax.xlane.f32.xlu0 %v3704
        %v3706 = vpop.xlane.xlu0 %3705
        %v3707 = vsub.f32 %v3702, %v3706
        %v3708 = vmul.f32 %v3707, 1.442695
        %v3709 = vpow.pop %v3708
        %v3710 = vsel %vm3701, %v3709, 0.0
        %v3711 = vsel %vm3703, %v3710, 0.0
        %3712 = vadd.xlane.f32.xlu0 %v3711
        %v3713 = vpop.xlane.xlu0 %3712
        %v3714 = vlog2.pop %v3713
        %v3715 = vmul.f32 %v3714, 0.6931472
        %v3716 = vsub.f32 %v3707, %v3715
        %3717 = vst [vmem:[%s772] sm:$0x1] %v3716
        %s3718 = sand.u32 %s520, 1
        %s3719 = scalar_lea.sflag [#allocation4], %s3718
        %s3720 = sand.u32 %s520, 1
        %s3721 = scalar_lea.vmem [#allocation13], %s3720
        // Predicated region
        $region133: #{bert_classifier_forward.1} parent=107 // pred_check
          %p3722 = pneg %p530
        $region134: #{bert_classifier_forward.1} parent=107 // pred_check_branch
          %3724 = sbr.rel (%p3722) target = $region136
        $region135: #{bert_classifier_forward.1} parent=107 // pred_region
          %s3726 = ssub.s32 16, 16
          %3727 = vsyncadd %s3719, %s3726
          %s3728 = smul.addr %s40, 16
          %s3729 = scalar_lea.hbm %s22, %s3728
          %s3731 = sshll.u32 %s3721, 4
          %s3732 = int_to_ptr.vmem [resolvable:$true] %s3731
          %3734 = dma.vmem_to_hbm [thread:$0]  %s3732, 16, %s3729, %s3719
        $region136: #{bert_classifier_forward.1} parent=107 // pred_fallthru
          _
      $region108: #{bert_classifier_forward.1} parent=5 // pred_fallthru
        _
      %p3735 = scmp.le.s32.totalorder 2, %s35
      // Predicated region
      $region137: #{bert_classifier_forward.1} parent=5 // pred_check
        %p3736 = pneg %p3735
      $region138: #{bert_classifier_forward.1} parent=5 // pred_check_branch
        %3738 = sbr.rel (%p3736) target = $region140
      $region139: #{bert_classifier_forward.1} parent=5 // pred_region
        %s3739 = ssub.s32 %s35, 2
        // Predicated region
        $region141: #{bert_classifier_forward.1} parent=139 // pred_check
          %p3740 = pneg %p536
        $region142: #{bert_classifier_forward.1} parent=139 // pred_check_branch
          %3742 = sbr.rel (%p3740) target = $region144
        $region143: #{bert_classifier_forward.1} parent=139 // pred_region
          %s3743 = sand.u32 %s521, 1
          %s3744 = scalar_lea.sflag [#allocation4], %s3743
          %s3745 = sand.u32 %s521, 1
          %s3746 = scalar_lea.vmem [#allocation13], %s3745
          %3747 = dma.done %s3744, 16
        $region144: #{bert_classifier_forward.1} parent=139 // pred_fallthru
          _
      $region140: #{bert_classifier_forward.1} parent=5 // pred_fallthru
        _
    $region6: #{bert_classifier_forward.1} parent=1 // loop_footer
      %s39 = sadd.s32 1, %s35
    $region7: #{bert_classifier_forward.1} parent=1 // loop_footer_branch
      %34 = sbr.rel target = $region3
    $region8: #{bert_classifier_forward.1} parent=1 // loop_exit
      _
    %3748 = vsyncpa [#allocation3], 1
    %s3749 = scalar_lea.sflag [#allocation3], 1
    %3750 = vsyncpa %s3749, 1
    %3751 = vsyncpa [#allocation6], 1
    %3752 = vsyncpa [#allocation9], 1
    %3753 = vsyncpa [#allocation12], 1
    %3754 = vsyncpa [#allocation4], 1
    %s3755 = scalar_lea.sflag [#allocation4], 1
    %3756 = vsyncpa %s3755, 1

</llo_original>
